<compile_context>
chip_gen: v7x
topology: tpu7x:2x2x1
jax: 0.10.0
libtpu: 0.0.40
codegen_flags: <defaults>
</compile_context>

<pallas_src>
import jax
import jax.numpy as jnp
from jax.experimental import pallas as pl
from jax.experimental.pallas import tpu as pltpu

LANE = 128


def _round_up(x, m):
    return (x + m - 1) // m * m


def _pad_axis(a, axis, target):
    if target == a.shape[axis]:
        return a
    pad = [(0, 0)] * a.ndim
    pad[axis] = (0, target - a.shape[axis])
    return jnp.pad(a, pad)


def _row_tiling(m, tm_max=512):
    # Single full-slab block for small M, otherwise tm_max-row tiles.
    tm = tm_max if m >= tm_max else _round_up(m, 16)
    return tm, _round_up(m, tm)


# ----------------------------- Pallas kernels --------------------------------

def _conv_relu_pool_kernel(a00_ref, a01_ref, a10_ref, a11_ref, w_ref, b_ref,
                           o_ref):
    """Fused conv-matmul + bias + ReLU + 2x2 max-pool epilogue.

    a*_ref: (TM, K) bf16 im2col patches, one per pooling-window corner.
    w_ref:  (K, 128) bf16 (Cout zero-padded to 128).  b_ref: (1, 128) f32.
    """
    w = w_ref[...]
    z00 = jnp.dot(a00_ref[...], w, preferred_element_type=jnp.float32)
    z01 = jnp.dot(a01_ref[...], w, preferred_element_type=jnp.float32)
    z10 = jnp.dot(a10_ref[...], w, preferred_element_type=jnp.float32)
    z11 = jnp.dot(a11_ref[...], w, preferred_element_type=jnp.float32)
    # balanced max tree (shorter VALU dependency chain than a serial fold)
    z = jnp.maximum(jnp.maximum(z00, z01), jnp.maximum(z10, z11))
    o_ref[...] = jnp.maximum(z + b_ref[...], 0.0).astype(o_ref.dtype)


def _fc_fused_kernel(x_ref, w1_ref, b1_ref, w2_ref, b2_ref, w3_ref, b3_ref,
                     o_ref):
    """fc1+ReLU -> fc2+ReLU -> fc3 + log_softmax, all resident in VMEM."""
    h = jnp.dot(x_ref[...], w1_ref[...], preferred_element_type=jnp.float32)
    h = jnp.maximum(h + b1_ref[...], 0.0).astype(jnp.bfloat16)
    h = jnp.dot(h, w2_ref[...], preferred_element_type=jnp.float32)
    h = jnp.maximum(h + b2_ref[...], 0.0).astype(jnp.bfloat16)
    z = jnp.dot(h, w3_ref[...], preferred_element_type=jnp.float32) + b3_ref[...]
    # b3 is padded with a large negative value on lanes >= 10, so the padded
    # lanes vanish from the max / sum below.
    m = jnp.max(z, axis=-1, keepdims=True)
    lse = m + jnp.log(jnp.sum(jnp.exp(z - m), axis=-1, keepdims=True))
    o_ref[...] = z - lse


# ------------------------------ wrappers --------------------------------------

def _conv_relu_pool(corners, w_pad, b_pad, *, tm_max=512):
    m, k = corners[0].shape
    n = w_pad.shape[1]
    tm, mp = _row_tiling(m, tm_max)
    corners = [_pad_axis(c, 0, mp) for c in corners]
    out = pl.pallas_call(
        _conv_relu_pool_kernel,
        out_shape=jax.ShapeDtypeStruct((mp, n), jnp.bfloat16),
        grid=(mp // tm,),
        in_specs=[pl.BlockSpec((tm, k), lambda i: (i, 0))] * 4
        + [pl.BlockSpec((k, n), lambda i: (0, 0)),
           pl.BlockSpec((1, n), lambda i: (0, 0))],
        out_specs=pl.BlockSpec((tm, n), lambda i: (i, 0)),
        compiler_params=pltpu.CompilerParams(
            dimension_semantics=("parallel",)),
    )(*corners, w_pad, b_pad)
    return out[:m]


def _fc_fused(x, w1, b1, w2, b2, w3, b3, *, tb_max=256):
    bsz, k = x.shape
    tb, bp = _row_tiling(bsz, tb_max)
    x = _pad_axis(x, 0, bp)
    out = pl.pallas_call(
        _fc_fused_kernel,
        out_shape=jax.ShapeDtypeStruct((bp, LANE), jnp.float32),
        grid=(bp // tb,),
        in_specs=[pl.BlockSpec((tb, k), lambda i: (i, 0)),
                  pl.BlockSpec(w1.shape, lambda i: (0, 0)),
                  pl.BlockSpec(b1.shape, lambda i: (0, 0)),
                  pl.BlockSpec(w2.shape, lambda i: (0, 0)),
                  pl.BlockSpec(b2.shape, lambda i: (0, 0)),
                  pl.BlockSpec(w3.shape, lambda i: (0, 0)),
                  pl.BlockSpec(b3.shape, lambda i: (0, 0))],
        out_specs=pl.BlockSpec((tb, LANE), lambda i: (i, 0)),
        compiler_params=pltpu.CompilerParams(
            dimension_semantics=("parallel",)),
    )(x, w1, b1, w2, b2, w3, b3)
    return out[:bsz]


def _im2col_pool_corners(x, kh, kw, pad):
    """x: (B, H, W, C) channels-last (any float dtype; cast to bf16 here).

    Returns 4 bf16 patch slabs of shape (B*PH*PW, C*kh*kw), one per 2x2
    pooling-window corner.  K is ordered (c, ki, kj) so it matches
    torch weight.reshape(Cout, Cin*KH*KW).
    """
    x = x.astype(jnp.bfloat16)          # half the slab bytes before padding
    if pad:
        x = jnp.pad(x, ((0, 0), (pad, pad), (pad, pad), (0, 0)))
    b, hp, wp, c = x.shape
    oh, ow = hp - kh + 1, wp - kw + 1
    ph, pw = oh // 2, ow // 2
    cols = [x[:, ki:ki + oh, kj:kj + ow, :]
            for ki in range(kh) for kj in range(kw)]
    p = jnp.stack(cols, axis=-1)                        # (B, OH, OW, C, kh*kw)
    p = p.reshape(b, oh, ow, c * kh * kw)
    corners = [p[:, pi::2, pj::2, :].reshape(b * ph * pw, c * kh * kw)
               for pi in range(2) for pj in range(2)]
    return corners, ph, pw


# --------------------------- parameter preparation ---------------------------

def prepare_params(p):
    """Torch-layout params -> lane-padded (128) bf16 kernel weights."""

    def conv_w(w):                       # (Cout,Cin,KH,KW) -> (Cin*KH*KW, 128)
        cout = w.shape[0]
        return _pad_axis(w.reshape(cout, -1).T, 1, LANE).astype(jnp.bfloat16)

    def bias(b, fill=0.0):
        return jnp.full((1, LANE), fill, jnp.float32).at[0, :b.shape[0]].set(
            b.astype(jnp.float32))

    # fc1 weight reordered to consume the channel-padded, channels-last
    # flattening (ph, pw, c_pad) of the conv2 pooled output (no NCHW transpose
    # needed anywhere in the forward pass).
    wf1 = p["wf1"].reshape(120, 16, 5, 5).transpose(2, 3, 1, 0)   # (5,5,16,120)
    wf1 = _pad_axis(_pad_axis(wf1, 2, LANE), 3, LANE)             # (5,5,128,128)
    wf1 = wf1.reshape(5 * 5 * LANE, LANE).astype(jnp.bfloat16)

    wf2 = _pad_axis(_pad_axis(p["wf2"].T, 0, LANE), 1, LANE).astype(jnp.bfloat16)
    wf3 = _pad_axis(_pad_axis(p["wf3"].T, 0, LANE), 1, LANE).astype(jnp.bfloat16)

    return {
        "w1": conv_w(p["w1"]), "b1": bias(p["b1"]),
        "w2": conv_w(p["w2"]), "b2": bias(p["b2"]),
        "wf1": wf1, "bf1": bias(p["bf1"]),
        "wf2": wf2, "bf2": bias(p["bf2"]),
        # padded logits get a huge negative bias so log_softmax ignores them
        "wf3": wf3, "bf3": bias(p["bf3"], fill=-1e9),
    }


# ------------------------------- forward --------------------------------------

def lenet_forward(x, kp):
    """x: (B, 1, 28, 28) NCHW (PyTorch layout).  Returns (B, 10) log-probs."""
    bsz = x.shape[0]
    x = x.transpose(0, 2, 3, 1)                             # (B, 28, 28, 1)

    # conv1 (5x5, pad=2) + ReLU + maxpool(2,2), fused in one kernel
    corners, ph, pw = _im2col_pool_corners(x, 5, 5, pad=2)  # K = 25
    h = _conv_relu_pool(corners, kp["w1"], kp["b1"])        # (B*14*14, 128) bf16
    h = h.reshape(bsz, ph, pw, LANE)[..., :6]               # (B, 14, 14, 6)

    # conv2 (5x5, pad=0) + ReLU + maxpool(2,2), fused in one kernel
    corners, ph, pw = _im2col_pool_corners(h, 5, 5, pad=0)  # K = 150
    h = _conv_relu_pool(corners, kp["w2"], kp["b2"])        # (B*5*5, 128) bf16

    # flatten channel-padded channels-last slab -> (B, 5*5*128); fc1 weight is
    # pre-reordered to this layout.
    h = h.reshape(bsz, ph * pw * LANE)

    out = _fc_fused(h, kp["wf1"], kp["bf1"], kp["wf2"], kp["bf2"],
                    kp["wf3"], kp["bf3"])                   # (B, 128) f32
    return out[:, :10]


# ------------------------- reference & init (host) ----------------------------

def lenet_reference(x, p):
    """Pure-JAX f32 reference with PyTorch semantics (for validation)."""
    def conv(x, w, b, pad):
        y = jax.lax.conv_general_dilated(
            x, w, window_strides=(1, 1),
            padding=[(pad, pad), (pad, pad)],
            dimension_numbers=("NCHW", "OIHW", "NCHW"))
        return jax.nn.relu(y + b.reshape(1, -1, 1, 1))

    def pool(x):
        return jax.lax.reduce_window(x, -jnp.inf, jax.lax.max,
                                     (1, 1, 2, 2), (1, 1, 2, 2), "VALID")

    h = pool(conv(x, p["w1"], p["b1"], 2))
    h = pool(conv(h, p["w2"], p["b2"], 0))
    h = h.reshape(x.shape[0], -1)
    h = jax.nn.relu(h @ p["wf1"].T + p["bf1"])
    h = jax.nn.relu(h @ p["wf2"].T + p["bf2"])
    z = h @ p["wf3"].T + p["bf3"]
    return jax.nn.log_softmax(z, axis=-1)


def init_params(key):
    # deterministic PyTorch-style uniform(-1/sqrt(fan_in), 1/sqrt(fan_in))
    def unif(k, shape, fan_in):
        bound = 1.0 / (fan_in ** 0.5)
        return jax.random.uniform(k, shape, jnp.float32, -bound, bound)

    ks = jax.random.split(key, 10)
    return {
        "w1": unif(ks[0], (6, 1, 5, 5), 1 * 5 * 5),
        "b1": unif(ks[1], (6,), 1 * 5 * 5),
        "w2": unif(ks[2], (16, 6, 5, 5), 6 * 5 * 5),
        "b2": unif(ks[3], (16,), 6 * 5 * 5),
        "wf1": unif(ks[4], (120, 400), 400),
        "bf1": unif(ks[5], (120,), 400),
        "wf2": unif(ks[6], (84, 120), 120),
        "bf2": unif(ks[7], (84,), 120),
        "wf3": unif(ks[8], (10, 84), 84),
        "bf3": unif(ks[9], (10,), 84),
    }


if __name__ == "__main__":
    key = jax.random.PRNGKey(0)
    kx, kp = jax.random.split(key)
    x = jax.random.normal(kx, (2, 1, 28, 28), jnp.float32)   # MNIST-sized input
    params = init_params(kp)
    kparams = prepare_params(params)

    out = jax.block_until_ready(jax.jit(lenet_forward)(x, kparams))
    assert out.shape == (2, 10)
    assert bool(jnp.all(jnp.isfinite(out)))
    # rows of log_softmax should exp-sum to 1
    assert bool(jnp.allclose(jnp.sum(jnp.exp(out), axis=-1), 1.0, atol=1e-3))
    # semantic check vs. f32 reference (loose tolerance for bf16 MXU inputs)
    ref = lenet_reference(x, params)
    assert bool(jnp.max(jnp.abs(out - ref)) < 0.1)
    print("KERNEL_OK")
</pallas_src>

<mosaic_0001>
module attributes {stable_mosaic.version = 11 : i64} {
  func.func @_conv_relu_pool_kernel(%arg0: i32, %arg1: memref<400x25xbf16, #tpu.memory_space<vmem>>, %arg2: memref<400x25xbf16, #tpu.memory_space<vmem>>, %arg3: memref<400x25xbf16, #tpu.memory_space<vmem>>, %arg4: memref<400x25xbf16, #tpu.memory_space<vmem>>, %arg5: memref<25x128xbf16, #tpu.memory_space<vmem>>, %arg6: memref<1x128xf32, #tpu.memory_space<vmem>>, %arg7: memref<400x128xbf16, #tpu.memory_space<vmem>>) attributes {dimension_semantics = [#tpu.dimension_semantics<parallel>], iteration_bounds = array<i64: 1>, scalar_prefetch = 0 : i64, scratch_operands = 0 : i64, tpu.core_type = #tpu.core_type<tc>, window_params = [{transform_indices = @transform_0, window_bounds = array<i64: 400, 25>}, {transform_indices = @transform_1, window_bounds = array<i64: 400, 25>}, {transform_indices = @transform_2, window_bounds = array<i64: 400, 25>}, {transform_indices = @transform_3, window_bounds = array<i64: 400, 25>}, {pipeline_mode = #tpu.pipeline_mode<synchronous>, transform_indices = @transform_4, window_bounds = array<i64: 25, 128>}, {pipeline_mode = #tpu.pipeline_mode<synchronous>, transform_indices = @transform_5, window_bounds = array<i64: 1, 128>}, {transform_indices = @transform_6, window_bounds = array<i64: 400, 128>}]} {
    %c0 = arith.constant 0 : index
    %c0_0 = arith.constant 0 : index
    %0 = vector.load %arg5[%c0, %c0_0] : memref<25x128xbf16, #tpu.memory_space<vmem>>, vector<25x128xbf16>
    %c0_1 = arith.constant 0 : index
    %c0_2 = arith.constant 0 : index
    %1 = vector.load %arg1[%c0_1, %c0_2] : memref<400x25xbf16, #tpu.memory_space<vmem>>, vector<400x25xbf16>
    %cst = arith.constant dense<0.000000e+00> : vector<400x128xf32>
    %2 = tpu.matmul %1, %0, %cst {dimension_numbers = #tpu.dot_dimension_numbers<[1], [0], [0], [1], [0, 0, 1, 1], [], []>} : vector<400x25xbf16>, vector<25x128xbf16>, vector<400x128xf32> -> vector<400x128xf32>
    %c0_3 = arith.constant 0 : index
    %c0_4 = arith.constant 0 : index
    %3 = vector.load %arg2[%c0_3, %c0_4] : memref<400x25xbf16, #tpu.memory_space<vmem>>, vector<400x25xbf16>
    %cst_5 = arith.constant dense<0.000000e+00> : vector<400x128xf32>
    %4 = tpu.matmul %3, %0, %cst_5 {dimension_numbers = #tpu.dot_dimension_numbers<[1], [0], [0], [1], [0, 0, 1, 1], [], []>} : vector<400x25xbf16>, vector<25x128xbf16>, vector<400x128xf32> -> vector<400x128xf32>
    %c0_6 = arith.constant 0 : index
    %c0_7 = arith.constant 0 : index
    %5 = vector.load %arg3[%c0_6, %c0_7] : memref<400x25xbf16, #tpu.memory_space<vmem>>, vector<400x25xbf16>
    %cst_8 = arith.constant dense<0.000000e+00> : vector<400x128xf32>
    %6 = tpu.matmul %5, %0, %cst_8 {dimension_numbers = #tpu.dot_dimension_numbers<[1], [0], [0], [1], [0, 0, 1, 1], [], []>} : vector<400x25xbf16>, vector<25x128xbf16>, vector<400x128xf32> -> vector<400x128xf32>
    %c0_9 = arith.constant 0 : index
    %c0_10 = arith.constant 0 : index
    %7 = vector.load %arg4[%c0_9, %c0_10] : memref<400x25xbf16, #tpu.memory_space<vmem>>, vector<400x25xbf16>
    %cst_11 = arith.constant dense<0.000000e+00> : vector<400x128xf32>
    %8 = tpu.matmul %7, %0, %cst_11 {dimension_numbers = #tpu.dot_dimension_numbers<[1], [0], [0], [1], [0, 0, 1, 1], [], []>} : vector<400x25xbf16>, vector<25x128xbf16>, vector<400x128xf32> -> vector<400x128xf32>
    %9 = arith.maximumf %2, %4 : vector<400x128xf32>
    %10 = arith.maximumf %6, %8 : vector<400x128xf32>
    %11 = arith.maximumf %9, %10 : vector<400x128xf32>
    %c0_12 = arith.constant 0 : index
    %c0_13 = arith.constant 0 : index
    %12 = vector.load %arg6[%c0_12, %c0_13] : memref<1x128xf32, #tpu.memory_space<vmem>>, vector<1x128xf32>
    %13 = vector.broadcast %12 : vector<1x128xf32> to vector<400x128xf32>
    %14 = arith.addf %11, %13 : vector<400x128xf32>
    %cst_14 = arith.constant 0.000000e+00 : f32
    %15 = vector.broadcast %cst_14 : f32 to vector<400x128xf32>
    %16 = arith.maximumf %14, %15 : vector<400x128xf32>
    %17 = arith.truncf %16 : vector<400x128xf32> to vector<400x128xbf16>
    %c0_15 = arith.constant 0 : index
    %c0_16 = arith.constant 0 : index
    %18 = vector.load %arg7[%c0_15, %c0_16] : memref<400x128xbf16, #tpu.memory_space<vmem>>, vector<400x128xbf16>
    tpu.vector_store %arg7[%c0_15, %c0_16], %17 {strides = array<i32>} : memref<400x128xbf16, #tpu.memory_space<vmem>>, vector<400x128xbf16>,
    return
  }
  func.func @transform_0(%arg0: i32) -> (i32, i32) {
    %c0_i32 = arith.constant 0 : i32
    %c0_i32_0 = arith.constant 0 : i32
    return %arg0, %c0_i32 : i32, i32
  }
  func.func @transform_1(%arg0: i32) -> (i32, i32) {
    %c0_i32 = arith.constant 0 : i32
    %c0_i32_0 = arith.constant 0 : i32
    return %arg0, %c0_i32 : i32, i32
  }
  func.func @transform_2(%arg0: i32) -> (i32, i32) {
    %c0_i32 = arith.constant 0 : i32
    %c0_i32_0 = arith.constant 0 : i32
    return %arg0, %c0_i32 : i32, i32
  }
  func.func @transform_3(%arg0: i32) -> (i32, i32) {
    %c0_i32 = arith.constant 0 : i32
    %c0_i32_0 = arith.constant 0 : i32
    return %arg0, %c0_i32 : i32, i32
  }
  func.func @transform_4(%arg0: i32) -> (i32, i32) {
    %c0_i32 = arith.constant 0 : i32
    %c0_i32_0 = arith.constant 0 : i32
    %c0_i32_1 = arith.constant 0 : i32
    return %c0_i32, %c0_i32_0 : i32, i32
  }
  func.func @transform_5(%arg0: i32) -> (i32, i32) {
    %c0_i32 = arith.constant 0 : i32
    %c0_i32_0 = arith.constant 0 : i32
    %c0_i32_1 = arith.constant 0 : i32
    return %c0_i32, %c0_i32_0 : i32, i32
  }
  func.func @transform_6(%arg0: i32) -> (i32, i32) {
    %c0_i32 = arith.constant 0 : i32
    %c0_i32_0 = arith.constant 0 : i32
    return %arg0, %c0_i32 : i32, i32
  }
}

module attributes {stable_mosaic.version = 11 : i64} {
  func.func @_conv_relu_pool_kernel(%arg0: i32, %arg1: memref<64x150xbf16, #tpu.memory_space<vmem>>, %arg2: memref<64x150xbf16, #tpu.memory_space<vmem>>, %arg3: memref<64x150xbf16, #tpu.memory_space<vmem>>, %arg4: memref<64x150xbf16, #tpu.memory_space<vmem>>, %arg5: memref<150x128xbf16, #tpu.memory_space<vmem>>, %arg6: memref<1x128xf32, #tpu.memory_space<vmem>>, %arg7: memref<64x128xbf16, #tpu.memory_space<vmem>>) attributes {dimension_semantics = [#tpu.dimension_semantics<parallel>], iteration_bounds = array<i64: 1>, scalar_prefetch = 0 : i64, scratch_operands = 0 : i64, tpu.core_type = #tpu.core_type<tc>, window_params = [{transform_indices = @transform_0, window_bounds = array<i64: 64, 150>}, {transform_indices = @transform_1, window_bounds = array<i64: 64, 150>}, {transform_indices = @transform_2, window_bounds = array<i64: 64, 150>}, {transform_indices = @transform_3, window_bounds = array<i64: 64, 150>}, {pipeline_mode = #tpu.pipeline_mode<synchronous>, transform_indices = @transform_4, window_bounds = array<i64: 150, 128>}, {pipeline_mode = #tpu.pipeline_mode<synchronous>, transform_indices = @transform_5, window_bounds = array<i64: 1, 128>}, {transform_indices = @transform_6, window_bounds = array<i64: 64, 128>}]} {
    %c0 = arith.constant 0 : index
    %c0_0 = arith.constant 0 : index
    %0 = vector.load %arg5[%c0, %c0_0] : memref<150x128xbf16, #tpu.memory_space<vmem>>, vector<150x128xbf16>
    %c0_1 = arith.constant 0 : index
    %c0_2 = arith.constant 0 : index
    %1 = vector.load %arg1[%c0_1, %c0_2] : memref<64x150xbf16, #tpu.memory_space<vmem>>, vector<64x150xbf16>
    %cst = arith.constant dense<0.000000e+00> : vector<64x128xf32>
    %2 = tpu.matmul %1, %0, %cst {dimension_numbers = #tpu.dot_dimension_numbers<[1], [0], [0], [1], [0, 0, 1, 1], [], []>} : vector<64x150xbf16>, vector<150x128xbf16>, vector<64x128xf32> -> vector<64x128xf32>
    %c0_3 = arith.constant 0 : index
    %c0_4 = arith.constant 0 : index
    %3 = vector.load %arg2[%c0_3, %c0_4] : memref<64x150xbf16, #tpu.memory_space<vmem>>, vector<64x150xbf16>
    %cst_5 = arith.constant dense<0.000000e+00> : vector<64x128xf32>
    %4 = tpu.matmul %3, %0, %cst_5 {dimension_numbers = #tpu.dot_dimension_numbers<[1], [0], [0], [1], [0, 0, 1, 1], [], []>} : vector<64x150xbf16>, vector<150x128xbf16>, vector<64x128xf32> -> vector<64x128xf32>
    %c0_6 = arith.constant 0 : index
    %c0_7 = arith.constant 0 : index
    %5 = vector.load %arg3[%c0_6, %c0_7] : memref<64x150xbf16, #tpu.memory_space<vmem>>, vector<64x150xbf16>
    %cst_8 = arith.constant dense<0.000000e+00> : vector<64x128xf32>
    %6 = tpu.matmul %5, %0, %cst_8 {dimension_numbers = #tpu.dot_dimension_numbers<[1], [0], [0], [1], [0, 0, 1, 1], [], []>} : vector<64x150xbf16>, vector<150x128xbf16>, vector<64x128xf32> -> vector<64x128xf32>
    %c0_9 = arith.constant 0 : index
    %c0_10 = arith.constant 0 : index
    %7 = vector.load %arg4[%c0_9, %c0_10] : memref<64x150xbf16, #tpu.memory_space<vmem>>, vector<64x150xbf16>
    %cst_11 = arith.constant dense<0.000000e+00> : vector<64x128xf32>
    %8 = tpu.matmul %7, %0, %cst_11 {dimension_numbers = #tpu.dot_dimension_numbers<[1], [0], [0], [1], [0, 0, 1, 1], [], []>} : vector<64x150xbf16>, vector<150x128xbf16>, vector<64x128xf32> -> vector<64x128xf32>
    %9 = arith.maximumf %2, %4 : vector<64x128xf32>
    %10 = arith.maximumf %6, %8 : vector<64x128xf32>
    %11 = arith.maximumf %9, %10 : vector<64x128xf32>
    %c0_12 = arith.constant 0 : index
    %c0_13 = arith.constant 0 : index
    %12 = vector.load %arg6[%c0_12, %c0_13] : memref<1x128xf32, #tpu.memory_space<vmem>>, vector<1x128xf32>
    %13 = vector.broadcast %12 : vector<1x128xf32> to vector<64x128xf32>
    %14 = arith.addf %11, %13 : vector<64x128xf32>
    %cst_14 = arith.constant 0.000000e+00 : f32
    %15 = vector.broadcast %cst_14 : f32 to vector<64x128xf32>
    %16 = arith.maximumf %14, %15 : vector<64x128xf32>
    %17 = arith.truncf %16 : vector<64x128xf32> to vector<64x128xbf16>
    %c0_15 = arith.constant 0 : index
    %c0_16 = arith.constant 0 : index
    %18 = vector.load %arg7[%c0_15, %c0_16] : memref<64x128xbf16, #tpu.memory_space<vmem>>, vector<64x128xbf16>
    tpu.vector_store %arg7[%c0_15, %c0_16], %17 {strides = array<i32>} : memref<64x128xbf16, #tpu.memory_space<vmem>>, vector<64x128xbf16>,
    return
  }
  func.func @transform_0(%arg0: i32) -> (i32, i32) {
    %c0_i32 = arith.constant 0 : i32
    %c0_i32_0 = arith.constant 0 : i32
    return %arg0, %c0_i32 : i32, i32
  }
  func.func @transform_1(%arg0: i32) -> (i32, i32) {
    %c0_i32 = arith.constant 0 : i32
    %c0_i32_0 = arith.constant 0 : i32
    return %arg0, %c0_i32 : i32, i32
  }
  func.func @transform_2(%arg0: i32) -> (i32, i32) {
    %c0_i32 = arith.constant 0 : i32
    %c0_i32_0 = arith.constant 0 : i32
    return %arg0, %c0_i32 : i32, i32
  }
  func.func @transform_3(%arg0: i32) -> (i32, i32) {
    %c0_i32 = arith.constant 0 : i32
    %c0_i32_0 = arith.constant 0 : i32
    return %arg0, %c0_i32 : i32, i32
  }
  func.func @transform_4(%arg0: i32) -> (i32, i32) {
    %c0_i32 = arith.constant 0 : i32
    %c0_i32_0 = arith.constant 0 : i32
    %c0_i32_1 = arith.constant 0 : i32
    return %c0_i32, %c0_i32_0 : i32, i32
  }
  func.func @transform_5(%arg0: i32) -> (i32, i32) {
    %c0_i32 = arith.constant 0 : i32
    %c0_i32_0 = arith.constant 0 : i32
    %c0_i32_1 = arith.constant 0 : i32
    return %c0_i32, %c0_i32_0 : i32, i32
  }
  func.func @transform_6(%arg0: i32) -> (i32, i32) {
    %c0_i32 = arith.constant 0 : i32
    %c0_i32_0 = arith.constant 0 : i32
    return %arg0, %c0_i32 : i32, i32
  }
}

module attributes {stable_mosaic.version = 11 : i64} {
  func.func @_fc_fused_kernel(%arg0: i32, %arg1: memref<16x3200xbf16, #tpu.memory_space<vmem>>, %arg2: memref<3200x128xbf16, #tpu.memory_space<vmem>>, %arg3: memref<1x128xf32, #tpu.memory_space<vmem>>, %arg4: memref<128x128xbf16, #tpu.memory_space<vmem>>, %arg5: memref<1x128xf32, #tpu.memory_space<vmem>>, %arg6: memref<128x128xbf16, #tpu.memory_space<vmem>>, %arg7: memref<1x128xf32, #tpu.memory_space<vmem>>, %arg8: memref<16x128xf32, #tpu.memory_space<vmem>>) attributes {dimension_semantics = [#tpu.dimension_semantics<parallel>], iteration_bounds = array<i64: 1>, scalar_prefetch = 0 : i64, scratch_operands = 0 : i64, tpu.core_type = #tpu.core_type<tc>, window_params = [{transform_indices = @transform_0, window_bounds = array<i64: 16, 3200>}, {pipeline_mode = #tpu.pipeline_mode<synchronous>, transform_indices = @transform_1, window_bounds = array<i64: 3200, 128>}, {pipeline_mode = #tpu.pipeline_mode<synchronous>, transform_indices = @transform_2, window_bounds = array<i64: 1, 128>}, {pipeline_mode = #tpu.pipeline_mode<synchronous>, transform_indices = @transform_3, window_bounds = array<i64: 128, 128>}, {pipeline_mode = #tpu.pipeline_mode<synchronous>, transform_indices = @transform_4, window_bounds = array<i64: 1, 128>}, {pipeline_mode = #tpu.pipeline_mode<synchronous>, transform_indices = @transform_5, window_bounds = array<i64: 128, 128>}, {pipeline_mode = #tpu.pipeline_mode<synchronous>, transform_indices = @transform_6, window_bounds = array<i64: 1, 128>}, {transform_indices = @transform_7, window_bounds = array<i64: 16, 128>}]} {
    %c0 = arith.constant 0 : index
    %c0_0 = arith.constant 0 : index
    %0 = vector.load %arg1[%c0, %c0_0] : memref<16x3200xbf16, #tpu.memory_space<vmem>>, vector<16x3200xbf16>
    %c0_1 = arith.constant 0 : index
    %c0_2 = arith.constant 0 : index
    %1 = vector.load %arg2[%c0_1, %c0_2] : memref<3200x128xbf16, #tpu.memory_space<vmem>>, vector<3200x128xbf16>
    %cst = arith.constant dense<0.000000e+00> : vector<16x128xf32>
    %2 = tpu.matmul %0, %1, %cst {dimension_numbers = #tpu.dot_dimension_numbers<[1], [0], [0], [1], [0, 0, 1, 1], [], []>} : vector<16x3200xbf16>, vector<3200x128xbf16>, vector<16x128xf32> -> vector<16x128xf32>
    %c0_3 = arith.constant 0 : index
    %c0_4 = arith.constant 0 : index
    %3 = vector.load %arg3[%c0_3, %c0_4] : memref<1x128xf32, #tpu.memory_space<vmem>>, vector<1x128xf32>
    %4 = vector.broadcast %3 : vector<1x128xf32> to vector<16x128xf32>
    %5 = arith.addf %2, %4 : vector<16x128xf32>
    %cst_5 = arith.constant 0.000000e+00 : f32
    %6 = vector.broadcast %cst_5 : f32 to vector<16x128xf32>
    %7 = arith.maximumf %5, %6 : vector<16x128xf32>
    %8 = arith.truncf %7 : vector<16x128xf32> to vector<16x128xbf16>
    %c0_6 = arith.constant 0 : index
    %c0_7 = arith.constant 0 : index
    %9 = vector.load %arg4[%c0_6, %c0_7] : memref<128x128xbf16, #tpu.memory_space<vmem>>, vector<128x128xbf16>
    %cst_8 = arith.constant dense<0.000000e+00> : vector<16x128xf32>
    %10 = tpu.matmul %8, %9, %cst_8 {dimension_numbers = #tpu.dot_dimension_numbers<[1], [0], [0], [1], [0, 0, 1, 1], [], []>} : vector<16x128xbf16>, vector<128x128xbf16>, vector<16x128xf32> -> vector<16x128xf32>
    %c0_9 = arith.constant 0 : index
    %c0_10 = arith.constant 0 : index
    %11 = vector.load %arg5[%c0_9, %c0_10] : memref<1x128xf32, #tpu.memory_space<vmem>>, vector<1x128xf32>
    %12 = vector.broadcast %11 : vector<1x128xf32> to vector<16x128xf32>
    %13 = arith.addf %10, %12 : vector<16x128xf32>
    %cst_11 = arith.constant 0.000000e+00 : f32
    %14 = vector.broadcast %cst_11 : f32 to vector<16x128xf32>
    %15 = arith.maximumf %13, %14 : vector<16x128xf32>
    %16 = arith.truncf %15 : vector<16x128xf32> to vector<16x128xbf16>
    %c0_12 = arith.constant 0 : index
    %c0_13 = arith.constant 0 : index
    %17 = vector.load %arg6[%c0_12, %c0_13] : memref<128x128xbf16, #tpu.memory_space<vmem>>, vector<128x128xbf16>
    %cst_14 = arith.constant dense<0.000000e+00> : vector<16x128xf32>
    %18 = tpu.matmul %16, %17, %cst_14 {dimension_numbers = #tpu.dot_dimension_numbers<[1], [0], [0], [1], [0, 0, 1, 1], [], []>} : vector<16x128xbf16>, vector<128x128xbf16>, vector<16x128xf32> -> vector<16x128xf32>
    %c0_15 = arith.constant 0 : index
    %c0_16 = arith.constant 0 : index
    %19 = vector.load %arg7[%c0_15, %c0_16] : memref<1x128xf32, #tpu.memory_space<vmem>>, vector<1x128xf32>
    %20 = vector.broadcast %19 : vector<1x128xf32> to vector<16x128xf32>
    %21 = arith.addf %18, %20 : vector<16x128xf32>
    %cst_17 = arith.constant dense<0xFF800000> : vector<16xf32>
    %22 = vector.multi_reduction <maximumf>, %21, %cst_17 [1] : vector<16x128xf32> to vector<16xf32>
    %23 = vector.shape_cast %22 : vector<16xf32> to vector<16x1xf32>
    %24 = vector.broadcast %23 : vector<16x1xf32> to vector<16x128xf32>
    %25 = arith.subf %21, %24 : vector<16x128xf32>
    %26 = math.exp %25 : vector<16x128xf32>
    %cst_18 = arith.constant dense<0.000000e+00> : vector<16xf32>
    %27 = vector.multi_reduction <add>, %26, %cst_18 [1] : vector<16x128xf32> to vector<16xf32>
    %28 = vector.shape_cast %27 : vector<16xf32> to vector<16x1xf32>
    %29 = math.log %28 : vector<16x1xf32>
    %30 = arith.addf %23, %29 : vector<16x1xf32>
    %31 = vector.broadcast %30 : vector<16x1xf32> to vector<16x128xf32>
    %32 = arith.subf %21, %31 : vector<16x128xf32>
    %c0_19 = arith.constant 0 : index
    %c0_20 = arith.constant 0 : index
    %33 = vector.load %arg8[%c0_19, %c0_20] : memref<16x128xf32, #tpu.memory_space<vmem>>, vector<16x128xf32>
    tpu.vector_store %arg8[%c0_19, %c0_20], %32 {strides = array<i32>} : memref<16x128xf32, #tpu.memory_space<vmem>>, vector<16x128xf32>,
    return
  }
  func.func @transform_0(%arg0: i32) -> (i32, i32) {
    %c0_i32 = arith.constant 0 : i32
    %c0_i32_0 = arith.constant 0 : i32
    return %arg0, %c0_i32 : i32, i32
  }
  func.func @transform_1(%arg0: i32) -> (i32, i32) {
    %c0_i32 = arith.constant 0 : i32
    %c0_i32_0 = arith.constant 0 : i32
    %c0_i32_1 = arith.constant 0 : i32
    return %c0_i32, %c0_i32_0 : i32, i32
  }
  func.func @transform_2(%arg0: i32) -> (i32, i32) {
    %c0_i32 = arith.constant 0 : i32
    %c0_i32_0 = arith.constant 0 : i32
    %c0_i32_1 = arith.constant 0 : i32
    return %c0_i32, %c0_i32_0 : i32, i32
  }
  func.func @transform_3(%arg0: i32) -> (i32, i32) {
    %c0_i32 = arith.constant 0 : i32
    %c0_i32_0 = arith.constant 0 : i32
    %c0_i32_1 = arith.constant 0 : i32
    return %c0_i32, %c0_i32_0 : i32, i32
  }
  func.func @transform_4(%arg0: i32) -> (i32, i32) {
    %c0_i32 = arith.constant 0 : i32
    %c0_i32_0 = arith.constant 0 : i32
    %c0_i32_1 = arith.constant 0 : i32
    return %c0_i32, %c0_i32_0 : i32, i32
  }
  func.func @transform_5(%arg0: i32) -> (i32, i32) {
    %c0_i32 = arith.constant 0 : i32
    %c0_i32_0 = arith.constant 0 : i32
    %c0_i32_1 = arith.constant 0 : i32
    return %c0_i32, %c0_i32_0 : i32, i32
  }
  func.func @transform_6(%arg0: i32) -> (i32, i32) {
    %c0_i32 = arith.constant 0 : i32
    %c0_i32_0 = arith.constant 0 : i32
    %c0_i32_1 = arith.constant 0 : i32
    return %c0_i32, %c0_i32_0 : i32, i32
  }
  func.func @transform_7(%arg0: i32) -> (i32, i32) {
    %c0_i32 = arith.constant 0 : i32
    %c0_i32_0 = arith.constant 0 : i32
    return %arg0, %c0_i32 : i32, i32
  }
}

</mosaic_0001>

<llo_original>
// kernel: lenet_forward.3
$region0: #{lenet_forward.3}
  #allocation0 [shape = 'u32[]', space=smem, size = 0x4, offset = 0x4, fixed_abs, tag = 'smem constant byte address 0x4 - core index']
  #allocation1 [shape = 'u32[144,128]{1,0:T(1,128)}', space=vmem, size = 0x12000, scoped, tag = 'internal scratch']
  %s0 = inlined_call_operand.vmem [shape: bf16[400,25], index: 0, kind: input, shape index: {}]
  %s1 = inlined_call_operand.vmem [shape: bf16[400,25], index: 1, kind: input, shape index: {}]
  %s2 = inlined_call_operand.vmem [shape: bf16[400,25], index: 2, kind: input, shape index: {}]
  %s3 = inlined_call_operand.vmem [shape: bf16[400,25], index: 3, kind: input, shape index: {}]
  %s4 = inlined_call_operand.vmem [shape: bf16[25,128], index: 4, kind: input, shape index: {}]
  %s5 = inlined_call_operand.vmem [shape: f32[1,128], index: 5, kind: input, shape index: {}]
  %s6 = inlined_call_operand.vmem [shape: bf16[400,128], index: 6, kind: output, shape index: {}]
  %s7 = sld [smem:[#allocation0]]
  $region34: #{lenet_forward.3} parent=0
    _
  %s9 = ssub.s32 1, %s7
  %s10 = scalar_select 0, %s9, %s7
  // Predicated region
  $region2: #{lenet_forward.3} parent=0 // pred_check
    _
  $region3: #{lenet_forward.3} parent=0 // pred_check_branch
    %12 = sbr.rel (0) target = $region5
  $region4: #{lenet_forward.3} parent=0 // pred_region
    _
  $region5: #{lenet_forward.3} parent=0 // pred_fallthru
    _
  // Predicated region
  $region6: #{lenet_forward.3} parent=0 // pred_check
    _
  $region7: #{lenet_forward.3} parent=0 // pred_check_branch
    %14 = sbr.rel (0) target = $region9
  $region8: #{lenet_forward.3} parent=0 // pred_region
    _
  $region9: #{lenet_forward.3} parent=0 // pred_fallthru
    _
  // Predicated region
  $region10: #{lenet_forward.3} parent=0 // pred_check
    _
  $region11: #{lenet_forward.3} parent=0 // pred_check_branch
    %16 = sbr.rel (0) target = $region13
  $region12: #{lenet_forward.3} parent=0 // pred_region
    _
  $region13: #{lenet_forward.3} parent=0 // pred_fallthru
    _
  // Predicated region
  $region14: #{lenet_forward.3} parent=0 // pred_check
    _
  $region15: #{lenet_forward.3} parent=0 // pred_check_branch
    %18 = sbr.rel (0) target = $region17
  $region16: #{lenet_forward.3} parent=0 // pred_region
    _
  $region17: #{lenet_forward.3} parent=0 // pred_fallthru
    _
  // Predicated region
  $region18: #{lenet_forward.3} parent=0 // pred_check
    _
  $region19: #{lenet_forward.3} parent=0 // pred_check_branch
    %20 = sbr.rel (0) target = $region21
  $region20: #{lenet_forward.3} parent=0 // pred_region
    _
  $region21: #{lenet_forward.3} parent=0 // pred_fallthru
    _
  // Predicated region
  $region22: #{lenet_forward.3} parent=0 // pred_check
    _
  $region23: #{lenet_forward.3} parent=0 // pred_check_branch
    %22 = sbr.rel (0) target = $region25
  $region24: #{lenet_forward.3} parent=0 // pred_region
    _
  $region25: #{lenet_forward.3} parent=0 // pred_fallthru
    _
  %v24 = vld [vmem:[%s4] sm:$0xf]
  %v25 = vld [vmem:[%s4 + $0x4] sm:$0xf]
  %v26 = vld [vmem:[%s4 + $0x8] sm:$0xf]
  %v27 = vld [vmem:[%s4 + $0xc] sm:$0x1]
  %v28 = vld [vmem:[%s0] sm:$0xf]
  %v29 = vld [vmem:[%s0 + $0x4] sm:$0xf]
  %v30 = vld [vmem:[%s0 + $0x8] sm:$0xf]
  %v31 = vld [vmem:[%s0 + $0xc] sm:$0xf]
  %v32 = vld [vmem:[%s0 + $0x10] sm:$0xf]
  %v33 = vld [vmem:[%s0 + $0x14] sm:$0xf]
  %v34 = vld [vmem:[%s0 + $0x18] sm:$0xf]
  %v35 = vld [vmem:[%s0 + $0x1c] sm:$0xf]
  %v36 = vld [vmem:[%s0 + $0x20] sm:$0xf]
  %v37 = vld [vmem:[%s0 + $0x24] sm:$0xf]
  %v38 = vld [vmem:[%s0 + $0x28] sm:$0xf]
  %v39 = vld [vmem:[%s0 + $0x2c] sm:$0xf]
  %v40 = vld [vmem:[%s0 + $0x30] sm:$0xf]
  %v41 = vld [vmem:[%s0 + $0x34] sm:$0xf]
  %v42 = vld [vmem:[%s0 + $0x38] sm:$0xf]
  %v43 = vld [vmem:[%s0 + $0x3c] sm:$0xf]
  %v44 = vld [vmem:[%s0 + $0x40] sm:$0xf]
  %v45 = vld [vmem:[%s0 + $0x44] sm:$0xf]
  %v46 = vld [vmem:[%s0 + $0x48] sm:$0xf]
  %v47 = vld [vmem:[%s0 + $0x4c] sm:$0xf]
  %v48 = vld [vmem:[%s0 + $0x50] sm:$0xf]
  %v49 = vld [vmem:[%s0 + $0x54] sm:$0xf]
  %v50 = vld [vmem:[%s0 + $0x58] sm:$0xf]
  %v51 = vld [vmem:[%s0 + $0x5c] sm:$0xf]
  %v52 = vld [vmem:[%s0 + $0x60] sm:$0xf]
  %v53 = vld [vmem:[%s0 + $0x64] sm:$0xf]
  %v54 = vld [vmem:[%s0 + $0x68] sm:$0xf]
  %v55 = vld [vmem:[%s0 + $0x6c] sm:$0xf]
  %v56 = vld [vmem:[%s0 + $0x70] sm:$0xf]
  %v57 = vld [vmem:[%s0 + $0x74] sm:$0xf]
  %v58 = vld [vmem:[%s0 + $0x78] sm:$0xf]
  %v59 = vld [vmem:[%s0 + $0x7c] sm:$0xf]
  %v60 = vld [vmem:[%s0 + $0x80] sm:$0xf]
  %v61 = vld [vmem:[%s0 + $0x84] sm:$0xf]
  %v62 = vld [vmem:[%s0 + $0x88] sm:$0xf]
  %v63 = vld [vmem:[%s0 + $0x8c] sm:$0xf]
  %v64 = vld [vmem:[%s0 + $0x90] sm:$0xf]
  %v65 = vld [vmem:[%s0 + $0x94] sm:$0xf]
  %v66 = vld [vmem:[%s0 + $0x98] sm:$0xf]
  %v67 = vld [vmem:[%s0 + $0x9c] sm:$0xf]
  %v68 = vld [vmem:[%s0 + $0xa0] sm:$0xf]
  %v69 = vld [vmem:[%s0 + $0xa4] sm:$0xf]
  %v70 = vld [vmem:[%s0 + $0xa8] sm:$0xf]
  %v71 = vld [vmem:[%s0 + $0xac] sm:$0xf]
  %v72 = vld [vmem:[%s0 + $0xb0] sm:$0xf]
  %v73 = vld [vmem:[%s0 + $0xb4] sm:$0xf]
  %v74 = vld [vmem:[%s0 + $0xb8] sm:$0xf]
  %v75 = vld [vmem:[%s0 + $0xbc] sm:$0xf]
  %v76 = vld [vmem:[%s0 + $0xc0] sm:$0xf]
  %v77 = vld [vmem:[%s0 + $0xc4] sm:$0xf]
  %v128 = vunpack.c.l.b16 %v28
  %v129 = vunpack.c.l.b16 %v29
  %v130 = vunpack.c.l.b16 %v30
  %v131 = vunpack.c.l.b16 %v31
  %v132 = vunpack.c.l.b16 %v32
  %v133 = vunpack.c.l.b16 %v33
  %v134 = vunpack.c.l.b16 %v34
  %v135 = vunpack.c.l.b16 %v35
  %v136 = vunpack.c.l.b16 %v36
  %v137 = vunpack.c.l.b16 %v37
  %v138 = vunpack.c.l.b16 %v38
  %v139 = vunpack.c.l.b16 %v39
  %v140 = vunpack.c.l.b16 %v40
  %v141 = vunpack.c.l.b16 %v41
  %v142 = vunpack.c.l.b16 %v42
  %v143 = vunpack.c.l.b16 %v43
  %v144 = vunpack.c.l.b16 %v44
  %v145 = vunpack.c.l.b16 %v45
  %v146 = vunpack.c.l.b16 %v46
  %v147 = vunpack.c.l.b16 %v47
  %v148 = vunpack.c.l.b16 %v48
  %v149 = vunpack.c.l.b16 %v49
  %v150 = vunpack.c.l.b16 %v50
  %v151 = vunpack.c.l.b16 %v51
  %v152 = vunpack.c.l.b16 %v52
  %v153 = vunpack.c.l.b16 %v53
  %v154 = vunpack.c.l.b16 %v54
  %v155 = vunpack.c.l.b16 %v55
  %v156 = vunpack.c.l.b16 %v56
  %v157 = vunpack.c.l.b16 %v57
  %v158 = vunpack.c.l.b16 %v58
  %v159 = vunpack.c.l.b16 %v59
  %v160 = vunpack.c.l.b16 %v60
  %v161 = vunpack.c.l.b16 %v61
  %v162 = vunpack.c.l.b16 %v62
  %v163 = vunpack.c.l.b16 %v63
  %v164 = vunpack.c.l.b16 %v64
  %v165 = vunpack.c.l.b16 %v65
  %v166 = vunpack.c.l.b16 %v66
  %v167 = vunpack.c.l.b16 %v67
  %v168 = vunpack.c.l.b16 %v68
  %v169 = vunpack.c.l.b16 %v69
  %v170 = vunpack.c.l.b16 %v70
  %v171 = vunpack.c.l.b16 %v71
  %v172 = vunpack.c.l.b16 %v72
  %v173 = vunpack.c.l.b16 %v73
  %v174 = vunpack.c.l.b16 %v74
  %v175 = vunpack.c.l.b16 %v75
  %v176 = vunpack.c.l.b16 %v76
  %v177 = vunpack.c.l.b16 %v77
  %v178 = vpack.c.b16 %v129, %v128
  %v179 = vpack.c.b16 %v131, %v130
  %v180 = vpack.c.b16 %v133, %v132
  %v181 = vpack.c.b16 %v135, %v134
  %v182 = vpack.c.b16 %v137, %v136
  %v183 = vpack.c.b16 %v139, %v138
  %v184 = vpack.c.b16 %v141, %v140
  %v185 = vpack.c.b16 %v143, %v142
  %v186 = vpack.c.b16 %v145, %v144
  %v187 = vpack.c.b16 %v147, %v146
  %v188 = vpack.c.b16 %v149, %v148
  %v189 = vpack.c.b16 %v151, %v150
  %v190 = vpack.c.b16 %v153, %v152
  %v191 = vpack.c.b16 %v155, %v154
  %v192 = vpack.c.b16 %v157, %v156
  %v193 = vpack.c.b16 %v159, %v158
  %v194 = vpack.c.b16 %v161, %v160
  %v195 = vpack.c.b16 %v163, %v162
  %v196 = vpack.c.b16 %v165, %v164
  %v197 = vpack.c.b16 %v167, %v166
  %v198 = vpack.c.b16 %v169, %v168
  %v199 = vpack.c.b16 %v171, %v170
  %v200 = vpack.c.b16 %v173, %v172
  %v201 = vpack.c.b16 %v175, %v174
  %v202 = vpack.c.b16 %v177, %v176
  %v207 = vunpack.c.l.b16 %v24
  %v208 = vunpack.c.l.b16 %v25
  %v209 = vunpack.c.l.b16 %v26
  %v210 = vunpack.c.l.b16 %v27
  %v211 = vpack.c.b16 %v208, %v207
  %v212 = vpack.c.b16 %v210, %v209
  %vm214 = vcmask 203776
  %v216 = vsel %vm214, %v178, 0
  %v219 = vsel %vm214, %v179, 0
  %v222 = vsel %vm214, %v180, 0
  %v225 = vsel %vm214, %v181, 0
  %v228 = vsel %vm214, %v182, 0
  %v231 = vsel %vm214, %v183, 0
  %v234 = vsel %vm214, %v184, 0
  %v237 = vsel %vm214, %v185, 0
  %v240 = vsel %vm214, %v186, 0
  %v243 = vsel %vm214, %v187, 0
  %v246 = vsel %vm214, %v188, 0
  %v249 = vsel %vm214, %v189, 0
  %v252 = vsel %vm214, %v190, 0
  %v255 = vsel %vm214, %v191, 0
  %v258 = vsel %vm214, %v192, 0
  %v261 = vsel %vm214, %v193, 0
  %v264 = vsel %vm214, %v194, 0
  %v267 = vsel %vm214, %v195, 0
  %v270 = vsel %vm214, %v196, 0
  %v273 = vsel %vm214, %v197, 0
  %v276 = vsel %vm214, %v198, 0
  %v279 = vsel %vm214, %v199, 0
  %v282 = vsel %vm214, %v200, 0
  %v285 = vsel %vm214, %v201, 0
  %v288 = vsel %vm214, %v202, 0
  %vm290 = vcmask 1043456
  %vm291 = vcmask 1044480
  %v292 = vsel %vm290, 4294967295, 65535
  %v293 = vsel %vm291, %v292, 0
  %v295 = vand.u32 %v212, %v293
  %297 = vmatprep.subr.bf16.mxu0 0
  %298 = vmatpush1.bf16.msra.mxu0 %v211
  %299 = vmatprep.subr.bf16.mxu0 0
  %300 = vmatpush1.bf16.msra.mxu0 %v295
  %301 = vmatprep.subr.bf16.mxu0 0
  %302 = vmatpush1.bf16.msra.mxu0 0
  %303 = vmatprep.subr.bf16.mxu0 0
  %304 = vmatpush1.bf16.msra.mxu0 0
  %305 = vmatprep.subr.bf16.mxu0 0
  %306 = vmatpush1.bf16.msra.mxu0 0
  %307 = vmatprep.subr.bf16.mxu0 0
  %308 = vmatpush1.bf16.msra.mxu0 0
  %309 = vmatprep.subr.bf16.mxu0 0
  %310 = vmatpush1.bf16.msra.mxu0 0
  %311 = vmatprep.subr.bf16.mxu0 0
  %312 = vmatpush1.bf16.msra.mxu0 0
  %313 = vmatprep.subr.bf16.mxu0 0
  %314 = vmatpush1.bf16.msra.mxu0 0
  %315 = vmatprep.subr.bf16.mxu0 0
  %316 = vmatpush1.bf16.msra.mxu0 0
  %317 = vmatprep.subr.bf16.mxu0 0
  %318 = vmatpush1.bf16.msra.mxu0 0
  %319 = vmatprep.subr.bf16.mxu0 0
  %320 = vmatpush1.bf16.msra.mxu0 0
  %321 = vmatprep.subr.bf16.mxu0 0
  %322 = vmatpush1.bf16.msra.mxu0 0
  %323 = vmatprep.subr.bf16.mxu0 0
  %324 = vmatpush1.bf16.msra.mxu0 0
  %325 = vmatprep.subr.bf16.mxu0 0
  %326 = vmatpush1.bf16.msra.mxu0 0
  %327 = vmatprep.subr.bf16.mxu0 0
  %328 = vmatpush1.bf16.msra.mxu0 0
  %329 = vmatprep.mubr.bf16.mxu0 0
  %330 = vmatmul.mubr.bf16.gmra.mrb[0].mxu0 %v216
  %v331 = vpop.f32.mrb[0].mxu0
  %v332 = vadd.f32 0.0, %v331
  %v333 = vpop.f32.mrb[0].mxu0
  %v334 = vpop.f32.mrb[0].mxu0
  %v335 = vadd.f32 0.0, %v334
  %v336 = vpop.f32.mrb[0].mxu0
  %337 = vmatprep.mubr.bf16.mxu0 0
  %338 = vmatmul.mubr.bf16.gmra.mrb[0].mxu0 %v219
  %v339 = vpop.f32.mrb[0].mxu0
  %v340 = vadd.f32 0.0, %v339
  %v341 = vpop.f32.mrb[0].mxu0
  %v342 = vpop.f32.mrb[0].mxu0
  %v343 = vadd.f32 0.0, %v342
  %v344 = vpop.f32.mrb[0].mxu0
  %345 = vmatprep.mubr.bf16.mxu0 0
  %346 = vmatmul.mubr.bf16.gmra.mrb[0].mxu0 %v222
  %v347 = vpop.f32.mrb[0].mxu0
  %v348 = vadd.f32 0.0, %v347
  %v349 = vpop.f32.mrb[0].mxu0
  %v350 = vpop.f32.mrb[0].mxu0
  %v351 = vadd.f32 0.0, %v350
  %v352 = vpop.f32.mrb[0].mxu0
  %353 = vmatprep.mubr.bf16.mxu0 0
  %354 = vmatmul.mubr.bf16.gmra.mrb[0].mxu0 %v225
  %v355 = vpop.f32.mrb[0].mxu0
  %v356 = vadd.f32 0.0, %v355
  %v357 = vpop.f32.mrb[0].mxu0
  %v358 = vpop.f32.mrb[0].mxu0
  %v359 = vadd.f32 0.0, %v358
  %v360 = vpop.f32.mrb[0].mxu0
  %361 = vmatprep.mubr.bf16.mxu0 0
  %362 = vmatmul.mubr.bf16.gmra.mrb[0].mxu0 %v228
  %v363 = vpop.f32.mrb[0].mxu0
  %v364 = vadd.f32 0.0, %v363
  %v365 = vpop.f32.mrb[0].mxu0
  %v366 = vpop.f32.mrb[0].mxu0
  %v367 = vadd.f32 0.0, %v366
  %v368 = vpop.f32.mrb[0].mxu0
  %369 = vmatprep.mubr.bf16.mxu0 0
  %370 = vmatmul.mubr.bf16.gmra.mrb[0].mxu0 %v231
  %v371 = vpop.f32.mrb[0].mxu0
  %v372 = vadd.f32 0.0, %v371
  %v373 = vpop.f32.mrb[0].mxu0
  %v374 = vpop.f32.mrb[0].mxu0
  %v375 = vadd.f32 0.0, %v374
  %v376 = vpop.f32.mrb[0].mxu0
  %377 = vmatprep.mubr.bf16.mxu0 0
  %378 = vmatmul.mubr.bf16.gmra.mrb[0].mxu0 %v234
  %v379 = vpop.f32.mrb[0].mxu0
  %v380 = vadd.f32 0.0, %v379
  %v381 = vpop.f32.mrb[0].mxu0
  %v382 = vpop.f32.mrb[0].mxu0
  %v383 = vadd.f32 0.0, %v382
  %v384 = vpop.f32.mrb[0].mxu0
  %385 = vmatprep.mubr.bf16.mxu0 0
  %386 = vmatmul.mubr.bf16.gmra.mrb[0].mxu0 %v237
  %v387 = vpop.f32.mrb[0].mxu0
  %v388 = vadd.f32 0.0, %v387
  %v389 = vpop.f32.mrb[0].mxu0
  %v390 = vpop.f32.mrb[0].mxu0
  %v391 = vadd.f32 0.0, %v390
  %v392 = vpop.f32.mrb[0].mxu0
  %393 = vmatprep.mubr.bf16.mxu0 0
  %394 = vmatmul.mubr.bf16.gmra.mrb[0].mxu0 %v240
  %v395 = vpop.f32.mrb[0].mxu0
  %v396 = vadd.f32 0.0, %v395
  %v397 = vpop.f32.mrb[0].mxu0
  %v398 = vpop.f32.mrb[0].mxu0
  %v399 = vadd.f32 0.0, %v398
  %v400 = vpop.f32.mrb[0].mxu0
  %401 = vmatprep.mubr.bf16.mxu0 0
  %402 = vmatmul.mubr.bf16.gmra.mrb[0].mxu0 %v243
  %v403 = vpop.f32.mrb[0].mxu0
  %v404 = vadd.f32 0.0, %v403
  %v405 = vpop.f32.mrb[0].mxu0
  %v406 = vpop.f32.mrb[0].mxu0
  %v407 = vadd.f32 0.0, %v406
  %v408 = vpop.f32.mrb[0].mxu0
  %409 = vmatprep.mubr.bf16.mxu0 0
  %410 = vmatmul.mubr.bf16.gmra.mrb[0].mxu0 %v246
  %v411 = vpop.f32.mrb[0].mxu0
  %v412 = vadd.f32 0.0, %v411
  %v413 = vpop.f32.mrb[0].mxu0
  %v414 = vpop.f32.mrb[0].mxu0
  %v415 = vadd.f32 0.0, %v414
  %v416 = vpop.f32.mrb[0].mxu0
  %417 = vmatprep.mubr.bf16.mxu0 0
  %418 = vmatmul.mubr.bf16.gmra.mrb[0].mxu0 %v249
  %v419 = vpop.f32.mrb[0].mxu0
  %v420 = vadd.f32 0.0, %v419
  %v421 = vpop.f32.mrb[0].mxu0
  %v422 = vpop.f32.mrb[0].mxu0
  %v423 = vadd.f32 0.0, %v422
  %v424 = vpop.f32.mrb[0].mxu0
  %425 = vmatprep.mubr.bf16.mxu0 0
  %426 = vmatmul.mubr.bf16.gmra.mrb[0].mxu0 %v252
  %v427 = vpop.f32.mrb[0].mxu0
  %v428 = vadd.f32 0.0, %v427
  %v429 = vpop.f32.mrb[0].mxu0
  %v430 = vpop.f32.mrb[0].mxu0
  %v431 = vadd.f32 0.0, %v430
  %v432 = vpop.f32.mrb[0].mxu0
  %433 = vmatprep.mubr.bf16.mxu0 0
  %434 = vmatmul.mubr.bf16.gmra.mrb[0].mxu0 %v255
  %v435 = vpop.f32.mrb[0].mxu0
  %v436 = vadd.f32 0.0, %v435
  %v437 = vpop.f32.mrb[0].mxu0
  %v438 = vpop.f32.mrb[0].mxu0
  %v439 = vadd.f32 0.0, %v438
  %v440 = vpop.f32.mrb[0].mxu0
  %441 = vmatprep.mubr.bf16.mxu0 0
  %442 = vmatmul.mubr.bf16.gmra.mrb[0].mxu0 %v258
  %v443 = vpop.f32.mrb[0].mxu0
  %v444 = vadd.f32 0.0, %v443
  %v445 = vpop.f32.mrb[0].mxu0
  %v446 = vpop.f32.mrb[0].mxu0
  %v447 = vadd.f32 0.0, %v446
  %v448 = vpop.f32.mrb[0].mxu0
  %449 = vmatprep.mubr.bf16.mxu0 0
  %450 = vmatmul.mubr.bf16.gmra.mrb[0].mxu0 %v261
  %v451 = vpop.f32.mrb[0].mxu0
  %v452 = vadd.f32 0.0, %v451
  %v453 = vpop.f32.mrb[0].mxu0
  %v454 = vpop.f32.mrb[0].mxu0
  %v455 = vadd.f32 0.0, %v454
  %v456 = vpop.f32.mrb[0].mxu0
  %457 = vmatprep.mubr.bf16.mxu0 0
  %458 = vmatmul.mubr.bf16.gmra.mrb[0].mxu0 %v264
  %v459 = vpop.f32.mrb[0].mxu0
  %v460 = vadd.f32 0.0, %v459
  %v461 = vpop.f32.mrb[0].mxu0
  %v462 = vpop.f32.mrb[0].mxu0
  %v463 = vadd.f32 0.0, %v462
  %v464 = vpop.f32.mrb[0].mxu0
  %465 = vmatprep.mubr.bf16.mxu0 0
  %466 = vmatmul.mubr.bf16.gmra.mrb[0].mxu0 %v267
  %v467 = vpop.f32.mrb[0].mxu0
  %v468 = vadd.f32 0.0, %v467
  %v469 = vpop.f32.mrb[0].mxu0
  %v470 = vpop.f32.mrb[0].mxu0
  %v471 = vadd.f32 0.0, %v470
  %v472 = vpop.f32.mrb[0].mxu0
  %473 = vmatprep.mubr.bf16.mxu0 0
  %474 = vmatmul.mubr.bf16.gmra.mrb[0].mxu0 %v270
  %v475 = vpop.f32.mrb[0].mxu0
  %v476 = vadd.f32 0.0, %v475
  %v477 = vpop.f32.mrb[0].mxu0
  %v478 = vpop.f32.mrb[0].mxu0
  %v479 = vadd.f32 0.0, %v478
  %v480 = vpop.f32.mrb[0].mxu0
  %481 = vmatprep.mubr.bf16.mxu0 0
  %482 = vmatmul.mubr.bf16.gmra.mrb[0].mxu0 %v273
  %v483 = vpop.f32.mrb[0].mxu0
  %v484 = vadd.f32 0.0, %v483
  %v485 = vpop.f32.mrb[0].mxu0
  %v486 = vpop.f32.mrb[0].mxu0
  %v487 = vadd.f32 0.0, %v486
  %v488 = vpop.f32.mrb[0].mxu0
  %489 = vmatprep.mubr.bf16.mxu0 0
  %490 = vmatmul.mubr.bf16.gmra.mrb[0].mxu0 %v276
  %v491 = vpop.f32.mrb[0].mxu0
  %v492 = vadd.f32 0.0, %v491
  %v493 = vpop.f32.mrb[0].mxu0
  %v494 = vpop.f32.mrb[0].mxu0
  %v495 = vadd.f32 0.0, %v494
  %v496 = vpop.f32.mrb[0].mxu0
  %497 = vmatprep.mubr.bf16.mxu0 0
  %498 = vmatmul.mubr.bf16.gmra.mrb[0].mxu0 %v279
  %v499 = vpop.f32.mrb[0].mxu0
  %v500 = vadd.f32 0.0, %v499
  %v501 = vpop.f32.mrb[0].mxu0
  %v502 = vpop.f32.mrb[0].mxu0
  %v503 = vadd.f32 0.0, %v502
  %v504 = vpop.f32.mrb[0].mxu0
  %505 = vmatprep.mubr.bf16.mxu0 0
  %506 = vmatmul.mubr.bf16.gmra.mrb[0].mxu0 %v282
  %v507 = vpop.f32.mrb[0].mxu0
  %v508 = vadd.f32 0.0, %v507
  %v509 = vpop.f32.mrb[0].mxu0
  %v510 = vpop.f32.mrb[0].mxu0
  %v511 = vadd.f32 0.0, %v510
  %v512 = vpop.f32.mrb[0].mxu0
  %513 = vmatprep.mubr.bf16.mxu0 0
  %514 = vmatmul.mubr.bf16.gmra.mrb[0].mxu0 %v285
  %v515 = vpop.f32.mrb[0].mxu0
  %v516 = vadd.f32 0.0, %v515
  %v517 = vpop.f32.mrb[0].mxu0
  %v518 = vpop.f32.mrb[0].mxu0
  %v519 = vadd.f32 0.0, %v518
  %v520 = vpop.f32.mrb[0].mxu0
  %521 = vmatprep.mubr.bf16.mxu0 0
  %522 = vmatmul.mubr.bf16.gmra.mrb[0].mxu0 %v288
  %v523 = vpop.f32.mrb[0].mxu0
  %v524 = vadd.f32 0.0, %v523
  %v525 = vpop.f32.mrb[0].mxu0
  %v526 = vpop.f32.mrb[0].mxu0
  %v527 = vadd.f32 0.0, %v526
  %v528 = vpop.f32.mrb[0].mxu0
  %529 = vdwg.mxu0
  %v530 = vld [vmem:[%s1] sm:$0xf]
  %v531 = vld [vmem:[%s1 + $0x4] sm:$0xf]
  %v532 = vld [vmem:[%s1 + $0x8] sm:$0xf]
  %v533 = vld [vmem:[%s1 + $0xc] sm:$0xf]
  %v534 = vld [vmem:[%s1 + $0x10] sm:$0xf]
  %v535 = vld [vmem:[%s1 + $0x14] sm:$0xf]
  %v536 = vld [vmem:[%s1 + $0x18] sm:$0xf]
  %v537 = vld [vmem:[%s1 + $0x1c] sm:$0xf]
  %v538 = vld [vmem:[%s1 + $0x20] sm:$0xf]
  %v539 = vld [vmem:[%s1 + $0x24] sm:$0xf]
  %v540 = vld [vmem:[%s1 + $0x28] sm:$0xf]
  %v541 = vld [vmem:[%s1 + $0x2c] sm:$0xf]
  %v542 = vld [vmem:[%s1 + $0x30] sm:$0xf]
  %v543 = vld [vmem:[%s1 + $0x34] sm:$0xf]
  %v544 = vld [vmem:[%s1 + $0x38] sm:$0xf]
  %v545 = vld [vmem:[%s1 + $0x3c] sm:$0xf]
  %v546 = vld [vmem:[%s1 + $0x40] sm:$0xf]
  %v547 = vld [vmem:[%s1 + $0x44] sm:$0xf]
  %v548 = vld [vmem:[%s1 + $0x48] sm:$0xf]
  %v549 = vld [vmem:[%s1 + $0x4c] sm:$0xf]
  %v550 = vld [vmem:[%s1 + $0x50] sm:$0xf]
  %v551 = vld [vmem:[%s1 + $0x54] sm:$0xf]
  %v552 = vld [vmem:[%s1 + $0x58] sm:$0xf]
  %v553 = vld [vmem:[%s1 + $0x5c] sm:$0xf]
  %v554 = vld [vmem:[%s1 + $0x60] sm:$0xf]
  %v555 = vld [vmem:[%s1 + $0x64] sm:$0xf]
  %v556 = vld [vmem:[%s1 + $0x68] sm:$0xf]
  %v557 = vld [vmem:[%s1 + $0x6c] sm:$0xf]
  %v558 = vld [vmem:[%s1 + $0x70] sm:$0xf]
  %v559 = vld [vmem:[%s1 + $0x74] sm:$0xf]
  %v560 = vld [vmem:[%s1 + $0x78] sm:$0xf]
  %v561 = vld [vmem:[%s1 + $0x7c] sm:$0xf]
  %v562 = vld [vmem:[%s1 + $0x80] sm:$0xf]
  %v563 = vld [vmem:[%s1 + $0x84] sm:$0xf]
  %v564 = vld [vmem:[%s1 + $0x88] sm:$0xf]
  %v565 = vld [vmem:[%s1 + $0x8c] sm:$0xf]
  %v566 = vld [vmem:[%s1 + $0x90] sm:$0xf]
  %v567 = vld [vmem:[%s1 + $0x94] sm:$0xf]
  %v568 = vld [vmem:[%s1 + $0x98] sm:$0xf]
  %v569 = vld [vmem:[%s1 + $0x9c] sm:$0xf]
  %v570 = vld [vmem:[%s1 + $0xa0] sm:$0xf]
  %v571 = vld [vmem:[%s1 + $0xa4] sm:$0xf]
  %v572 = vld [vmem:[%s1 + $0xa8] sm:$0xf]
  %v573 = vld [vmem:[%s1 + $0xac] sm:$0xf]
  %v574 = vld [vmem:[%s1 + $0xb0] sm:$0xf]
  %v575 = vld [vmem:[%s1 + $0xb4] sm:$0xf]
  %v576 = vld [vmem:[%s1 + $0xb8] sm:$0xf]
  %v577 = vld [vmem:[%s1 + $0xbc] sm:$0xf]
  %v578 = vld [vmem:[%s1 + $0xc0] sm:$0xf]
  %v579 = vld [vmem:[%s1 + $0xc4] sm:$0xf]
  %v630 = vunpack.c.l.b16 %v530
  %v631 = vunpack.c.l.b16 %v531
  %v632 = vunpack.c.l.b16 %v532
  %v633 = vunpack.c.l.b16 %v533
  %v634 = vunpack.c.l.b16 %v534
  %v635 = vunpack.c.l.b16 %v535
  %v636 = vunpack.c.l.b16 %v536
  %v637 = vunpack.c.l.b16 %v537
  %v638 = vunpack.c.l.b16 %v538
  %v639 = vunpack.c.l.b16 %v539
  %v640 = vunpack.c.l.b16 %v540
  %v641 = vunpack.c.l.b16 %v541
  %v642 = vunpack.c.l.b16 %v542
  %v643 = vunpack.c.l.b16 %v543
  %v644 = vunpack.c.l.b16 %v544
  %v645 = vunpack.c.l.b16 %v545
  %v646 = vunpack.c.l.b16 %v546
  %v647 = vunpack.c.l.b16 %v547
  %v648 = vunpack.c.l.b16 %v548
  %v649 = vunpack.c.l.b16 %v549
  %v650 = vunpack.c.l.b16 %v550
  %v651 = vunpack.c.l.b16 %v551
  %v652 = vunpack.c.l.b16 %v552
  %v653 = vunpack.c.l.b16 %v553
  %v654 = vunpack.c.l.b16 %v554
  %v655 = vunpack.c.l.b16 %v555
  %v656 = vunpack.c.l.b16 %v556
  %v657 = vunpack.c.l.b16 %v557
  %v658 = vunpack.c.l.b16 %v558
  %v659 = vunpack.c.l.b16 %v559
  %v660 = vunpack.c.l.b16 %v560
  %v661 = vunpack.c.l.b16 %v561
  %v662 = vunpack.c.l.b16 %v562
  %v663 = vunpack.c.l.b16 %v563
  %v664 = vunpack.c.l.b16 %v564
  %v665 = vunpack.c.l.b16 %v565
  %v666 = vunpack.c.l.b16 %v566
  %v667 = vunpack.c.l.b16 %v567
  %v668 = vunpack.c.l.b16 %v568
  %v669 = vunpack.c.l.b16 %v569
  %v670 = vunpack.c.l.b16 %v570
  %v671 = vunpack.c.l.b16 %v571
  %v672 = vunpack.c.l.b16 %v572
  %v673 = vunpack.c.l.b16 %v573
  %v674 = vunpack.c.l.b16 %v574
  %v675 = vunpack.c.l.b16 %v575
  %v676 = vunpack.c.l.b16 %v576
  %v677 = vunpack.c.l.b16 %v577
  %v678 = vunpack.c.l.b16 %v578
  %v679 = vunpack.c.l.b16 %v579
  %v680 = vpack.c.b16 %v631, %v630
  %v681 = vpack.c.b16 %v633, %v632
  %v682 = vpack.c.b16 %v635, %v634
  %v683 = vpack.c.b16 %v637, %v636
  %v684 = vpack.c.b16 %v639, %v638
  %v685 = vpack.c.b16 %v641, %v640
  %v686 = vpack.c.b16 %v643, %v642
  %v687 = vpack.c.b16 %v645, %v644
  %v688 = vpack.c.b16 %v647, %v646
  %v689 = vpack.c.b16 %v649, %v648
  %v690 = vpack.c.b16 %v651, %v650
  %v691 = vpack.c.b16 %v653, %v652
  %v692 = vpack.c.b16 %v655, %v654
  %v693 = vpack.c.b16 %v657, %v656
  %v694 = vpack.c.b16 %v659, %v658
  %v695 = vpack.c.b16 %v661, %v660
  %v696 = vpack.c.b16 %v663, %v662
  %v697 = vpack.c.b16 %v665, %v664
  %v698 = vpack.c.b16 %v667, %v666
  %v699 = vpack.c.b16 %v669, %v668
  %v700 = vpack.c.b16 %v671, %v670
  %v701 = vpack.c.b16 %v673, %v672
  %v702 = vpack.c.b16 %v675, %v674
  %v703 = vpack.c.b16 %v677, %v676
  %v704 = vpack.c.b16 %v679, %v678
  %v706 = vsel %vm214, %v680, 0
  %v709 = vsel %vm214, %v681, 0
  %v712 = vsel %vm214, %v682, 0
  %v715 = vsel %vm214, %v683, 0
  %v718 = vsel %vm214, %v684, 0
  %v721 = vsel %vm214, %v685, 0
  %v724 = vsel %vm214, %v686, 0
  %v727 = vsel %vm214, %v687, 0
  %v730 = vsel %vm214, %v688, 0
  %v733 = vsel %vm214, %v689, 0
  %v736 = vsel %vm214, %v690, 0
  %v739 = vsel %vm214, %v691, 0
  %v742 = vsel %vm214, %v692, 0
  %v745 = vsel %vm214, %v693, 0
  %v748 = vsel %vm214, %v694, 0
  %v751 = vsel %vm214, %v695, 0
  %v754 = vsel %vm214, %v696, 0
  %v757 = vsel %vm214, %v697, 0
  %v760 = vsel %vm214, %v698, 0
  %v763 = vsel %vm214, %v699, 0
  %v766 = vsel %vm214, %v700, 0
  %v769 = vsel %vm214, %v701, 0
  %v772 = vsel %vm214, %v702, 0
  %v775 = vsel %vm214, %v703, 0
  %v778 = vsel %vm214, %v704, 0
  %780 = vmatprep.subr.bf16.mxu0 0
  %781 = vmatpush1.bf16.msra.mxu0 %v211
  %782 = vmatprep.subr.bf16.mxu0 0
  %783 = vmatpush1.bf16.msra.mxu0 %v295
  %784 = vmatprep.subr.bf16.mxu0 0
  %785 = vmatpush1.bf16.msra.mxu0 0
  %786 = vmatprep.subr.bf16.mxu0 0
  %787 = vmatpush1.bf16.msra.mxu0 0
  %788 = vmatprep.subr.bf16.mxu0 0
  %789 = vmatpush1.bf16.msra.mxu0 0
  %790 = vmatprep.subr.bf16.mxu0 0
  %791 = vmatpush1.bf16.msra.mxu0 0
  %792 = vmatprep.subr.bf16.mxu0 0
  %793 = vmatpush1.bf16.msra.mxu0 0
  %794 = vmatprep.subr.bf16.mxu0 0
  %795 = vmatpush1.bf16.msra.mxu0 0
  %796 = vmatprep.subr.bf16.mxu0 0
  %797 = vmatpush1.bf16.msra.mxu0 0
  %798 = vmatprep.subr.bf16.mxu0 0
  %799 = vmatpush1.bf16.msra.mxu0 0
  %800 = vmatprep.subr.bf16.mxu0 0
  %801 = vmatpush1.bf16.msra.mxu0 0
  %802 = vmatprep.subr.bf16.mxu0 0
  %803 = vmatpush1.bf16.msra.mxu0 0
  %804 = vmatprep.subr.bf16.mxu0 0
  %805 = vmatpush1.bf16.msra.mxu0 0
  %806 = vmatprep.subr.bf16.mxu0 0
  %807 = vmatpush1.bf16.msra.mxu0 0
  %808 = vmatprep.subr.bf16.mxu0 0
  %809 = vmatpush1.bf16.msra.mxu0 0
  %810 = vmatprep.subr.bf16.mxu0 0
  %811 = vmatpush1.bf16.msra.mxu0 0
  %812 = vmatprep.mubr.bf16.mxu0 0
  %813 = vmatmul.mubr.bf16.gmra.mrb[0].mxu0 %v706
  %v814 = vpop.f32.mrb[0].mxu0
  %v815 = vadd.f32 0.0, %v814
  %v816 = vpop.f32.mrb[0].mxu0
  %v817 = vpop.f32.mrb[0].mxu0
  %v818 = vadd.f32 0.0, %v817
  %v819 = vpop.f32.mrb[0].mxu0
  %820 = vmatprep.mubr.bf16.mxu0 0
  %821 = vmatmul.mubr.bf16.gmra.mrb[0].mxu0 %v709
  %v822 = vpop.f32.mrb[0].mxu0
  %v823 = vadd.f32 0.0, %v822
  %v824 = vpop.f32.mrb[0].mxu0
  %v825 = vpop.f32.mrb[0].mxu0
  %v826 = vadd.f32 0.0, %v825
  %v827 = vpop.f32.mrb[0].mxu0
  %828 = vmatprep.mubr.bf16.mxu0 0
  %829 = vmatmul.mubr.bf16.gmra.mrb[0].mxu0 %v712
  %v830 = vpop.f32.mrb[0].mxu0
  %v831 = vadd.f32 0.0, %v830
  %v832 = vpop.f32.mrb[0].mxu0
  %v833 = vpop.f32.mrb[0].mxu0
  %v834 = vadd.f32 0.0, %v833
  %v835 = vpop.f32.mrb[0].mxu0
  %836 = vmatprep.mubr.bf16.mxu0 0
  %837 = vmatmul.mubr.bf16.gmra.mrb[0].mxu0 %v715
  %v838 = vpop.f32.mrb[0].mxu0
  %v839 = vadd.f32 0.0, %v838
  %v840 = vpop.f32.mrb[0].mxu0
  %v841 = vpop.f32.mrb[0].mxu0
  %v842 = vadd.f32 0.0, %v841
  %v843 = vpop.f32.mrb[0].mxu0
  %844 = vmatprep.mubr.bf16.mxu0 0
  %845 = vmatmul.mubr.bf16.gmra.mrb[0].mxu0 %v718
  %v846 = vpop.f32.mrb[0].mxu0
  %v847 = vadd.f32 0.0, %v846
  %v848 = vpop.f32.mrb[0].mxu0
  %v849 = vpop.f32.mrb[0].mxu0
  %v850 = vadd.f32 0.0, %v849
  %v851 = vpop.f32.mrb[0].mxu0
  %852 = vmatprep.mubr.bf16.mxu0 0
  %853 = vmatmul.mubr.bf16.gmra.mrb[0].mxu0 %v721
  %v854 = vpop.f32.mrb[0].mxu0
  %v855 = vadd.f32 0.0, %v854
  %v856 = vpop.f32.mrb[0].mxu0
  %v857 = vpop.f32.mrb[0].mxu0
  %v858 = vadd.f32 0.0, %v857
  %v859 = vpop.f32.mrb[0].mxu0
  %860 = vmatprep.mubr.bf16.mxu0 0
  %861 = vmatmul.mubr.bf16.gmra.mrb[0].mxu0 %v724
  %v862 = vpop.f32.mrb[0].mxu0
  %v863 = vadd.f32 0.0, %v862
  %v864 = vpop.f32.mrb[0].mxu0
  %v865 = vpop.f32.mrb[0].mxu0
  %v866 = vadd.f32 0.0, %v865
  %v867 = vpop.f32.mrb[0].mxu0
  %868 = vmatprep.mubr.bf16.mxu0 0
  %869 = vmatmul.mubr.bf16.gmra.mrb[0].mxu0 %v727
  %v870 = vpop.f32.mrb[0].mxu0
  %v871 = vadd.f32 0.0, %v870
  %v872 = vpop.f32.mrb[0].mxu0
  %v873 = vpop.f32.mrb[0].mxu0
  %v874 = vadd.f32 0.0, %v873
  %v875 = vpop.f32.mrb[0].mxu0
  %876 = vmatprep.mubr.bf16.mxu0 0
  %877 = vmatmul.mubr.bf16.gmra.mrb[0].mxu0 %v730
  %v878 = vpop.f32.mrb[0].mxu0
  %v879 = vadd.f32 0.0, %v878
  %v880 = vpop.f32.mrb[0].mxu0
  %v881 = vpop.f32.mrb[0].mxu0
  %v882 = vadd.f32 0.0, %v881
  %v883 = vpop.f32.mrb[0].mxu0
  %884 = vmatprep.mubr.bf16.mxu0 0
  %885 = vmatmul.mubr.bf16.gmra.mrb[0].mxu0 %v733
  %v886 = vpop.f32.mrb[0].mxu0
  %v887 = vadd.f32 0.0, %v886
  %v888 = vpop.f32.mrb[0].mxu0
  %v889 = vpop.f32.mrb[0].mxu0
  %v890 = vadd.f32 0.0, %v889
  %v891 = vpop.f32.mrb[0].mxu0
  %892 = vmatprep.mubr.bf16.mxu0 0
  %893 = vmatmul.mubr.bf16.gmra.mrb[0].mxu0 %v736
  %v894 = vpop.f32.mrb[0].mxu0
  %v895 = vadd.f32 0.0, %v894
  %v896 = vpop.f32.mrb[0].mxu0
  %v897 = vpop.f32.mrb[0].mxu0
  %v898 = vadd.f32 0.0, %v897
  %v899 = vpop.f32.mrb[0].mxu0
  %900 = vmatprep.mubr.bf16.mxu0 0
  %901 = vmatmul.mubr.bf16.gmra.mrb[0].mxu0 %v739
  %v902 = vpop.f32.mrb[0].mxu0
  %v903 = vadd.f32 0.0, %v902
  %v904 = vpop.f32.mrb[0].mxu0
  %v905 = vpop.f32.mrb[0].mxu0
  %v906 = vadd.f32 0.0, %v905
  %v907 = vpop.f32.mrb[0].mxu0
  %908 = vmatprep.mubr.bf16.mxu0 0
  %909 = vmatmul.mubr.bf16.gmra.mrb[0].mxu0 %v742
  %v910 = vpop.f32.mrb[0].mxu0
  %v911 = vadd.f32 0.0, %v910
  %v912 = vpop.f32.mrb[0].mxu0
  %v913 = vpop.f32.mrb[0].mxu0
  %v914 = vadd.f32 0.0, %v913
  %v915 = vpop.f32.mrb[0].mxu0
  %916 = vmatprep.mubr.bf16.mxu0 0
  %917 = vmatmul.mubr.bf16.gmra.mrb[0].mxu0 %v745
  %v918 = vpop.f32.mrb[0].mxu0
  %v919 = vadd.f32 0.0, %v918
  %v920 = vpop.f32.mrb[0].mxu0
  %v921 = vpop.f32.mrb[0].mxu0
  %v922 = vadd.f32 0.0, %v921
  %v923 = vpop.f32.mrb[0].mxu0
  %924 = vmatprep.mubr.bf16.mxu0 0
  %925 = vmatmul.mubr.bf16.gmra.mrb[0].mxu0 %v748
  %v926 = vpop.f32.mrb[0].mxu0
  %v927 = vadd.f32 0.0, %v926
  %v928 = vpop.f32.mrb[0].mxu0
  %v929 = vpop.f32.mrb[0].mxu0
  %v930 = vadd.f32 0.0, %v929
  %v931 = vpop.f32.mrb[0].mxu0
  %932 = vmatprep.mubr.bf16.mxu0 0
  %933 = vmatmul.mubr.bf16.gmra.mrb[0].mxu0 %v751
  %v934 = vpop.f32.mrb[0].mxu0
  %v935 = vadd.f32 0.0, %v934
  %v936 = vpop.f32.mrb[0].mxu0
  %v937 = vpop.f32.mrb[0].mxu0
  %v938 = vadd.f32 0.0, %v937
  %v939 = vpop.f32.mrb[0].mxu0
  %940 = vmatprep.mubr.bf16.mxu0 0
  %941 = vmatmul.mubr.bf16.gmra.mrb[0].mxu0 %v754
  %v942 = vpop.f32.mrb[0].mxu0
  %v943 = vadd.f32 0.0, %v942
  %v944 = vpop.f32.mrb[0].mxu0
  %v945 = vpop.f32.mrb[0].mxu0
  %v946 = vadd.f32 0.0, %v945
  %v947 = vpop.f32.mrb[0].mxu0
  %948 = vmatprep.mubr.bf16.mxu0 0
  %949 = vmatmul.mubr.bf16.gmra.mrb[0].mxu0 %v757
  %v950 = vpop.f32.mrb[0].mxu0
  %v951 = vadd.f32 0.0, %v950
  %v952 = vpop.f32.mrb[0].mxu0
  %v953 = vpop.f32.mrb[0].mxu0
  %v954 = vadd.f32 0.0, %v953
  %v955 = vpop.f32.mrb[0].mxu0
  %956 = vmatprep.mubr.bf16.mxu0 0
  %957 = vmatmul.mubr.bf16.gmra.mrb[0].mxu0 %v760
  %v958 = vpop.f32.mrb[0].mxu0
  %v959 = vadd.f32 0.0, %v958
  %v960 = vpop.f32.mrb[0].mxu0
  %v961 = vpop.f32.mrb[0].mxu0
  %v962 = vadd.f32 0.0, %v961
  %v963 = vpop.f32.mrb[0].mxu0
  %964 = vmatprep.mubr.bf16.mxu0 0
  %965 = vmatmul.mubr.bf16.gmra.mrb[0].mxu0 %v763
  %v966 = vpop.f32.mrb[0].mxu0
  %v967 = vadd.f32 0.0, %v966
  %v968 = vpop.f32.mrb[0].mxu0
  %v969 = vpop.f32.mrb[0].mxu0
  %v970 = vadd.f32 0.0, %v969
  %v971 = vpop.f32.mrb[0].mxu0
  %972 = vmatprep.mubr.bf16.mxu0 0
  %973 = vmatmul.mubr.bf16.gmra.mrb[0].mxu0 %v766
  %v974 = vpop.f32.mrb[0].mxu0
  %v975 = vadd.f32 0.0, %v974
  %v976 = vpop.f32.mrb[0].mxu0
  %v977 = vpop.f32.mrb[0].mxu0
  %v978 = vadd.f32 0.0, %v977
  %v979 = vpop.f32.mrb[0].mxu0
  %980 = vmatprep.mubr.bf16.mxu0 0
  %981 = vmatmul.mubr.bf16.gmra.mrb[0].mxu0 %v769
  %v982 = vpop.f32.mrb[0].mxu0
  %v983 = vadd.f32 0.0, %v982
  %v984 = vpop.f32.mrb[0].mxu0
  %v985 = vpop.f32.mrb[0].mxu0
  %v986 = vadd.f32 0.0, %v985
  %v987 = vpop.f32.mrb[0].mxu0
  %988 = vmatprep.mubr.bf16.mxu0 0
  %989 = vmatmul.mubr.bf16.gmra.mrb[0].mxu0 %v772
  %v990 = vpop.f32.mrb[0].mxu0
  %v991 = vadd.f32 0.0, %v990
  %v992 = vpop.f32.mrb[0].mxu0
  %v993 = vpop.f32.mrb[0].mxu0
  %v994 = vadd.f32 0.0, %v993
  %v995 = vpop.f32.mrb[0].mxu0
  %996 = vmatprep.mubr.bf16.mxu0 0
  %997 = vmatmul.mubr.bf16.gmra.mrb[0].mxu0 %v775
  %v998 = vpop.f32.mrb[0].mxu0
  %v999 = vadd.f32 0.0, %v998
  %v1000 = vpop.f32.mrb[0].mxu0
  %v1001 = vpop.f32.mrb[0].mxu0
  %v1002 = vadd.f32 0.0, %v1001
  %v1003 = vpop.f32.mrb[0].mxu0
  %1004 = vmatprep.mubr.bf16.mxu0 0
  %1005 = vmatmul.mubr.bf16.gmra.mrb[0].mxu0 %v778
  %v1006 = vpop.f32.mrb[0].mxu0
  %v1007 = vadd.f32 0.0, %v1006
  %v1008 = vpop.f32.mrb[0].mxu0
  %v1009 = vpop.f32.mrb[0].mxu0
  %v1010 = vadd.f32 0.0, %v1009
  %v1011 = vpop.f32.mrb[0].mxu0
  %1012 = vdwg.mxu0
  %v1013 = vld [vmem:[%s2] sm:$0xf]
  %v1014 = vld [vmem:[%s2 + $0x4] sm:$0xf]
  %v1015 = vld [vmem:[%s2 + $0x8] sm:$0xf]
  %v1016 = vld [vmem:[%s2 + $0xc] sm:$0xf]
  %v1017 = vld [vmem:[%s2 + $0x10] sm:$0xf]
  %v1018 = vld [vmem:[%s2 + $0x14] sm:$0xf]
  %v1019 = vld [vmem:[%s2 + $0x18] sm:$0xf]
  %v1020 = vld [vmem:[%s2 + $0x1c] sm:$0xf]
  %v1021 = vld [vmem:[%s2 + $0x20] sm:$0xf]
  %v1022 = vld [vmem:[%s2 + $0x24] sm:$0xf]
  %v1023 = vld [vmem:[%s2 + $0x28] sm:$0xf]
  %v1024 = vld [vmem:[%s2 + $0x2c] sm:$0xf]
  %v1025 = vld [vmem:[%s2 + $0x30] sm:$0xf]
  %v1026 = vld [vmem:[%s2 + $0x34] sm:$0xf]
  %v1027 = vld [vmem:[%s2 + $0x38] sm:$0xf]
  %v1028 = vld [vmem:[%s2 + $0x3c] sm:$0xf]
  %v1029 = vld [vmem:[%s2 + $0x40] sm:$0xf]
  %v1030 = vld [vmem:[%s2 + $0x44] sm:$0xf]
  %v1031 = vld [vmem:[%s2 + $0x48] sm:$0xf]
  %v1032 = vld [vmem:[%s2 + $0x4c] sm:$0xf]
  %v1033 = vld [vmem:[%s2 + $0x50] sm:$0xf]
  %v1034 = vld [vmem:[%s2 + $0x54] sm:$0xf]
  %v1035 = vld [vmem:[%s2 + $0x58] sm:$0xf]
  %v1036 = vld [vmem:[%s2 + $0x5c] sm:$0xf]
  %v1037 = vld [vmem:[%s2 + $0x60] sm:$0xf]
  %v1038 = vld [vmem:[%s2 + $0x64] sm:$0xf]
  %v1039 = vld [vmem:[%s2 + $0x68] sm:$0xf]
  %v1040 = vld [vmem:[%s2 + $0x6c] sm:$0xf]
  %v1041 = vld [vmem:[%s2 + $0x70] sm:$0xf]
  %v1042 = vld [vmem:[%s2 + $0x74] sm:$0xf]
  %v1043 = vld [vmem:[%s2 + $0x78] sm:$0xf]
  %v1044 = vld [vmem:[%s2 + $0x7c] sm:$0xf]
  %v1045 = vld [vmem:[%s2 + $0x80] sm:$0xf]
  %v1046 = vld [vmem:[%s2 + $0x84] sm:$0xf]
  %v1047 = vld [vmem:[%s2 + $0x88] sm:$0xf]
  %v1048 = vld [vmem:[%s2 + $0x8c] sm:$0xf]
  %v1049 = vld [vmem:[%s2 + $0x90] sm:$0xf]
  %v1050 = vld [vmem:[%s2 + $0x94] sm:$0xf]
  %v1051 = vld [vmem:[%s2 + $0x98] sm:$0xf]
  %v1052 = vld [vmem:[%s2 + $0x9c] sm:$0xf]
  %v1053 = vld [vmem:[%s2 + $0xa0] sm:$0xf]
  %v1054 = vld [vmem:[%s2 + $0xa4] sm:$0xf]
  %v1055 = vld [vmem:[%s2 + $0xa8] sm:$0xf]
  %v1056 = vld [vmem:[%s2 + $0xac] sm:$0xf]
  %v1057 = vld [vmem:[%s2 + $0xb0] sm:$0xf]
  %v1058 = vld [vmem:[%s2 + $0xb4] sm:$0xf]
  %v1059 = vld [vmem:[%s2 + $0xb8] sm:$0xf]
  %v1060 = vld [vmem:[%s2 + $0xbc] sm:$0xf]
  %v1061 = vld [vmem:[%s2 + $0xc0] sm:$0xf]
  %v1062 = vld [vmem:[%s2 + $0xc4] sm:$0xf]
  %v1113 = vunpack.c.l.b16 %v1013
  %v1114 = vunpack.c.l.b16 %v1014
  %v1115 = vunpack.c.l.b16 %v1015
  %v1116 = vunpack.c.l.b16 %v1016
  %v1117 = vunpack.c.l.b16 %v1017
  %v1118 = vunpack.c.l.b16 %v1018
  %v1119 = vunpack.c.l.b16 %v1019
  %v1120 = vunpack.c.l.b16 %v1020
  %v1121 = vunpack.c.l.b16 %v1021
  %v1122 = vunpack.c.l.b16 %v1022
  %v1123 = vunpack.c.l.b16 %v1023
  %v1124 = vunpack.c.l.b16 %v1024
  %v1125 = vunpack.c.l.b16 %v1025
  %v1126 = vunpack.c.l.b16 %v1026
  %v1127 = vunpack.c.l.b16 %v1027
  %v1128 = vunpack.c.l.b16 %v1028
  %v1129 = vunpack.c.l.b16 %v1029
  %v1130 = vunpack.c.l.b16 %v1030
  %v1131 = vunpack.c.l.b16 %v1031
  %v1132 = vunpack.c.l.b16 %v1032
  %v1133 = vunpack.c.l.b16 %v1033
  %v1134 = vunpack.c.l.b16 %v1034
  %v1135 = vunpack.c.l.b16 %v1035
  %v1136 = vunpack.c.l.b16 %v1036
  %v1137 = vunpack.c.l.b16 %v1037
  %v1138 = vunpack.c.l.b16 %v1038
  %v1139 = vunpack.c.l.b16 %v1039
  %v1140 = vunpack.c.l.b16 %v1040
  %v1141 = vunpack.c.l.b16 %v1041
  %v1142 = vunpack.c.l.b16 %v1042
  %v1143 = vunpack.c.l.b16 %v1043
  %v1144 = vunpack.c.l.b16 %v1044
  %v1145 = vunpack.c.l.b16 %v1045
  %v1146 = vunpack.c.l.b16 %v1046
  %v1147 = vunpack.c.l.b16 %v1047
  %v1148 = vunpack.c.l.b16 %v1048
  %v1149 = vunpack.c.l.b16 %v1049
  %v1150 = vunpack.c.l.b16 %v1050
  %v1151 = vunpack.c.l.b16 %v1051
  %v1152 = vunpack.c.l.b16 %v1052
  %v1153 = vunpack.c.l.b16 %v1053
  %v1154 = vunpack.c.l.b16 %v1054
  %v1155 = vunpack.c.l.b16 %v1055
  %v1156 = vunpack.c.l.b16 %v1056
  %v1157 = vunpack.c.l.b16 %v1057
  %v1158 = vunpack.c.l.b16 %v1058
  %v1159 = vunpack.c.l.b16 %v1059
  %v1160 = vunpack.c.l.b16 %v1060
  %v1161 = vunpack.c.l.b16 %v1061
  %v1162 = vunpack.c.l.b16 %v1062
  %v1163 = vpack.c.b16 %v1114, %v1113
  %v1164 = vpack.c.b16 %v1116, %v1115
  %v1165 = vpack.c.b16 %v1118, %v1117
  %v1166 = vpack.c.b16 %v1120, %v1119
  %v1167 = vpack.c.b16 %v1122, %v1121
  %v1168 = vpack.c.b16 %v1124, %v1123
  %v1169 = vpack.c.b16 %v1126, %v1125
  %v1170 = vpack.c.b16 %v1128, %v1127
  %v1171 = vpack.c.b16 %v1130, %v1129
  %v1172 = vpack.c.b16 %v1132, %v1131
  %v1173 = vpack.c.b16 %v1134, %v1133
  %v1174 = vpack.c.b16 %v1136, %v1135
  %v1175 = vpack.c.b16 %v1138, %v1137
  %v1176 = vpack.c.b16 %v1140, %v1139
  %v1177 = vpack.c.b16 %v1142, %v1141
  %v1178 = vpack.c.b16 %v1144, %v1143
  %v1179 = vpack.c.b16 %v1146, %v1145
  %v1180 = vpack.c.b16 %v1148, %v1147
  %v1181 = vpack.c.b16 %v1150, %v1149
  %v1182 = vpack.c.b16 %v1152, %v1151
  %v1183 = vpack.c.b16 %v1154, %v1153
  %v1184 = vpack.c.b16 %v1156, %v1155
  %v1185 = vpack.c.b16 %v1158, %v1157
  %v1186 = vpack.c.b16 %v1160, %v1159
  %v1187 = vpack.c.b16 %v1162, %v1161
  %v1189 = vsel %vm214, %v1163, 0
  %v1192 = vsel %vm214, %v1164, 0
  %v1195 = vsel %vm214, %v1165, 0
  %v1198 = vsel %vm214, %v1166, 0
  %v1201 = vsel %vm214, %v1167, 0
  %v1204 = vsel %vm214, %v1168, 0
  %v1207 = vsel %vm214, %v1169, 0
  %v1210 = vsel %vm214, %v1170, 0
  %v1213 = vsel %vm214, %v1171, 0
  %v1216 = vsel %vm214, %v1172, 0
  %v1219 = vsel %vm214, %v1173, 0
  %v1222 = vsel %vm214, %v1174, 0
  %v1225 = vsel %vm214, %v1175, 0
  %v1228 = vsel %vm214, %v1176, 0
  %v1231 = vsel %vm214, %v1177, 0
  %v1234 = vsel %vm214, %v1178, 0
  %v1237 = vsel %vm214, %v1179, 0
  %v1240 = vsel %vm214, %v1180, 0
  %v1243 = vsel %vm214, %v1181, 0
  %v1246 = vsel %vm214, %v1182, 0
  %v1249 = vsel %vm214, %v1183, 0
  %v1252 = vsel %vm214, %v1184, 0
  %v1255 = vsel %vm214, %v1185, 0
  %v1258 = vsel %vm214, %v1186, 0
  %v1261 = vsel %vm214, %v1187, 0
  %1263 = vmatprep.subr.bf16.mxu0 0
  %1264 = vmatpush1.bf16.msra.mxu0 %v211
  %1265 = vmatprep.subr.bf16.mxu0 0
  %1266 = vmatpush1.bf16.msra.mxu0 %v295
  %1267 = vmatprep.subr.bf16.mxu0 0
  %1268 = vmatpush1.bf16.msra.mxu0 0
  %1269 = vmatprep.subr.bf16.mxu0 0
  %1270 = vmatpush1.bf16.msra.mxu0 0
  %1271 = vmatprep.subr.bf16.mxu0 0
  %1272 = vmatpush1.bf16.msra.mxu0 0
  %1273 = vmatprep.subr.bf16.mxu0 0
  %1274 = vmatpush1.bf16.msra.mxu0 0
  %1275 = vmatprep.subr.bf16.mxu0 0
  %1276 = vmatpush1.bf16.msra.mxu0 0
  %1277 = vmatprep.subr.bf16.mxu0 0
  %1278 = vmatpush1.bf16.msra.mxu0 0
  %1279 = vmatprep.subr.bf16.mxu0 0
  %1280 = vmatpush1.bf16.msra.mxu0 0
  %1281 = vmatprep.subr.bf16.mxu0 0
  %1282 = vmatpush1.bf16.msra.mxu0 0
  %1283 = vmatprep.subr.bf16.mxu0 0
  %1284 = vmatpush1.bf16.msra.mxu0 0
  %1285 = vmatprep.subr.bf16.mxu0 0
  %1286 = vmatpush1.bf16.msra.mxu0 0
  %1287 = vmatprep.subr.bf16.mxu0 0
  %1288 = vmatpush1.bf16.msra.mxu0 0
  %1289 = vmatprep.subr.bf16.mxu0 0
  %1290 = vmatpush1.bf16.msra.mxu0 0
  %1291 = vmatprep.subr.bf16.mxu0 0
  %1292 = vmatpush1.bf16.msra.mxu0 0
  %1293 = vmatprep.subr.bf16.mxu0 0
  %1294 = vmatpush1.bf16.msra.mxu0 0
  %1295 = vmatprep.mubr.bf16.mxu0 0
  %1296 = vmatmul.mubr.bf16.gmra.mrb[0].mxu0 %v1189
  %v1297 = vpop.f32.mrb[0].mxu0
  %v1298 = vadd.f32 0.0, %v1297
  %v1299 = vpop.f32.mrb[0].mxu0
  %v1300 = vpop.f32.mrb[0].mxu0
  %v1301 = vadd.f32 0.0, %v1300
  %v1302 = vpop.f32.mrb[0].mxu0
  %1303 = vmatprep.mubr.bf16.mxu0 0
  %1304 = vmatmul.mubr.bf16.gmra.mrb[0].mxu0 %v1192
  %v1305 = vpop.f32.mrb[0].mxu0
  %v1306 = vadd.f32 0.0, %v1305
  %v1307 = vpop.f32.mrb[0].mxu0
  %v1308 = vpop.f32.mrb[0].mxu0
  %v1309 = vadd.f32 0.0, %v1308
  %v1310 = vpop.f32.mrb[0].mxu0
  %1311 = vmatprep.mubr.bf16.mxu0 0
  %1312 = vmatmul.mubr.bf16.gmra.mrb[0].mxu0 %v1195
  %v1313 = vpop.f32.mrb[0].mxu0
  %v1314 = vadd.f32 0.0, %v1313
  %v1315 = vpop.f32.mrb[0].mxu0
  %v1316 = vpop.f32.mrb[0].mxu0
  %v1317 = vadd.f32 0.0, %v1316
  %v1318 = vpop.f32.mrb[0].mxu0
  %1319 = vmatprep.mubr.bf16.mxu0 0
  %1320 = vmatmul.mubr.bf16.gmra.mrb[0].mxu0 %v1198
  %v1321 = vpop.f32.mrb[0].mxu0
  %v1322 = vadd.f32 0.0, %v1321
  %v1323 = vpop.f32.mrb[0].mxu0
  %v1324 = vpop.f32.mrb[0].mxu0
  %v1325 = vadd.f32 0.0, %v1324
  %v1326 = vpop.f32.mrb[0].mxu0
  %1327 = vmatprep.mubr.bf16.mxu0 0
  %1328 = vmatmul.mubr.bf16.gmra.mrb[0].mxu0 %v1201
  %v1329 = vpop.f32.mrb[0].mxu0
  %v1330 = vadd.f32 0.0, %v1329
  %v1331 = vpop.f32.mrb[0].mxu0
  %v1332 = vpop.f32.mrb[0].mxu0
  %v1333 = vadd.f32 0.0, %v1332
  %v1334 = vpop.f32.mrb[0].mxu0
  %1335 = vmatprep.mubr.bf16.mxu0 0
  %1336 = vmatmul.mubr.bf16.gmra.mrb[0].mxu0 %v1204
  %v1337 = vpop.f32.mrb[0].mxu0
  %v1338 = vadd.f32 0.0, %v1337
  %v1339 = vpop.f32.mrb[0].mxu0
  %v1340 = vpop.f32.mrb[0].mxu0
  %v1341 = vadd.f32 0.0, %v1340
  %v1342 = vpop.f32.mrb[0].mxu0
  %1343 = vmatprep.mubr.bf16.mxu0 0
  %1344 = vmatmul.mubr.bf16.gmra.mrb[0].mxu0 %v1207
  %v1345 = vpop.f32.mrb[0].mxu0
  %v1346 = vadd.f32 0.0, %v1345
  %v1347 = vpop.f32.mrb[0].mxu0
  %v1348 = vpop.f32.mrb[0].mxu0
  %v1349 = vadd.f32 0.0, %v1348
  %v1350 = vpop.f32.mrb[0].mxu0
  %1351 = vmatprep.mubr.bf16.mxu0 0
  %1352 = vmatmul.mubr.bf16.gmra.mrb[0].mxu0 %v1210
  %v1353 = vpop.f32.mrb[0].mxu0
  %v1354 = vadd.f32 0.0, %v1353
  %v1355 = vpop.f32.mrb[0].mxu0
  %v1356 = vpop.f32.mrb[0].mxu0
  %v1357 = vadd.f32 0.0, %v1356
  %v1358 = vpop.f32.mrb[0].mxu0
  %1359 = vmatprep.mubr.bf16.mxu0 0
  %1360 = vmatmul.mubr.bf16.gmra.mrb[0].mxu0 %v1213
  %v1361 = vpop.f32.mrb[0].mxu0
  %v1362 = vadd.f32 0.0, %v1361
  %v1363 = vpop.f32.mrb[0].mxu0
  %v1364 = vpop.f32.mrb[0].mxu0
  %v1365 = vadd.f32 0.0, %v1364
  %v1366 = vpop.f32.mrb[0].mxu0
  %1367 = vmatprep.mubr.bf16.mxu0 0
  %1368 = vmatmul.mubr.bf16.gmra.mrb[0].mxu0 %v1216
  %v1369 = vpop.f32.mrb[0].mxu0
  %v1370 = vadd.f32 0.0, %v1369
  %v1371 = vpop.f32.mrb[0].mxu0
  %v1372 = vpop.f32.mrb[0].mxu0
  %v1373 = vadd.f32 0.0, %v1372
  %v1374 = vpop.f32.mrb[0].mxu0
  %1375 = vmatprep.mubr.bf16.mxu0 0
  %1376 = vmatmul.mubr.bf16.gmra.mrb[0].mxu0 %v1219
  %v1377 = vpop.f32.mrb[0].mxu0
  %v1378 = vadd.f32 0.0, %v1377
  %v1379 = vpop.f32.mrb[0].mxu0
  %v1380 = vpop.f32.mrb[0].mxu0
  %v1381 = vadd.f32 0.0, %v1380
  %v1382 = vpop.f32.mrb[0].mxu0
  %1383 = vmatprep.mubr.bf16.mxu0 0
  %1384 = vmatmul.mubr.bf16.gmra.mrb[0].mxu0 %v1222
  %v1385 = vpop.f32.mrb[0].mxu0
  %v1386 = vadd.f32 0.0, %v1385
  %v1387 = vpop.f32.mrb[0].mxu0
  %v1388 = vpop.f32.mrb[0].mxu0
  %v1389 = vadd.f32 0.0, %v1388
  %v1390 = vpop.f32.mrb[0].mxu0
  %1391 = vmatprep.mubr.bf16.mxu0 0
  %1392 = vmatmul.mubr.bf16.gmra.mrb[0].mxu0 %v1225
  %v1393 = vpop.f32.mrb[0].mxu0
  %v1394 = vadd.f32 0.0, %v1393
  %v1395 = vpop.f32.mrb[0].mxu0
  %v1396 = vpop.f32.mrb[0].mxu0
  %v1397 = vadd.f32 0.0, %v1396
  %v1398 = vpop.f32.mrb[0].mxu0
  %1399 = vmatprep.mubr.bf16.mxu0 0
  %1400 = vmatmul.mubr.bf16.gmra.mrb[0].mxu0 %v1228
  %v1401 = vpop.f32.mrb[0].mxu0
  %v1402 = vadd.f32 0.0, %v1401
  %v1403 = vpop.f32.mrb[0].mxu0
  %v1404 = vpop.f32.mrb[0].mxu0
  %v1405 = vadd.f32 0.0, %v1404
  %v1406 = vpop.f32.mrb[0].mxu0
  %1407 = vmatprep.mubr.bf16.mxu0 0
  %1408 = vmatmul.mubr.bf16.gmra.mrb[0].mxu0 %v1231
  %v1409 = vpop.f32.mrb[0].mxu0
  %v1410 = vadd.f32 0.0, %v1409
  %v1411 = vpop.f32.mrb[0].mxu0
  %v1412 = vpop.f32.mrb[0].mxu0
  %v1413 = vadd.f32 0.0, %v1412
  %v1414 = vpop.f32.mrb[0].mxu0
  %1415 = vmatprep.mubr.bf16.mxu0 0
  %1416 = vmatmul.mubr.bf16.gmra.mrb[0].mxu0 %v1234
  %v1417 = vpop.f32.mrb[0].mxu0
  %v1418 = vadd.f32 0.0, %v1417
  %v1419 = vpop.f32.mrb[0].mxu0
  %v1420 = vpop.f32.mrb[0].mxu0
  %v1421 = vadd.f32 0.0, %v1420
  %v1422 = vpop.f32.mrb[0].mxu0
  %1423 = vmatprep.mubr.bf16.mxu0 0
  %1424 = vmatmul.mubr.bf16.gmra.mrb[0].mxu0 %v1237
  %v1425 = vpop.f32.mrb[0].mxu0
  %v1426 = vadd.f32 0.0, %v1425
  %v1427 = vpop.f32.mrb[0].mxu0
  %v1428 = vpop.f32.mrb[0].mxu0
  %v1429 = vadd.f32 0.0, %v1428
  %v1430 = vpop.f32.mrb[0].mxu0
  %1431 = vmatprep.mubr.bf16.mxu0 0
  %1432 = vmatmul.mubr.bf16.gmra.mrb[0].mxu0 %v1240
  %v1433 = vpop.f32.mrb[0].mxu0
  %v1434 = vadd.f32 0.0, %v1433
  %v1435 = vpop.f32.mrb[0].mxu0
  %v1436 = vpop.f32.mrb[0].mxu0
  %v1437 = vadd.f32 0.0, %v1436
  %v1438 = vpop.f32.mrb[0].mxu0
  %1439 = vmatprep.mubr.bf16.mxu0 0
  %1440 = vmatmul.mubr.bf16.gmra.mrb[0].mxu0 %v1243
  %v1441 = vpop.f32.mrb[0].mxu0
  %v1442 = vadd.f32 0.0, %v1441
  %v1443 = vpop.f32.mrb[0].mxu0
  %v1444 = vpop.f32.mrb[0].mxu0
  %v1445 = vadd.f32 0.0, %v1444
  %v1446 = vpop.f32.mrb[0].mxu0
  %1447 = vmatprep.mubr.bf16.mxu0 0
  %1448 = vmatmul.mubr.bf16.gmra.mrb[0].mxu0 %v1246
  %v1449 = vpop.f32.mrb[0].mxu0
  %v1450 = vadd.f32 0.0, %v1449
  %v1451 = vpop.f32.mrb[0].mxu0
  %v1452 = vpop.f32.mrb[0].mxu0
  %v1453 = vadd.f32 0.0, %v1452
  %v1454 = vpop.f32.mrb[0].mxu0
  %1455 = vmatprep.mubr.bf16.mxu0 0
  %1456 = vmatmul.mubr.bf16.gmra.mrb[0].mxu0 %v1249
  %v1457 = vpop.f32.mrb[0].mxu0
  %v1458 = vadd.f32 0.0, %v1457
  %v1459 = vpop.f32.mrb[0].mxu0
  %v1460 = vpop.f32.mrb[0].mxu0
  %v1461 = vadd.f32 0.0, %v1460
  %v1462 = vpop.f32.mrb[0].mxu0
  %1463 = vmatprep.mubr.bf16.mxu0 0
  %1464 = vmatmul.mubr.bf16.gmra.mrb[0].mxu0 %v1252
  %v1465 = vpop.f32.mrb[0].mxu0
  %v1466 = vadd.f32 0.0, %v1465
  %v1467 = vpop.f32.mrb[0].mxu0
  %v1468 = vpop.f32.mrb[0].mxu0
  %v1469 = vadd.f32 0.0, %v1468
  %v1470 = vpop.f32.mrb[0].mxu0
  %1471 = vmatprep.mubr.bf16.mxu0 0
  %1472 = vmatmul.mubr.bf16.gmra.mrb[0].mxu0 %v1255
  %v1473 = vpop.f32.mrb[0].mxu0
  %v1474 = vadd.f32 0.0, %v1473
  %v1475 = vpop.f32.mrb[0].mxu0
  %v1476 = vpop.f32.mrb[0].mxu0
  %v1477 = vadd.f32 0.0, %v1476
  %v1478 = vpop.f32.mrb[0].mxu0
  %1479 = vmatprep.mubr.bf16.mxu0 0
  %1480 = vmatmul.mubr.bf16.gmra.mrb[0].mxu0 %v1258
  %v1481 = vpop.f32.mrb[0].mxu0
  %v1482 = vadd.f32 0.0, %v1481
  %v1483 = vpop.f32.mrb[0].mxu0
  %v1484 = vpop.f32.mrb[0].mxu0
  %v1485 = vadd.f32 0.0, %v1484
  %v1486 = vpop.f32.mrb[0].mxu0
  %1487 = vmatprep.mubr.bf16.mxu0 0
  %1488 = vmatmul.mubr.bf16.gmra.mrb[0].mxu0 %v1261
  %v1489 = vpop.f32.mrb[0].mxu0
  %v1490 = vadd.f32 0.0, %v1489
  %v1491 = vpop.f32.mrb[0].mxu0
  %v1492 = vpop.f32.mrb[0].mxu0
  %v1493 = vadd.f32 0.0, %v1492
  %v1494 = vpop.f32.mrb[0].mxu0
  %1495 = vdwg.mxu0
  %v1496 = vld [vmem:[%s3] sm:$0xf]
  %v1497 = vld [vmem:[%s3 + $0x4] sm:$0xf]
  %v1498 = vld [vmem:[%s3 + $0x8] sm:$0xf]
  %v1499 = vld [vmem:[%s3 + $0xc] sm:$0xf]
  %v1500 = vld [vmem:[%s3 + $0x10] sm:$0xf]
  %v1501 = vld [vmem:[%s3 + $0x14] sm:$0xf]
  %v1502 = vld [vmem:[%s3 + $0x18] sm:$0xf]
  %v1503 = vld [vmem:[%s3 + $0x1c] sm:$0xf]
  %v1504 = vld [vmem:[%s3 + $0x20] sm:$0xf]
  %v1505 = vld [vmem:[%s3 + $0x24] sm:$0xf]
  %v1506 = vld [vmem:[%s3 + $0x28] sm:$0xf]
  %v1507 = vld [vmem:[%s3 + $0x2c] sm:$0xf]
  %v1508 = vld [vmem:[%s3 + $0x30] sm:$0xf]
  %v1509 = vld [vmem:[%s3 + $0x34] sm:$0xf]
  %v1510 = vld [vmem:[%s3 + $0x38] sm:$0xf]
  %v1511 = vld [vmem:[%s3 + $0x3c] sm:$0xf]
  %v1512 = vld [vmem:[%s3 + $0x40] sm:$0xf]
  %v1513 = vld [vmem:[%s3 + $0x44] sm:$0xf]
  %v1514 = vld [vmem:[%s3 + $0x48] sm:$0xf]
  %v1515 = vld [vmem:[%s3 + $0x4c] sm:$0xf]
  %v1516 = vld [vmem:[%s3 + $0x50] sm:$0xf]
  %v1517 = vld [vmem:[%s3 + $0x54] sm:$0xf]
  %v1518 = vld [vmem:[%s3 + $0x58] sm:$0xf]
  %v1519 = vld [vmem:[%s3 + $0x5c] sm:$0xf]
  %v1520 = vld [vmem:[%s3 + $0x60] sm:$0xf]
  %v1521 = vld [vmem:[%s3 + $0x64] sm:$0xf]
  %v1522 = vld [vmem:[%s3 + $0x68] sm:$0xf]
  %v1523 = vld [vmem:[%s3 + $0x6c] sm:$0xf]
  %v1524 = vld [vmem:[%s3 + $0x70] sm:$0xf]
  %v1525 = vld [vmem:[%s3 + $0x74] sm:$0xf]
  %v1526 = vld [vmem:[%s3 + $0x78] sm:$0xf]
  %v1527 = vld [vmem:[%s3 + $0x7c] sm:$0xf]
  %v1528 = vld [vmem:[%s3 + $0x80] sm:$0xf]
  %v1529 = vld [vmem:[%s3 + $0x84] sm:$0xf]
  %v1530 = vld [vmem:[%s3 + $0x88] sm:$0xf]
  %v1531 = vld [vmem:[%s3 + $0x8c] sm:$0xf]
  %v1532 = vld [vmem:[%s3 + $0x90] sm:$0xf]
  %v1533 = vld [vmem:[%s3 + $0x94] sm:$0xf]
  %v1534 = vld [vmem:[%s3 + $0x98] sm:$0xf]
  %v1535 = vld [vmem:[%s3 + $0x9c] sm:$0xf]
  %v1536 = vld [vmem:[%s3 + $0xa0] sm:$0xf]
  %v1537 = vld [vmem:[%s3 + $0xa4] sm:$0xf]
  %v1538 = vld [vmem:[%s3 + $0xa8] sm:$0xf]
  %v1539 = vld [vmem:[%s3 + $0xac] sm:$0xf]
  %v1540 = vld [vmem:[%s3 + $0xb0] sm:$0xf]
  %v1541 = vld [vmem:[%s3 + $0xb4] sm:$0xf]
  %v1542 = vld [vmem:[%s3 + $0xb8] sm:$0xf]
  %v1543 = vld [vmem:[%s3 + $0xbc] sm:$0xf]
  %v1544 = vld [vmem:[%s3 + $0xc0] sm:$0xf]
  %v1545 = vld [vmem:[%s3 + $0xc4] sm:$0xf]
  %v1596 = vunpack.c.l.b16 %v1496
  %v1597 = vunpack.c.l.b16 %v1497
  %v1598 = vunpack.c.l.b16 %v1498
  %v1599 = vunpack.c.l.b16 %v1499
  %v1600 = vunpack.c.l.b16 %v1500
  %v1601 = vunpack.c.l.b16 %v1501
  %v1602 = vunpack.c.l.b16 %v1502
  %v1603 = vunpack.c.l.b16 %v1503
  %v1604 = vunpack.c.l.b16 %v1504
  %v1605 = vunpack.c.l.b16 %v1505
  %v1606 = vunpack.c.l.b16 %v1506
  %v1607 = vunpack.c.l.b16 %v1507
  %v1608 = vunpack.c.l.b16 %v1508
  %v1609 = vunpack.c.l.b16 %v1509
  %v1610 = vunpack.c.l.b16 %v1510
  %v1611 = vunpack.c.l.b16 %v1511
  %v1612 = vunpack.c.l.b16 %v1512
  %v1613 = vunpack.c.l.b16 %v1513
  %v1614 = vunpack.c.l.b16 %v1514
  %v1615 = vunpack.c.l.b16 %v1515
  %v1616 = vunpack.c.l.b16 %v1516
  %v1617 = vunpack.c.l.b16 %v1517
  %v1618 = vunpack.c.l.b16 %v1518
  %v1619 = vunpack.c.l.b16 %v1519
  %v1620 = vunpack.c.l.b16 %v1520
  %v1621 = vunpack.c.l.b16 %v1521
  %v1622 = vunpack.c.l.b16 %v1522
  %v1623 = vunpack.c.l.b16 %v1523
  %v1624 = vunpack.c.l.b16 %v1524
  %v1625 = vunpack.c.l.b16 %v1525
  %v1626 = vunpack.c.l.b16 %v1526
  %v1627 = vunpack.c.l.b16 %v1527
  %v1628 = vunpack.c.l.b16 %v1528
  %v1629 = vunpack.c.l.b16 %v1529
  %v1630 = vunpack.c.l.b16 %v1530
  %v1631 = vunpack.c.l.b16 %v1531
  %v1632 = vunpack.c.l.b16 %v1532
  %v1633 = vunpack.c.l.b16 %v1533
  %v1634 = vunpack.c.l.b16 %v1534
  %v1635 = vunpack.c.l.b16 %v1535
  %v1636 = vunpack.c.l.b16 %v1536
  %v1637 = vunpack.c.l.b16 %v1537
  %v1638 = vunpack.c.l.b16 %v1538
  %v1639 = vunpack.c.l.b16 %v1539
  %v1640 = vunpack.c.l.b16 %v1540
  %v1641 = vunpack.c.l.b16 %v1541
  %v1642 = vunpack.c.l.b16 %v1542
  %v1643 = vunpack.c.l.b16 %v1543
  %v1644 = vunpack.c.l.b16 %v1544
  %v1645 = vunpack.c.l.b16 %v1545
  %v1646 = vpack.c.b16 %v1597, %v1596
  %v1647 = vpack.c.b16 %v1599, %v1598
  %v1648 = vpack.c.b16 %v1601, %v1600
  %v1649 = vpack.c.b16 %v1603, %v1602
  %v1650 = vpack.c.b16 %v1605, %v1604
  %v1651 = vpack.c.b16 %v1607, %v1606
  %v1652 = vpack.c.b16 %v1609, %v1608
  %v1653 = vpack.c.b16 %v1611, %v1610
  %v1654 = vpack.c.b16 %v1613, %v1612
  %v1655 = vpack.c.b16 %v1615, %v1614
  %v1656 = vpack.c.b16 %v1617, %v1616
  %v1657 = vpack.c.b16 %v1619, %v1618
  %v1658 = vpack.c.b16 %v1621, %v1620
  %v1659 = vpack.c.b16 %v1623, %v1622
  %v1660 = vpack.c.b16 %v1625, %v1624
  %v1661 = vpack.c.b16 %v1627, %v1626
  %v1662 = vpack.c.b16 %v1629, %v1628
  %v1663 = vpack.c.b16 %v1631, %v1630
  %v1664 = vpack.c.b16 %v1633, %v1632
  %v1665 = vpack.c.b16 %v1635, %v1634
  %v1666 = vpack.c.b16 %v1637, %v1636
  %v1667 = vpack.c.b16 %v1639, %v1638
  %v1668 = vpack.c.b16 %v1641, %v1640
  %v1669 = vpack.c.b16 %v1643, %v1642
  %v1670 = vpack.c.b16 %v1645, %v1644
  %v1672 = vsel %vm214, %v1646, 0
  %v1675 = vsel %vm214, %v1647, 0
  %v1678 = vsel %vm214, %v1648, 0
  %v1681 = vsel %vm214, %v1649, 0
  %v1684 = vsel %vm214, %v1650, 0
  %v1687 = vsel %vm214, %v1651, 0
  %v1690 = vsel %vm214, %v1652, 0
  %v1693 = vsel %vm214, %v1653, 0
  %v1696 = vsel %vm214, %v1654, 0
  %v1699 = vsel %vm214, %v1655, 0
  %v1702 = vsel %vm214, %v1656, 0
  %v1705 = vsel %vm214, %v1657, 0
  %v1708 = vsel %vm214, %v1658, 0
  %v1711 = vsel %vm214, %v1659, 0
  %v1714 = vsel %vm214, %v1660, 0
  %v1717 = vsel %vm214, %v1661, 0
  %v1720 = vsel %vm214, %v1662, 0
  %v1723 = vsel %vm214, %v1663, 0
  %v1726 = vsel %vm214, %v1664, 0
  %v1729 = vsel %vm214, %v1665, 0
  %v1732 = vsel %vm214, %v1666, 0
  %v1735 = vsel %vm214, %v1667, 0
  %v1738 = vsel %vm214, %v1668, 0
  %v1741 = vsel %vm214, %v1669, 0
  %v1744 = vsel %vm214, %v1670, 0
  %1746 = vmatprep.subr.bf16.mxu0 0
  %1747 = vmatpush1.bf16.msra.mxu0 %v211
  %1748 = vmatprep.subr.bf16.mxu0 0
  %1749 = vmatpush1.bf16.msra.mxu0 %v295
  %1750 = vmatprep.subr.bf16.mxu0 0
  %1751 = vmatpush1.bf16.msra.mxu0 0
  %1752 = vmatprep.subr.bf16.mxu0 0
  %1753 = vmatpush1.bf16.msra.mxu0 0
  %1754 = vmatprep.subr.bf16.mxu0 0
  %1755 = vmatpush1.bf16.msra.mxu0 0
  %1756 = vmatprep.subr.bf16.mxu0 0
  %1757 = vmatpush1.bf16.msra.mxu0 0
  %1758 = vmatprep.subr.bf16.mxu0 0
  %1759 = vmatpush1.bf16.msra.mxu0 0
  %1760 = vmatprep.subr.bf16.mxu0 0
  %1761 = vmatpush1.bf16.msra.mxu0 0
  %1762 = vmatprep.subr.bf16.mxu0 0
  %1763 = vmatpush1.bf16.msra.mxu0 0
  %1764 = vmatprep.subr.bf16.mxu0 0
  %1765 = vmatpush1.bf16.msra.mxu0 0
  %1766 = vmatprep.subr.bf16.mxu0 0
  %1767 = vmatpush1.bf16.msra.mxu0 0
  %1768 = vmatprep.subr.bf16.mxu0 0
  %1769 = vmatpush1.bf16.msra.mxu0 0
  %1770 = vmatprep.subr.bf16.mxu0 0
  %1771 = vmatpush1.bf16.msra.mxu0 0
  %1772 = vmatprep.subr.bf16.mxu0 0
  %1773 = vmatpush1.bf16.msra.mxu0 0
  %1774 = vmatprep.subr.bf16.mxu0 0
  %1775 = vmatpush1.bf16.msra.mxu0 0
  %1776 = vmatprep.subr.bf16.mxu0 0
  %1777 = vmatpush1.bf16.msra.mxu0 0
  %1778 = vmatprep.mubr.bf16.mxu0 0
  %1779 = vmatmul.mubr.bf16.gmra.mrb[0].mxu0 %v1672
  %v1780 = vpop.f32.mrb[0].mxu0
  %v1781 = vadd.f32 0.0, %v1780
  %v1782 = vpop.f32.mrb[0].mxu0
  %v1783 = vpop.f32.mrb[0].mxu0
  %v1784 = vadd.f32 0.0, %v1783
  %v1785 = vpop.f32.mrb[0].mxu0
  %1786 = vmatprep.mubr.bf16.mxu0 0
  %1787 = vmatmul.mubr.bf16.gmra.mrb[0].mxu0 %v1675
  %v1788 = vpop.f32.mrb[0].mxu0
  %v1789 = vadd.f32 0.0, %v1788
  %v1790 = vpop.f32.mrb[0].mxu0
  %v1791 = vpop.f32.mrb[0].mxu0
  %v1792 = vadd.f32 0.0, %v1791
  %v1793 = vpop.f32.mrb[0].mxu0
  %1794 = vmatprep.mubr.bf16.mxu0 0
  %1795 = vmatmul.mubr.bf16.gmra.mrb[0].mxu0 %v1678
  %v1796 = vpop.f32.mrb[0].mxu0
  %v1797 = vadd.f32 0.0, %v1796
  %v1798 = vpop.f32.mrb[0].mxu0
  %v1799 = vpop.f32.mrb[0].mxu0
  %v1800 = vadd.f32 0.0, %v1799
  %v1801 = vpop.f32.mrb[0].mxu0
  %1802 = vmatprep.mubr.bf16.mxu0 0
  %1803 = vmatmul.mubr.bf16.gmra.mrb[0].mxu0 %v1681
  %v1804 = vpop.f32.mrb[0].mxu0
  %v1805 = vadd.f32 0.0, %v1804
  %v1806 = vpop.f32.mrb[0].mxu0
  %v1807 = vpop.f32.mrb[0].mxu0
  %v1808 = vadd.f32 0.0, %v1807
  %v1809 = vpop.f32.mrb[0].mxu0
  %1810 = vmatprep.mubr.bf16.mxu0 0
  %1811 = vmatmul.mubr.bf16.gmra.mrb[0].mxu0 %v1684
  %v1812 = vpop.f32.mrb[0].mxu0
  %v1813 = vadd.f32 0.0, %v1812
  %v1814 = vpop.f32.mrb[0].mxu0
  %v1815 = vpop.f32.mrb[0].mxu0
  %v1816 = vadd.f32 0.0, %v1815
  %v1817 = vpop.f32.mrb[0].mxu0
  %1818 = vmatprep.mubr.bf16.mxu0 0
  %1819 = vmatmul.mubr.bf16.gmra.mrb[0].mxu0 %v1687
  %v1820 = vpop.f32.mrb[0].mxu0
  %v1821 = vadd.f32 0.0, %v1820
  %v1822 = vpop.f32.mrb[0].mxu0
  %v1823 = vpop.f32.mrb[0].mxu0
  %v1824 = vadd.f32 0.0, %v1823
  %v1825 = vpop.f32.mrb[0].mxu0
  %1826 = vmatprep.mubr.bf16.mxu0 0
  %1827 = vmatmul.mubr.bf16.gmra.mrb[0].mxu0 %v1690
  %v1828 = vpop.f32.mrb[0].mxu0
  %v1829 = vadd.f32 0.0, %v1828
  %v1830 = vpop.f32.mrb[0].mxu0
  %v1831 = vpop.f32.mrb[0].mxu0
  %v1832 = vadd.f32 0.0, %v1831
  %v1833 = vpop.f32.mrb[0].mxu0
  %1834 = vmatprep.mubr.bf16.mxu0 0
  %1835 = vmatmul.mubr.bf16.gmra.mrb[0].mxu0 %v1693
  %v1836 = vpop.f32.mrb[0].mxu0
  %v1837 = vadd.f32 0.0, %v1836
  %v1838 = vpop.f32.mrb[0].mxu0
  %v1839 = vpop.f32.mrb[0].mxu0
  %v1840 = vadd.f32 0.0, %v1839
  %v1841 = vpop.f32.mrb[0].mxu0
  %1842 = vmatprep.mubr.bf16.mxu0 0
  %1843 = vmatmul.mubr.bf16.gmra.mrb[0].mxu0 %v1696
  %v1844 = vpop.f32.mrb[0].mxu0
  %v1845 = vadd.f32 0.0, %v1844
  %v1846 = vpop.f32.mrb[0].mxu0
  %v1847 = vpop.f32.mrb[0].mxu0
  %v1848 = vadd.f32 0.0, %v1847
  %v1849 = vpop.f32.mrb[0].mxu0
  %1850 = vmatprep.mubr.bf16.mxu0 0
  %1851 = vmatmul.mubr.bf16.gmra.mrb[0].mxu0 %v1699
  %v1852 = vpop.f32.mrb[0].mxu0
  %v1853 = vadd.f32 0.0, %v1852
  %v1854 = vpop.f32.mrb[0].mxu0
  %v1855 = vpop.f32.mrb[0].mxu0
  %v1856 = vadd.f32 0.0, %v1855
  %v1857 = vpop.f32.mrb[0].mxu0
  %1858 = vmatprep.mubr.bf16.mxu0 0
  %1859 = vmatmul.mubr.bf16.gmra.mrb[0].mxu0 %v1702
  %v1860 = vpop.f32.mrb[0].mxu0
  %v1861 = vadd.f32 0.0, %v1860
  %v1862 = vpop.f32.mrb[0].mxu0
  %v1863 = vpop.f32.mrb[0].mxu0
  %v1864 = vadd.f32 0.0, %v1863
  %v1865 = vpop.f32.mrb[0].mxu0
  %1866 = vmatprep.mubr.bf16.mxu0 0
  %1867 = vmatmul.mubr.bf16.gmra.mrb[0].mxu0 %v1705
  %v1868 = vpop.f32.mrb[0].mxu0
  %v1869 = vadd.f32 0.0, %v1868
  %v1870 = vpop.f32.mrb[0].mxu0
  %v1871 = vpop.f32.mrb[0].mxu0
  %v1872 = vadd.f32 0.0, %v1871
  %v1873 = vpop.f32.mrb[0].mxu0
  %1874 = vmatprep.mubr.bf16.mxu0 0
  %1875 = vmatmul.mubr.bf16.gmra.mrb[0].mxu0 %v1708
  %v1876 = vpop.f32.mrb[0].mxu0
  %v1877 = vadd.f32 0.0, %v1876
  %v1878 = vpop.f32.mrb[0].mxu0
  %v1879 = vpop.f32.mrb[0].mxu0
  %v1880 = vadd.f32 0.0, %v1879
  %v1881 = vpop.f32.mrb[0].mxu0
  %1882 = vmatprep.mubr.bf16.mxu0 0
  %1883 = vmatmul.mubr.bf16.gmra.mrb[0].mxu0 %v1711
  %v1884 = vpop.f32.mrb[0].mxu0
  %v1885 = vadd.f32 0.0, %v1884
  %v1886 = vpop.f32.mrb[0].mxu0
  %v1887 = vpop.f32.mrb[0].mxu0
  %v1888 = vadd.f32 0.0, %v1887
  %v1889 = vpop.f32.mrb[0].mxu0
  %1890 = vmatprep.mubr.bf16.mxu0 0
  %1891 = vmatmul.mubr.bf16.gmra.mrb[0].mxu0 %v1714
  %v1892 = vpop.f32.mrb[0].mxu0
  %v1893 = vadd.f32 0.0, %v1892
  %v1894 = vpop.f32.mrb[0].mxu0
  %v1895 = vpop.f32.mrb[0].mxu0
  %v1896 = vadd.f32 0.0, %v1895
  %v1897 = vpop.f32.mrb[0].mxu0
  %1898 = vmatprep.mubr.bf16.mxu0 0
  %1899 = vmatmul.mubr.bf16.gmra.mrb[0].mxu0 %v1717
  %v1900 = vpop.f32.mrb[0].mxu0
  %v1901 = vadd.f32 0.0, %v1900
  %v1902 = vpop.f32.mrb[0].mxu0
  %v1903 = vpop.f32.mrb[0].mxu0
  %v1904 = vadd.f32 0.0, %v1903
  %v1905 = vpop.f32.mrb[0].mxu0
  %1906 = vmatprep.mubr.bf16.mxu0 0
  %1907 = vmatmul.mubr.bf16.gmra.mrb[0].mxu0 %v1720
  %v1908 = vpop.f32.mrb[0].mxu0
  %v1909 = vadd.f32 0.0, %v1908
  %v1910 = vpop.f32.mrb[0].mxu0
  %v1911 = vpop.f32.mrb[0].mxu0
  %v1912 = vadd.f32 0.0, %v1911
  %v1913 = vpop.f32.mrb[0].mxu0
  %1914 = vmatprep.mubr.bf16.mxu0 0
  %1915 = vmatmul.mubr.bf16.gmra.mrb[0].mxu0 %v1723
  %v1916 = vpop.f32.mrb[0].mxu0
  %v1917 = vadd.f32 0.0, %v1916
  %v1918 = vpop.f32.mrb[0].mxu0
  %v1919 = vpop.f32.mrb[0].mxu0
  %v1920 = vadd.f32 0.0, %v1919
  %v1921 = vpop.f32.mrb[0].mxu0
  %1922 = vmatprep.mubr.bf16.mxu0 0
  %1923 = vmatmul.mubr.bf16.gmra.mrb[0].mxu0 %v1726
  %v1924 = vpop.f32.mrb[0].mxu0
  %v1925 = vadd.f32 0.0, %v1924
  %v1926 = vpop.f32.mrb[0].mxu0
  %v1927 = vpop.f32.mrb[0].mxu0
  %v1928 = vadd.f32 0.0, %v1927
  %v1929 = vpop.f32.mrb[0].mxu0
  %1930 = vmatprep.mubr.bf16.mxu0 0
  %1931 = vmatmul.mubr.bf16.gmra.mrb[0].mxu0 %v1729
  %v1932 = vpop.f32.mrb[0].mxu0
  %v1933 = vadd.f32 0.0, %v1932
  %v1934 = vpop.f32.mrb[0].mxu0
  %v1935 = vpop.f32.mrb[0].mxu0
  %v1936 = vadd.f32 0.0, %v1935
  %v1937 = vpop.f32.mrb[0].mxu0
  %1938 = vmatprep.mubr.bf16.mxu0 0
  %1939 = vmatmul.mubr.bf16.gmra.mrb[0].mxu0 %v1732
  %v1940 = vpop.f32.mrb[0].mxu0
  %v1941 = vadd.f32 0.0, %v1940
  %v1942 = vpop.f32.mrb[0].mxu0
  %v1943 = vpop.f32.mrb[0].mxu0
  %v1944 = vadd.f32 0.0, %v1943
  %v1945 = vpop.f32.mrb[0].mxu0
  %1946 = vmatprep.mubr.bf16.mxu0 0
  %1947 = vmatmul.mubr.bf16.gmra.mrb[0].mxu0 %v1735
  %v1948 = vpop.f32.mrb[0].mxu0
  %v1949 = vadd.f32 0.0, %v1948
  %v1950 = vpop.f32.mrb[0].mxu0
  %v1951 = vpop.f32.mrb[0].mxu0
  %v1952 = vadd.f32 0.0, %v1951
  %v1953 = vpop.f32.mrb[0].mxu0
  %1954 = vmatprep.mubr.bf16.mxu0 0
  %1955 = vmatmul.mubr.bf16.gmra.mrb[0].mxu0 %v1738
  %v1956 = vpop.f32.mrb[0].mxu0
  %v1957 = vadd.f32 0.0, %v1956
  %v1958 = vpop.f32.mrb[0].mxu0
  %v1959 = vpop.f32.mrb[0].mxu0
  %v1960 = vadd.f32 0.0, %v1959
  %v1961 = vpop.f32.mrb[0].mxu0
  %1962 = vmatprep.mubr.bf16.mxu0 0
  %1963 = vmatmul.mubr.bf16.gmra.mrb[0].mxu0 %v1741
  %v1964 = vpop.f32.mrb[0].mxu0
  %v1965 = vadd.f32 0.0, %v1964
  %v1966 = vpop.f32.mrb[0].mxu0
  %v1967 = vpop.f32.mrb[0].mxu0
  %v1968 = vadd.f32 0.0, %v1967
  %v1969 = vpop.f32.mrb[0].mxu0
  %1970 = vmatprep.mubr.bf16.mxu0 0
  %1971 = vmatmul.mubr.bf16.gmra.mrb[0].mxu0 %v1744
  %v1972 = vpop.f32.mrb[0].mxu0
  %v1973 = vadd.f32 0.0, %v1972
  %v1974 = vpop.f32.mrb[0].mxu0
  %v1975 = vpop.f32.mrb[0].mxu0
  %v1976 = vadd.f32 0.0, %v1975
  %v1977 = vpop.f32.mrb[0].mxu0
  %1978 = vdwg.mxu0
  %v1979 = vmax.f32 %v332, %v815
  %v1980 = vmax.f32 %v335, %v818
  %v1981 = vmax.f32 %v340, %v823
  %v1982 = vmax.f32 %v343, %v826
  %v1983 = vmax.f32 %v348, %v831
  %v1984 = vmax.f32 %v351, %v834
  %v1985 = vmax.f32 %v356, %v839
  %v1986 = vmax.f32 %v359, %v842
  %v1987 = vmax.f32 %v364, %v847
  %v1988 = vmax.f32 %v367, %v850
  %v1989 = vmax.f32 %v372, %v855
  %v1990 = vmax.f32 %v375, %v858
  %v1991 = vmax.f32 %v380, %v863
  %v1992 = vmax.f32 %v383, %v866
  %v1993 = vmax.f32 %v388, %v871
  %v1994 = vmax.f32 %v391, %v874
  %v1995 = vmax.f32 %v396, %v879
  %v1996 = vmax.f32 %v399, %v882
  %v1997 = vmax.f32 %v404, %v887
  %v1998 = vmax.f32 %v407, %v890
  %v1999 = vmax.f32 %v412, %v895
  %v2000 = vmax.f32 %v415, %v898
  %v2001 = vmax.f32 %v420, %v903
  %v2002 = vmax.f32 %v423, %v906
  %v2003 = vmax.f32 %v428, %v911
  %v2004 = vmax.f32 %v431, %v914
  %v2005 = vmax.f32 %v436, %v919
  %v2006 = vmax.f32 %v439, %v922
  %v2007 = vmax.f32 %v444, %v927
  %v2008 = vmax.f32 %v447, %v930
  %v2009 = vmax.f32 %v452, %v935
  %v2010 = vmax.f32 %v455, %v938
  %v2011 = vmax.f32 %v460, %v943
  %v2012 = vmax.f32 %v463, %v946
  %v2013 = vmax.f32 %v468, %v951
  %v2014 = vmax.f32 %v471, %v954
  %v2015 = vmax.f32 %v476, %v959
  %v2016 = vmax.f32 %v479, %v962
  %v2017 = vmax.f32 %v484, %v967
  %v2018 = vmax.f32 %v487, %v970
  %v2019 = vmax.f32 %v492, %v975
  %v2020 = vmax.f32 %v495, %v978
  %v2021 = vmax.f32 %v500, %v983
  %v2022 = vmax.f32 %v503, %v986
  %v2023 = vmax.f32 %v508, %v991
  %v2024 = vmax.f32 %v511, %v994
  %v2025 = vmax.f32 %v516, %v999
  %v2026 = vmax.f32 %v519, %v1002
  %v2027 = vmax.f32 %v524, %v1007
  %v2028 = vmax.f32 %v527, %v1010
  %v2029 = vmax.f32 %v1298, %v1781
  %v2030 = vmax.f32 %v1301, %v1784
  %v2031 = vmax.f32 %v1306, %v1789
  %v2032 = vmax.f32 %v1309, %v1792
  %v2033 = vmax.f32 %v1314, %v1797
  %v2034 = vmax.f32 %v1317, %v1800
  %v2035 = vmax.f32 %v1322, %v1805
  %v2036 = vmax.f32 %v1325, %v1808
  %v2037 = vmax.f32 %v1330, %v1813
  %v2038 = vmax.f32 %v1333, %v1816
  %v2039 = vmax.f32 %v1338, %v1821
  %v2040 = vmax.f32 %v1341, %v1824
  %v2041 = vmax.f32 %v1346, %v1829
  %v2042 = vmax.f32 %v1349, %v1832
  %v2043 = vmax.f32 %v1354, %v1837
  %v2044 = vmax.f32 %v1357, %v1840
  %v2045 = vmax.f32 %v1362, %v1845
  %v2046 = vmax.f32 %v1365, %v1848
  %v2047 = vmax.f32 %v1370, %v1853
  %v2048 = vmax.f32 %v1373, %v1856
  %v2049 = vmax.f32 %v1378, %v1861
  %v2050 = vmax.f32 %v1381, %v1864
  %v2051 = vmax.f32 %v1386, %v1869
  %v2052 = vmax.f32 %v1389, %v1872
  %v2053 = vmax.f32 %v1394, %v1877
  %v2054 = vmax.f32 %v1397, %v1880
  %v2055 = vmax.f32 %v1402, %v1885
  %v2056 = vmax.f32 %v1405, %v1888
  %v2057 = vmax.f32 %v1410, %v1893
  %v2058 = vmax.f32 %v1413, %v1896
  %v2059 = vmax.f32 %v1418, %v1901
  %v2060 = vmax.f32 %v1421, %v1904
  %v2061 = vmax.f32 %v1426, %v1909
  %v2062 = vmax.f32 %v1429, %v1912
  %v2063 = vmax.f32 %v1434, %v1917
  %v2064 = vmax.f32 %v1437, %v1920
  %v2065 = vmax.f32 %v1442, %v1925
  %v2066 = vmax.f32 %v1445, %v1928
  %v2067 = vmax.f32 %v1450, %v1933
  %v2068 = vmax.f32 %v1453, %v1936
  %v2069 = vmax.f32 %v1458, %v1941
  %v2070 = vmax.f32 %v1461, %v1944
  %v2071 = vmax.f32 %v1466, %v1949
  %v2072 = vmax.f32 %v1469, %v1952
  %v2073 = vmax.f32 %v1474, %v1957
  %v2074 = vmax.f32 %v1477, %v1960
  %v2075 = vmax.f32 %v1482, %v1965
  %v2076 = vmax.f32 %v1485, %v1968
  %v2077 = vmax.f32 %v1490, %v1973
  %v2078 = vmax.f32 %v1493, %v1976
  %v2079 = vmax.f32 %v1979, %v2029
  %v2080 = vmax.f32 %v1980, %v2030
  %v2081 = vmax.f32 %v1981, %v2031
  %v2082 = vmax.f32 %v1982, %v2032
  %v2083 = vmax.f32 %v1983, %v2033
  %v2084 = vmax.f32 %v1984, %v2034
  %v2085 = vmax.f32 %v1985, %v2035
  %v2086 = vmax.f32 %v1986, %v2036
  %v2087 = vmax.f32 %v1987, %v2037
  %v2088 = vmax.f32 %v1988, %v2038
  %v2089 = vmax.f32 %v1989, %v2039
  %v2090 = vmax.f32 %v1990, %v2040
  %v2091 = vmax.f32 %v1991, %v2041
  %v2092 = vmax.f32 %v1992, %v2042
  %v2093 = vmax.f32 %v1993, %v2043
  %v2094 = vmax.f32 %v1994, %v2044
  %v2095 = vmax.f32 %v1995, %v2045
  %v2096 = vmax.f32 %v1996, %v2046
  %v2097 = vmax.f32 %v1997, %v2047
  %v2098 = vmax.f32 %v1998, %v2048
  %v2099 = vmax.f32 %v1999, %v2049
  %v2100 = vmax.f32 %v2000, %v2050
  %v2101 = vmax.f32 %v2001, %v2051
  %v2102 = vmax.f32 %v2002, %v2052
  %v2103 = vmax.f32 %v2003, %v2053
  %v2104 = vmax.f32 %v2004, %v2054
  %v2105 = vmax.f32 %v2005, %v2055
  %v2106 = vmax.f32 %v2006, %v2056
  %v2107 = vmax.f32 %v2007, %v2057
  %v2108 = vmax.f32 %v2008, %v2058
  %v2109 = vmax.f32 %v2009, %v2059
  %v2110 = vmax.f32 %v2010, %v2060
  %v2111 = vmax.f32 %v2011, %v2061
  %v2112 = vmax.f32 %v2012, %v2062
  %v2113 = vmax.f32 %v2013, %v2063
  %v2114 = vmax.f32 %v2014, %v2064
  %v2115 = vmax.f32 %v2015, %v2065
  %v2116 = vmax.f32 %v2016, %v2066
  %v2117 = vmax.f32 %v2017, %v2067
  %v2118 = vmax.f32 %v2018, %v2068
  %v2119 = vmax.f32 %v2019, %v2069
  %v2120 = vmax.f32 %v2020, %v2070
  %v2121 = vmax.f32 %v2021, %v2071
  %v2122 = vmax.f32 %v2022, %v2072
  %v2123 = vmax.f32 %v2023, %v2073
  %v2124 = vmax.f32 %v2024, %v2074
  %v2125 = vmax.f32 %v2025, %v2075
  %v2126 = vmax.f32 %v2026, %v2076
  %v2127 = vmax.f32 %v2027, %v2077
  %v2128 = vmax.f32 %v2028, %v2078
  %v2129 = vld [vmem:[%s5] sm:$0x1]
  %v2131 = vlaneseq
  %v2132 = vshrl.u32 %v2131, 7
  %v2133 = vsub.s32 0, %v2132
  %v2134 = vrot.slane %v2129, %v2133
  %v2136 = vadd.f32 %v2079, %v2134
  %v2137 = vadd.f32 %v2080, %v2134
  %v2138 = vadd.f32 %v2081, %v2134
  %v2139 = vadd.f32 %v2082, %v2134
  %v2140 = vadd.f32 %v2083, %v2134
  %v2141 = vadd.f32 %v2084, %v2134
  %v2142 = vadd.f32 %v2085, %v2134
  %v2143 = vadd.f32 %v2086, %v2134
  %v2144 = vadd.f32 %v2087, %v2134
  %v2145 = vadd.f32 %v2088, %v2134
  %v2146 = vadd.f32 %v2089, %v2134
  %v2147 = vadd.f32 %v2090, %v2134
  %v2148 = vadd.f32 %v2091, %v2134
  %v2149 = vadd.f32 %v2092, %v2134
  %v2150 = vadd.f32 %v2093, %v2134
  %v2151 = vadd.f32 %v2094, %v2134
  %v2152 = vadd.f32 %v2095, %v2134
  %v2153 = vadd.f32 %v2096, %v2134
  %v2154 = vadd.f32 %v2097, %v2134
  %v2155 = vadd.f32 %v2098, %v2134
  %v2156 = vadd.f32 %v2099, %v2134
  %v2157 = vadd.f32 %v2100, %v2134
  %v2158 = vadd.f32 %v2101, %v2134
  %v2159 = vadd.f32 %v2102, %v2134
  %v2160 = vadd.f32 %v2103, %v2134
  %v2161 = vadd.f32 %v2104, %v2134
  %v2162 = vadd.f32 %v2105, %v2134
  %v2163 = vadd.f32 %v2106, %v2134
  %v2164 = vadd.f32 %v2107, %v2134
  %v2165 = vadd.f32 %v2108, %v2134
  %v2166 = vadd.f32 %v2109, %v2134
  %v2167 = vadd.f32 %v2110, %v2134
  %v2168 = vadd.f32 %v2111, %v2134
  %v2169 = vadd.f32 %v2112, %v2134
  %v2170 = vadd.f32 %v2113, %v2134
  %v2171 = vadd.f32 %v2114, %v2134
  %v2172 = vadd.f32 %v2115, %v2134
  %v2173 = vadd.f32 %v2116, %v2134
  %v2174 = vadd.f32 %v2117, %v2134
  %v2175 = vadd.f32 %v2118, %v2134
  %v2176 = vadd.f32 %v2119, %v2134
  %v2177 = vadd.f32 %v2120, %v2134
  %v2178 = vadd.f32 %v2121, %v2134
  %v2179 = vadd.f32 %v2122, %v2134
  %v2180 = vadd.f32 %v2123, %v2134
  %v2181 = vadd.f32 %v2124, %v2134
  %v2182 = vadd.f32 %v2125, %v2134
  %v2183 = vadd.f32 %v2126, %v2134
  %v2184 = vadd.f32 %v2127, %v2134
  %v2185 = vadd.f32 %v2128, %v2134
  %v2186 = vmax.f32 %v2136, 0.0
  %v2187 = vmax.f32 %v2137, 0.0
  %v2188 = vmax.f32 %v2138, 0.0
  %v2189 = vmax.f32 %v2139, 0.0
  %v2190 = vmax.f32 %v2140, 0.0
  %v2191 = vmax.f32 %v2141, 0.0
  %v2192 = vmax.f32 %v2142, 0.0
  %v2193 = vmax.f32 %v2143, 0.0
  %v2194 = vmax.f32 %v2144, 0.0
  %v2195 = vmax.f32 %v2145, 0.0
  %v2196 = vmax.f32 %v2146, 0.0
  %v2197 = vmax.f32 %v2147, 0.0
  %v2198 = vmax.f32 %v2148, 0.0
  %v2199 = vmax.f32 %v2149, 0.0
  %v2200 = vmax.f32 %v2150, 0.0
  %v2201 = vmax.f32 %v2151, 0.0
  %v2202 = vmax.f32 %v2152, 0.0
  %v2203 = vmax.f32 %v2153, 0.0
  %v2204 = vmax.f32 %v2154, 0.0
  %v2205 = vmax.f32 %v2155, 0.0
  %v2206 = vmax.f32 %v2156, 0.0
  %v2207 = vmax.f32 %v2157, 0.0
  %v2208 = vmax.f32 %v2158, 0.0
  %v2209 = vmax.f32 %v2159, 0.0
  %v2210 = vmax.f32 %v2160, 0.0
  %v2211 = vmax.f32 %v2161, 0.0
  %v2212 = vmax.f32 %v2162, 0.0
  %v2213 = vmax.f32 %v2163, 0.0
  %v2214 = vmax.f32 %v2164, 0.0
  %v2215 = vmax.f32 %v2165, 0.0
  %v2216 = vmax.f32 %v2166, 0.0
  %v2217 = vmax.f32 %v2167, 0.0
  %v2218 = vmax.f32 %v2168, 0.0
  %v2219 = vmax.f32 %v2169, 0.0
  %v2220 = vmax.f32 %v2170, 0.0
  %v2221 = vmax.f32 %v2171, 0.0
  %v2222 = vmax.f32 %v2172, 0.0
  %v2223 = vmax.f32 %v2173, 0.0
  %v2224 = vmax.f32 %v2174, 0.0
  %v2225 = vmax.f32 %v2175, 0.0
  %v2226 = vmax.f32 %v2176, 0.0
  %v2227 = vmax.f32 %v2177, 0.0
  %v2228 = vmax.f32 %v2178, 0.0
  %v2229 = vmax.f32 %v2179, 0.0
  %v2230 = vmax.f32 %v2180, 0.0
  %v2231 = vmax.f32 %v2181, 0.0
  %v2232 = vmax.f32 %v2182, 0.0
  %v2233 = vmax.f32 %v2183, 0.0
  %v2234 = vmax.f32 %v2184, 0.0
  %v2235 = vmax.f32 %v2185, 0.0
  %v2236 = vpack.c.bf16 %v2187, %v2186
  %v2237 = vpack.c.bf16 %v2189, %v2188
  %v2238 = vpack.c.bf16 %v2191, %v2190
  %v2239 = vpack.c.bf16 %v2193, %v2192
  %v2240 = vpack.c.bf16 %v2195, %v2194
  %v2241 = vpack.c.bf16 %v2197, %v2196
  %v2242 = vpack.c.bf16 %v2199, %v2198
  %v2243 = vpack.c.bf16 %v2201, %v2200
  %v2244 = vpack.c.bf16 %v2203, %v2202
  %v2245 = vpack.c.bf16 %v2205, %v2204
  %v2246 = vpack.c.bf16 %v2207, %v2206
  %v2247 = vpack.c.bf16 %v2209, %v2208
  %v2248 = vpack.c.bf16 %v2211, %v2210
  %v2249 = vpack.c.bf16 %v2213, %v2212
  %v2250 = vpack.c.bf16 %v2215, %v2214
  %v2251 = vpack.c.bf16 %v2217, %v2216
  %v2252 = vpack.c.bf16 %v2219, %v2218
  %v2253 = vpack.c.bf16 %v2221, %v2220
  %v2254 = vpack.c.bf16 %v2223, %v2222
  %v2255 = vpack.c.bf16 %v2225, %v2224
  %v2256 = vpack.c.bf16 %v2227, %v2226
  %v2257 = vpack.c.bf16 %v2229, %v2228
  %v2258 = vpack.c.bf16 %v2231, %v2230
  %v2259 = vpack.c.bf16 %v2233, %v2232
  %v2260 = vpack.c.bf16 %v2235, %v2234
  %v2286 = vunpack.c.l.b16 %v2236
  %v2287 = vunpack.c.h.b16 %v2236
  %v2288 = vunpack.c.l.b16 %v2237
  %v2289 = vunpack.c.h.b16 %v2237
  %v2290 = vunpack.c.l.b16 %v2238
  %v2291 = vunpack.c.h.b16 %v2238
  %v2292 = vunpack.c.l.b16 %v2239
  %v2293 = vunpack.c.h.b16 %v2239
  %v2294 = vunpack.c.l.b16 %v2240
  %v2295 = vunpack.c.h.b16 %v2240
  %v2296 = vunpack.c.l.b16 %v2241
  %v2297 = vunpack.c.h.b16 %v2241
  %v2298 = vunpack.c.l.b16 %v2242
  %v2299 = vunpack.c.h.b16 %v2242
  %v2300 = vunpack.c.l.b16 %v2243
  %v2301 = vunpack.c.h.b16 %v2243
  %v2302 = vunpack.c.l.b16 %v2244
  %v2303 = vunpack.c.h.b16 %v2244
  %v2304 = vunpack.c.l.b16 %v2245
  %v2305 = vunpack.c.h.b16 %v2245
  %v2306 = vunpack.c.l.b16 %v2246
  %v2307 = vunpack.c.h.b16 %v2246
  %v2308 = vunpack.c.l.b16 %v2247
  %v2309 = vunpack.c.h.b16 %v2247
  %v2310 = vunpack.c.l.b16 %v2248
  %v2311 = vunpack.c.h.b16 %v2248
  %v2312 = vunpack.c.l.b16 %v2249
  %v2313 = vunpack.c.h.b16 %v2249
  %v2314 = vunpack.c.l.b16 %v2250
  %v2315 = vunpack.c.h.b16 %v2250
  %v2316 = vunpack.c.l.b16 %v2251
  %v2317 = vunpack.c.h.b16 %v2251
  %v2318 = vunpack.c.l.b16 %v2252
  %v2319 = vunpack.c.h.b16 %v2252
  %v2320 = vunpack.c.l.b16 %v2253
  %v2321 = vunpack.c.h.b16 %v2253
  %v2322 = vunpack.c.l.b16 %v2254
  %v2323 = vunpack.c.h.b16 %v2254
  %v2324 = vunpack.c.l.b16 %v2255
  %v2325 = vunpack.c.h.b16 %v2255
  %v2326 = vunpack.c.l.b16 %v2256
  %v2327 = vunpack.c.h.b16 %v2256
  %v2328 = vunpack.c.l.b16 %v2257
  %v2329 = vunpack.c.h.b16 %v2257
  %v2330 = vunpack.c.l.b16 %v2258
  %v2331 = vunpack.c.h.b16 %v2258
  %v2332 = vunpack.c.l.b16 %v2259
  %v2333 = vunpack.c.h.b16 %v2259
  %v2334 = vunpack.c.l.b16 %v2260
  %v2335 = vunpack.c.h.b16 %v2260
  %v2336 = vpack.c.b16 %v2286, %v2286
  %v2337 = vpack.c.b16 %v2287, %v2287
  %v2338 = vpack.c.b16 %v2288, %v2288
  %v2339 = vpack.c.b16 %v2289, %v2289
  %v2340 = vpack.c.b16 %v2290, %v2290
  %v2341 = vpack.c.b16 %v2291, %v2291
  %v2342 = vpack.c.b16 %v2292, %v2292
  %v2343 = vpack.c.b16 %v2293, %v2293
  %v2344 = vpack.c.b16 %v2294, %v2294
  %v2345 = vpack.c.b16 %v2295, %v2295
  %v2346 = vpack.c.b16 %v2296, %v2296
  %v2347 = vpack.c.b16 %v2297, %v2297
  %v2348 = vpack.c.b16 %v2298, %v2298
  %v2349 = vpack.c.b16 %v2299, %v2299
  %v2350 = vpack.c.b16 %v2300, %v2300
  %v2351 = vpack.c.b16 %v2301, %v2301
  %v2352 = vpack.c.b16 %v2302, %v2302
  %v2353 = vpack.c.b16 %v2303, %v2303
  %v2354 = vpack.c.b16 %v2304, %v2304
  %v2355 = vpack.c.b16 %v2305, %v2305
  %v2356 = vpack.c.b16 %v2306, %v2306
  %v2357 = vpack.c.b16 %v2307, %v2307
  %v2358 = vpack.c.b16 %v2308, %v2308
  %v2359 = vpack.c.b16 %v2309, %v2309
  %v2360 = vpack.c.b16 %v2310, %v2310
  %v2361 = vpack.c.b16 %v2311, %v2311
  %v2362 = vpack.c.b16 %v2312, %v2312
  %v2363 = vpack.c.b16 %v2313, %v2313
  %v2364 = vpack.c.b16 %v2314, %v2314
  %v2365 = vpack.c.b16 %v2315, %v2315
  %v2366 = vpack.c.b16 %v2316, %v2316
  %v2367 = vpack.c.b16 %v2317, %v2317
  %v2368 = vpack.c.b16 %v2318, %v2318
  %v2369 = vpack.c.b16 %v2319, %v2319
  %v2370 = vpack.c.b16 %v2320, %v2320
  %v2371 = vpack.c.b16 %v2321, %v2321
  %v2372 = vpack.c.b16 %v2322, %v2322
  %v2373 = vpack.c.b16 %v2323, %v2323
  %v2374 = vpack.c.b16 %v2324, %v2324
  %v2375 = vpack.c.b16 %v2325, %v2325
  %v2376 = vpack.c.b16 %v2326, %v2326
  %v2377 = vpack.c.b16 %v2327, %v2327
  %v2378 = vpack.c.b16 %v2328, %v2328
  %v2379 = vpack.c.b16 %v2329, %v2329
  %v2380 = vpack.c.b16 %v2330, %v2330
  %v2381 = vpack.c.b16 %v2331, %v2331
  %v2382 = vpack.c.b16 %v2332, %v2332
  %v2383 = vpack.c.b16 %v2333, %v2333
  %v2384 = vpack.c.b16 %v2334, %v2334
  %v2385 = vpack.c.b16 %v2335, %v2335
  %2436 = vst [vmem:[%s6] sm:$0xf] %v2336
  %2437 = vst [vmem:[%s6 + $0x4] sm:$0xf] %v2337
  %2438 = vst [vmem:[%s6 + $0x8] sm:$0xf] %v2338
  %2439 = vst [vmem:[%s6 + $0xc] sm:$0xf] %v2339
  %2440 = vst [vmem:[%s6 + $0x10] sm:$0xf] %v2340
  %2441 = vst [vmem:[%s6 + $0x14] sm:$0xf] %v2341
  %2442 = vst [vmem:[%s6 + $0x18] sm:$0xf] %v2342
  %2443 = vst [vmem:[%s6 + $0x1c] sm:$0xf] %v2343
  %2444 = vst [vmem:[%s6 + $0x20] sm:$0xf] %v2344
  %2445 = vst [vmem:[%s6 + $0x24] sm:$0xf] %v2345
  %2446 = vst [vmem:[%s6 + $0x28] sm:$0xf] %v2346
  %2447 = vst [vmem:[%s6 + $0x2c] sm:$0xf] %v2347
  %2448 = vst [vmem:[%s6 + $0x30] sm:$0xf] %v2348
  %2449 = vst [vmem:[%s6 + $0x34] sm:$0xf] %v2349
  %2450 = vst [vmem:[%s6 + $0x38] sm:$0xf] %v2350
  %2451 = vst [vmem:[%s6 + $0x3c] sm:$0xf] %v2351
  %2452 = vst [vmem:[%s6 + $0x40] sm:$0xf] %v2352
  %2453 = vst [vmem:[%s6 + $0x44] sm:$0xf] %v2353
  %2454 = vst [vmem:[%s6 + $0x48] sm:$0xf] %v2354
  %2455 = vst [vmem:[%s6 + $0x4c] sm:$0xf] %v2355
  %2456 = vst [vmem:[%s6 + $0x50] sm:$0xf] %v2356
  %2457 = vst [vmem:[%s6 + $0x54] sm:$0xf] %v2357
  %2458 = vst [vmem:[%s6 + $0x58] sm:$0xf] %v2358
  %2459 = vst [vmem:[%s6 + $0x5c] sm:$0xf] %v2359
  %2460 = vst [vmem:[%s6 + $0x60] sm:$0xf] %v2360
  %2461 = vst [vmem:[%s6 + $0x64] sm:$0xf] %v2361
  %2462 = vst [vmem:[%s6 + $0x68] sm:$0xf] %v2362
  %2463 = vst [vmem:[%s6 + $0x6c] sm:$0xf] %v2363
  %2464 = vst [vmem:[%s6 + $0x70] sm:$0xf] %v2364
  %2465 = vst [vmem:[%s6 + $0x74] sm:$0xf] %v2365
  %2466 = vst [vmem:[%s6 + $0x78] sm:$0xf] %v2366
  %2467 = vst [vmem:[%s6 + $0x7c] sm:$0xf] %v2367
  %2468 = vst [vmem:[%s6 + $0x80] sm:$0xf] %v2368
  %2469 = vst [vmem:[%s6 + $0x84] sm:$0xf] %v2369
  %2470 = vst [vmem:[%s6 + $0x88] sm:$0xf] %v2370
  %2471 = vst [vmem:[%s6 + $0x8c] sm:$0xf] %v2371
  %2472 = vst [vmem:[%s6 + $0x90] sm:$0xf] %v2372
  %2473 = vst [vmem:[%s6 + $0x94] sm:$0xf] %v2373
  %2474 = vst [vmem:[%s6 + $0x98] sm:$0xf] %v2374
  %2475 = vst [vmem:[%s6 + $0x9c] sm:$0xf] %v2375
  %2476 = vst [vmem:[%s6 + $0xa0] sm:$0xf] %v2376
  %2477 = vst [vmem:[%s6 + $0xa4] sm:$0xf] %v2377
  %2478 = vst [vmem:[%s6 + $0xa8] sm:$0xf] %v2378
  %2479 = vst [vmem:[%s6 + $0xac] sm:$0xf] %v2379
  %2480 = vst [vmem:[%s6 + $0xb0] sm:$0xf] %v2380
  %2481 = vst [vmem:[%s6 + $0xb4] sm:$0xf] %v2381
  %2482 = vst [vmem:[%s6 + $0xb8] sm:$0xf] %v2382
  %2483 = vst [vmem:[%s6 + $0xbc] sm:$0xf] %v2383
  %2484 = vst [vmem:[%s6 + $0xc0] sm:$0xf] %v2384
  %2485 = vst [vmem:[%s6 + $0xc4] sm:$0xf] %v2385
  // Predicated region
  $region26: #{lenet_forward.3} parent=0 // pred_check
    _
  $region27: #{lenet_forward.3} parent=0 // pred_check_branch
    %2487 = sbr.rel (0) target = $region29
  $region28: #{lenet_forward.3} parent=0 // pred_region
    _
  $region29: #{lenet_forward.3} parent=0 // pred_fallthru
    _
  // Predicated region
  $region30: #{lenet_forward.3} parent=0 // pred_check
    _
  $region31: #{lenet_forward.3} parent=0 // pred_check_branch
    %2489 = sbr.rel (0) target = $region33
  $region32: #{lenet_forward.3} parent=0 // pred_region
    _
  $region33: #{lenet_forward.3} parent=0 // pred_fallthru
    _

// kernel: lenet_forward.4
$region0: #{lenet_forward.4}
  #allocation0 [shape = 'u32[]', space=smem, size = 0x4, offset = 0x4, fixed_abs, tag = 'smem constant byte address 0x4 - core index']
  #allocation1 [shape = 'u32[144,128]{1,0:T(1,128)}', space=vmem, size = 0x12000, scoped, tag = 'internal scratch']
  %s0 = inlined_call_operand.vmem [shape: bf16[64,150], index: 0, kind: input, shape index: {}]
  %s1 = inlined_call_operand.vmem [shape: bf16[64,150], index: 1, kind: input, shape index: {}]
  %s2 = inlined_call_operand.vmem [shape: bf16[64,150], index: 2, kind: input, shape index: {}]
  %s3 = inlined_call_operand.vmem [shape: bf16[64,150], index: 3, kind: input, shape index: {}]
  %s4 = inlined_call_operand.vmem [shape: bf16[150,128], index: 4, kind: input, shape index: {}]
  %s5 = inlined_call_operand.vmem [shape: f32[1,128], index: 5, kind: input, shape index: {}]
  %s6 = inlined_call_operand.vmem [shape: bf16[64,128], index: 6, kind: output, shape index: {}]
  %s7 = sld [smem:[#allocation0]]
  $region34: #{lenet_forward.4} parent=0
    _
  %s9 = ssub.s32 1, %s7
  %s10 = scalar_select 0, %s9, %s7
  // Predicated region
  $region2: #{lenet_forward.4} parent=0 // pred_check
    _
  $region3: #{lenet_forward.4} parent=0 // pred_check_branch
    %12 = sbr.rel (0) target = $region5
  $region4: #{lenet_forward.4} parent=0 // pred_region
    _
  $region5: #{lenet_forward.4} parent=0 // pred_fallthru
    _
  // Predicated region
  $region6: #{lenet_forward.4} parent=0 // pred_check
    _
  $region7: #{lenet_forward.4} parent=0 // pred_check_branch
    %14 = sbr.rel (0) target = $region9
  $region8: #{lenet_forward.4} parent=0 // pred_region
    _
  $region9: #{lenet_forward.4} parent=0 // pred_fallthru
    _
  // Predicated region
  $region10: #{lenet_forward.4} parent=0 // pred_check
    _
  $region11: #{lenet_forward.4} parent=0 // pred_check_branch
    %16 = sbr.rel (0) target = $region13
  $region12: #{lenet_forward.4} parent=0 // pred_region
    _
  $region13: #{lenet_forward.4} parent=0 // pred_fallthru
    _
  // Predicated region
  $region14: #{lenet_forward.4} parent=0 // pred_check
    _
  $region15: #{lenet_forward.4} parent=0 // pred_check_branch
    %18 = sbr.rel (0) target = $region17
  $region16: #{lenet_forward.4} parent=0 // pred_region
    _
  $region17: #{lenet_forward.4} parent=0 // pred_fallthru
    _
  // Predicated region
  $region18: #{lenet_forward.4} parent=0 // pred_check
    _
  $region19: #{lenet_forward.4} parent=0 // pred_check_branch
    %20 = sbr.rel (0) target = $region21
  $region20: #{lenet_forward.4} parent=0 // pred_region
    _
  $region21: #{lenet_forward.4} parent=0 // pred_fallthru
    _
  // Predicated region
  $region22: #{lenet_forward.4} parent=0 // pred_check
    _
  $region23: #{lenet_forward.4} parent=0 // pred_check_branch
    %22 = sbr.rel (0) target = $region25
  $region24: #{lenet_forward.4} parent=0 // pred_region
    _
  $region25: #{lenet_forward.4} parent=0 // pred_fallthru
    _
  %v24 = vld [vmem:[%s4] sm:$0xf]
  %v25 = vld [vmem:[%s4 + $0x4] sm:$0xf]
  %v26 = vld [vmem:[%s4 + $0x8] sm:$0xf]
  %v27 = vld [vmem:[%s4 + $0xc] sm:$0xf]
  %v28 = vld [vmem:[%s4 + $0x10] sm:$0xf]
  %v29 = vld [vmem:[%s4 + $0x14] sm:$0xf]
  %v30 = vld [vmem:[%s4 + $0x18] sm:$0xf]
  %v31 = vld [vmem:[%s4 + $0x1c] sm:$0xf]
  %v32 = vld [vmem:[%s4 + $0x20] sm:$0xf]
  %v33 = vld [vmem:[%s4 + $0x24] sm:$0xf]
  %v34 = vld [vmem:[%s4 + $0x28] sm:$0xf]
  %v35 = vld [vmem:[%s4 + $0x2c] sm:$0xf]
  %v36 = vld [vmem:[%s4 + $0x30] sm:$0xf]
  %v37 = vld [vmem:[%s4 + $0x34] sm:$0xf]
  %v38 = vld [vmem:[%s4 + $0x38] sm:$0xf]
  %v39 = vld [vmem:[%s4 + $0x3c] sm:$0xf]
  %v40 = vld [vmem:[%s4 + $0x40] sm:$0xf]
  %v41 = vld [vmem:[%s4 + $0x44] sm:$0xf]
  %v42 = vld [vmem:[%s4 + $0x48] sm:$0x7]
  %v43 = vld [vmem:[%s0] sm:$0xff]
  %v44 = vld [vmem:[%s0 + $0x8] sm:$0xff]
  %v45 = vld [vmem:[%s0 + $0x10] sm:$0xff]
  %v46 = vld [vmem:[%s0 + $0x18] sm:$0xff]
  %v47 = vld [vmem:[%s0 + $0x20] sm:$0xff]
  %v48 = vld [vmem:[%s0 + $0x28] sm:$0xff]
  %v49 = vld [vmem:[%s0 + $0x30] sm:$0xff]
  %v50 = vld [vmem:[%s0 + $0x38] sm:$0xff]
  %v59 = vunpack.c.l.b16 %v43
  %v60 = vunpack.c.h.b16 %v43
  %v61 = vunpack.c.l.b16 %v44
  %v62 = vunpack.c.h.b16 %v44
  %v63 = vunpack.c.l.b16 %v45
  %v64 = vunpack.c.h.b16 %v45
  %v65 = vunpack.c.l.b16 %v46
  %v66 = vunpack.c.h.b16 %v46
  %v67 = vunpack.c.l.b16 %v47
  %v68 = vunpack.c.h.b16 %v47
  %v69 = vunpack.c.l.b16 %v48
  %v70 = vunpack.c.h.b16 %v48
  %v71 = vunpack.c.l.b16 %v49
  %v72 = vunpack.c.h.b16 %v49
  %v73 = vunpack.c.l.b16 %v50
  %v74 = vunpack.c.h.b16 %v50
  %v75 = vpack.c.b16 %v61, %v59
  %v76 = vpack.c.b16 %v62, %v60
  %v77 = vpack.c.b16 %v65, %v63
  %v78 = vpack.c.b16 %v66, %v64
  %v79 = vpack.c.b16 %v69, %v67
  %v80 = vpack.c.b16 %v70, %v68
  %v81 = vpack.c.b16 %v73, %v71
  %v82 = vpack.c.b16 %v74, %v72
  %v106 = vunpack.c.l.b16 %v24
  %v107 = vunpack.c.l.b16 %v25
  %v108 = vunpack.c.l.b16 %v26
  %v109 = vunpack.c.l.b16 %v27
  %v110 = vunpack.c.l.b16 %v28
  %v111 = vunpack.c.l.b16 %v29
  %v112 = vunpack.c.l.b16 %v30
  %v113 = vunpack.c.l.b16 %v31
  %v114 = vunpack.c.l.b16 %v32
  %v115 = vunpack.c.l.b16 %v33
  %v116 = vunpack.c.l.b16 %v34
  %v117 = vunpack.c.l.b16 %v35
  %v118 = vunpack.c.l.b16 %v36
  %v119 = vunpack.c.l.b16 %v37
  %v120 = vunpack.c.l.b16 %v38
  %v121 = vunpack.c.l.b16 %v39
  %v122 = vunpack.c.l.b16 %v40
  %v123 = vunpack.c.l.b16 %v41
  %v124 = vunpack.c.l.b16 %v42
  %v125 = vpack.c.b16 %v107, %v106
  %v126 = vpack.c.b16 %v109, %v108
  %v127 = vpack.c.b16 %v111, %v110
  %v128 = vpack.c.b16 %v113, %v112
  %v129 = vpack.c.b16 %v115, %v114
  %v130 = vpack.c.b16 %v117, %v116
  %v131 = vpack.c.b16 %v119, %v118
  %v132 = vpack.c.b16 %v121, %v120
  %v133 = vpack.c.b16 %v123, %v122
  %v134 = vpack.c.b16 %v124, %v124
  %vm144 = vcmask 179200
  %v146 = vsel %vm144, %v76, 0
  %v149 = vsel %vm144, %v78, 0
  %v152 = vsel %vm144, %v80, 0
  %v155 = vsel %vm144, %v82, 0
  %vm157 = vcmask 1042432
  %v159 = vsel %vm157, %v134, 0
  %161 = vmatprep.subr.bf16.mxu0 0
  %162 = vmatpush1.bf16.msra.mxu0 %v125
  %163 = vmatprep.subr.bf16.mxu0 0
  %164 = vmatpush1.bf16.msra.mxu0 %v126
  %165 = vmatprep.subr.bf16.mxu0 0
  %166 = vmatpush1.bf16.msra.mxu0 %v127
  %167 = vmatprep.subr.bf16.mxu0 0
  %168 = vmatpush1.bf16.msra.mxu0 %v128
  %169 = vmatprep.subr.bf16.mxu0 0
  %170 = vmatpush1.bf16.msra.mxu0 %v129
  %171 = vmatprep.subr.bf16.mxu0 0
  %172 = vmatpush1.bf16.msra.mxu0 %v130
  %173 = vmatprep.subr.bf16.mxu0 0
  %174 = vmatpush1.bf16.msra.mxu0 %v131
  %175 = vmatprep.subr.bf16.mxu0 0
  %176 = vmatpush1.bf16.msra.mxu0 %v132
  %177 = vmatprep.subr.bf16.mxu0 0
  %178 = vmatpush1.bf16.msra.mxu0 %v133
  %179 = vmatprep.subr.bf16.mxu0 0
  %180 = vmatpush1.bf16.msra.mxu0 %v159
  %181 = vmatprep.subr.bf16.mxu0 0
  %182 = vmatpush1.bf16.msra.mxu0 0
  %183 = vmatprep.subr.bf16.mxu0 0
  %184 = vmatpush1.bf16.msra.mxu0 0
  %185 = vmatprep.subr.bf16.mxu0 0
  %186 = vmatpush1.bf16.msra.mxu0 0
  %187 = vmatprep.subr.bf16.mxu0 0
  %188 = vmatpush1.bf16.msra.mxu0 0
  %189 = vmatprep.subr.bf16.mxu0 0
  %190 = vmatpush1.bf16.msra.mxu0 0
  %191 = vmatprep.subr.bf16.mxu0 0
  %192 = vmatpush1.bf16.msra.mxu0 0
  %193 = vmatprep.mubr.bf16.mxu0 %v146
  %194 = vmatmul.mubr.bf16.gmra.mrb[0].mxu0 %v75
  %v195 = vpop.f32.mrb[0].mxu0
  %v196 = vadd.f32 0.0, %v195
  %v197 = vpop.f32.mrb[0].mxu0
  %v198 = vpop.f32.mrb[0].mxu0
  %v199 = vadd.f32 0.0, %v198
  %v200 = vpop.f32.mrb[0].mxu0
  %201 = vmatprep.mubr.bf16.mxu0 %v149
  %202 = vmatmul.mubr.bf16.gmra.mrb[0].mxu0 %v77
  %v203 = vpop.f32.mrb[0].mxu0
  %v204 = vadd.f32 0.0, %v203
  %v205 = vpop.f32.mrb[0].mxu0
  %v206 = vpop.f32.mrb[0].mxu0
  %v207 = vadd.f32 0.0, %v206
  %v208 = vpop.f32.mrb[0].mxu0
  %209 = vmatprep.mubr.bf16.mxu0 %v152
  %210 = vmatmul.mubr.bf16.gmra.mrb[0].mxu0 %v79
  %v211 = vpop.f32.mrb[0].mxu0
  %v212 = vadd.f32 0.0, %v211
  %v213 = vpop.f32.mrb[0].mxu0
  %v214 = vpop.f32.mrb[0].mxu0
  %v215 = vadd.f32 0.0, %v214
  %v216 = vpop.f32.mrb[0].mxu0
  %217 = vmatprep.mubr.bf16.mxu0 %v155
  %218 = vmatmul.mubr.bf16.gmra.mrb[0].mxu0 %v81
  %v219 = vpop.f32.mrb[0].mxu0
  %v220 = vadd.f32 0.0, %v219
  %v221 = vpop.f32.mrb[0].mxu0
  %v222 = vpop.f32.mrb[0].mxu0
  %v223 = vadd.f32 0.0, %v222
  %v224 = vpop.f32.mrb[0].mxu0
  %225 = vdwg.mxu0
  %v226 = vld [vmem:[%s1] sm:$0xff]
  %v227 = vld [vmem:[%s1 + $0x8] sm:$0xff]
  %v228 = vld [vmem:[%s1 + $0x10] sm:$0xff]
  %v229 = vld [vmem:[%s1 + $0x18] sm:$0xff]
  %v230 = vld [vmem:[%s1 + $0x20] sm:$0xff]
  %v231 = vld [vmem:[%s1 + $0x28] sm:$0xff]
  %v232 = vld [vmem:[%s1 + $0x30] sm:$0xff]
  %v233 = vld [vmem:[%s1 + $0x38] sm:$0xff]
  %v242 = vunpack.c.l.b16 %v226
  %v243 = vunpack.c.h.b16 %v226
  %v244 = vunpack.c.l.b16 %v227
  %v245 = vunpack.c.h.b16 %v227
  %v246 = vunpack.c.l.b16 %v228
  %v247 = vunpack.c.h.b16 %v228
  %v248 = vunpack.c.l.b16 %v229
  %v249 = vunpack.c.h.b16 %v229
  %v250 = vunpack.c.l.b16 %v230
  %v251 = vunpack.c.h.b16 %v230
  %v252 = vunpack.c.l.b16 %v231
  %v253 = vunpack.c.h.b16 %v231
  %v254 = vunpack.c.l.b16 %v232
  %v255 = vunpack.c.h.b16 %v232
  %v256 = vunpack.c.l.b16 %v233
  %v257 = vunpack.c.h.b16 %v233
  %v258 = vpack.c.b16 %v244, %v242
  %v259 = vpack.c.b16 %v245, %v243
  %v260 = vpack.c.b16 %v248, %v246
  %v261 = vpack.c.b16 %v249, %v247
  %v262 = vpack.c.b16 %v252, %v250
  %v263 = vpack.c.b16 %v253, %v251
  %v264 = vpack.c.b16 %v256, %v254
  %v265 = vpack.c.b16 %v257, %v255
  %v271 = vsel %vm144, %v259, 0
  %v274 = vsel %vm144, %v261, 0
  %v277 = vsel %vm144, %v263, 0
  %v280 = vsel %vm144, %v265, 0
  %282 = vmatprep.subr.bf16.mxu0 0
  %283 = vmatpush1.bf16.msra.mxu0 %v125
  %284 = vmatprep.subr.bf16.mxu0 0
  %285 = vmatpush1.bf16.msra.mxu0 %v126
  %286 = vmatprep.subr.bf16.mxu0 0
  %287 = vmatpush1.bf16.msra.mxu0 %v127
  %288 = vmatprep.subr.bf16.mxu0 0
  %289 = vmatpush1.bf16.msra.mxu0 %v128
  %290 = vmatprep.subr.bf16.mxu0 0
  %291 = vmatpush1.bf16.msra.mxu0 %v129
  %292 = vmatprep.subr.bf16.mxu0 0
  %293 = vmatpush1.bf16.msra.mxu0 %v130
  %294 = vmatprep.subr.bf16.mxu0 0
  %295 = vmatpush1.bf16.msra.mxu0 %v131
  %296 = vmatprep.subr.bf16.mxu0 0
  %297 = vmatpush1.bf16.msra.mxu0 %v132
  %298 = vmatprep.subr.bf16.mxu0 0
  %299 = vmatpush1.bf16.msra.mxu0 %v133
  %300 = vmatprep.subr.bf16.mxu0 0
  %301 = vmatpush1.bf16.msra.mxu0 %v159
  %302 = vmatprep.subr.bf16.mxu0 0
  %303 = vmatpush1.bf16.msra.mxu0 0
  %304 = vmatprep.subr.bf16.mxu0 0
  %305 = vmatpush1.bf16.msra.mxu0 0
  %306 = vmatprep.subr.bf16.mxu0 0
  %307 = vmatpush1.bf16.msra.mxu0 0
  %308 = vmatprep.subr.bf16.mxu0 0
  %309 = vmatpush1.bf16.msra.mxu0 0
  %310 = vmatprep.subr.bf16.mxu0 0
  %311 = vmatpush1.bf16.msra.mxu0 0
  %312 = vmatprep.subr.bf16.mxu0 0
  %313 = vmatpush1.bf16.msra.mxu0 0
  %314 = vmatprep.mubr.bf16.mxu0 %v271
  %315 = vmatmul.mubr.bf16.gmra.mrb[0].mxu0 %v258
  %v316 = vpop.f32.mrb[0].mxu0
  %v317 = vadd.f32 0.0, %v316
  %v318 = vpop.f32.mrb[0].mxu0
  %v319 = vpop.f32.mrb[0].mxu0
  %v320 = vadd.f32 0.0, %v319
  %v321 = vpop.f32.mrb[0].mxu0
  %322 = vmatprep.mubr.bf16.mxu0 %v274
  %323 = vmatmul.mubr.bf16.gmra.mrb[0].mxu0 %v260
  %v324 = vpop.f32.mrb[0].mxu0
  %v325 = vadd.f32 0.0, %v324
  %v326 = vpop.f32.mrb[0].mxu0
  %v327 = vpop.f32.mrb[0].mxu0
  %v328 = vadd.f32 0.0, %v327
  %v329 = vpop.f32.mrb[0].mxu0
  %330 = vmatprep.mubr.bf16.mxu0 %v277
  %331 = vmatmul.mubr.bf16.gmra.mrb[0].mxu0 %v262
  %v332 = vpop.f32.mrb[0].mxu0
  %v333 = vadd.f32 0.0, %v332
  %v334 = vpop.f32.mrb[0].mxu0
  %v335 = vpop.f32.mrb[0].mxu0
  %v336 = vadd.f32 0.0, %v335
  %v337 = vpop.f32.mrb[0].mxu0
  %338 = vmatprep.mubr.bf16.mxu0 %v280
  %339 = vmatmul.mubr.bf16.gmra.mrb[0].mxu0 %v264
  %v340 = vpop.f32.mrb[0].mxu0
  %v341 = vadd.f32 0.0, %v340
  %v342 = vpop.f32.mrb[0].mxu0
  %v343 = vpop.f32.mrb[0].mxu0
  %v344 = vadd.f32 0.0, %v343
  %v345 = vpop.f32.mrb[0].mxu0
  %346 = vdwg.mxu0
  %v347 = vld [vmem:[%s2] sm:$0xff]
  %v348 = vld [vmem:[%s2 + $0x8] sm:$0xff]
  %v349 = vld [vmem:[%s2 + $0x10] sm:$0xff]
  %v350 = vld [vmem:[%s2 + $0x18] sm:$0xff]
  %v351 = vld [vmem:[%s2 + $0x20] sm:$0xff]
  %v352 = vld [vmem:[%s2 + $0x28] sm:$0xff]
  %v353 = vld [vmem:[%s2 + $0x30] sm:$0xff]
  %v354 = vld [vmem:[%s2 + $0x38] sm:$0xff]
  %v363 = vunpack.c.l.b16 %v347
  %v364 = vunpack.c.h.b16 %v347
  %v365 = vunpack.c.l.b16 %v348
  %v366 = vunpack.c.h.b16 %v348
  %v367 = vunpack.c.l.b16 %v349
  %v368 = vunpack.c.h.b16 %v349
  %v369 = vunpack.c.l.b16 %v350
  %v370 = vunpack.c.h.b16 %v350
  %v371 = vunpack.c.l.b16 %v351
  %v372 = vunpack.c.h.b16 %v351
  %v373 = vunpack.c.l.b16 %v352
  %v374 = vunpack.c.h.b16 %v352
  %v375 = vunpack.c.l.b16 %v353
  %v376 = vunpack.c.h.b16 %v353
  %v377 = vunpack.c.l.b16 %v354
  %v378 = vunpack.c.h.b16 %v354
  %v379 = vpack.c.b16 %v365, %v363
  %v380 = vpack.c.b16 %v366, %v364
  %v381 = vpack.c.b16 %v369, %v367
  %v382 = vpack.c.b16 %v370, %v368
  %v383 = vpack.c.b16 %v373, %v371
  %v384 = vpack.c.b16 %v374, %v372
  %v385 = vpack.c.b16 %v377, %v375
  %v386 = vpack.c.b16 %v378, %v376
  %v392 = vsel %vm144, %v380, 0
  %v395 = vsel %vm144, %v382, 0
  %v398 = vsel %vm144, %v384, 0
  %v401 = vsel %vm144, %v386, 0
  %403 = vmatprep.subr.bf16.mxu0 0
  %404 = vmatpush1.bf16.msra.mxu0 %v125
  %405 = vmatprep.subr.bf16.mxu0 0
  %406 = vmatpush1.bf16.msra.mxu0 %v126
  %407 = vmatprep.subr.bf16.mxu0 0
  %408 = vmatpush1.bf16.msra.mxu0 %v127
  %409 = vmatprep.subr.bf16.mxu0 0
  %410 = vmatpush1.bf16.msra.mxu0 %v128
  %411 = vmatprep.subr.bf16.mxu0 0
  %412 = vmatpush1.bf16.msra.mxu0 %v129
  %413 = vmatprep.subr.bf16.mxu0 0
  %414 = vmatpush1.bf16.msra.mxu0 %v130
  %415 = vmatprep.subr.bf16.mxu0 0
  %416 = vmatpush1.bf16.msra.mxu0 %v131
  %417 = vmatprep.subr.bf16.mxu0 0
  %418 = vmatpush1.bf16.msra.mxu0 %v132
  %419 = vmatprep.subr.bf16.mxu0 0
  %420 = vmatpush1.bf16.msra.mxu0 %v133
  %421 = vmatprep.subr.bf16.mxu0 0
  %422 = vmatpush1.bf16.msra.mxu0 %v159
  %423 = vmatprep.subr.bf16.mxu0 0
  %424 = vmatpush1.bf16.msra.mxu0 0
  %425 = vmatprep.subr.bf16.mxu0 0
  %426 = vmatpush1.bf16.msra.mxu0 0
  %427 = vmatprep.subr.bf16.mxu0 0
  %428 = vmatpush1.bf16.msra.mxu0 0
  %429 = vmatprep.subr.bf16.mxu0 0
  %430 = vmatpush1.bf16.msra.mxu0 0
  %431 = vmatprep.subr.bf16.mxu0 0
  %432 = vmatpush1.bf16.msra.mxu0 0
  %433 = vmatprep.subr.bf16.mxu0 0
  %434 = vmatpush1.bf16.msra.mxu0 0
  %435 = vmatprep.mubr.bf16.mxu0 %v392
  %436 = vmatmul.mubr.bf16.gmra.mrb[0].mxu0 %v379
  %v437 = vpop.f32.mrb[0].mxu0
  %v438 = vadd.f32 0.0, %v437
  %v439 = vpop.f32.mrb[0].mxu0
  %v440 = vpop.f32.mrb[0].mxu0
  %v441 = vadd.f32 0.0, %v440
  %v442 = vpop.f32.mrb[0].mxu0
  %443 = vmatprep.mubr.bf16.mxu0 %v395
  %444 = vmatmul.mubr.bf16.gmra.mrb[0].mxu0 %v381
  %v445 = vpop.f32.mrb[0].mxu0
  %v446 = vadd.f32 0.0, %v445
  %v447 = vpop.f32.mrb[0].mxu0
  %v448 = vpop.f32.mrb[0].mxu0
  %v449 = vadd.f32 0.0, %v448
  %v450 = vpop.f32.mrb[0].mxu0
  %451 = vmatprep.mubr.bf16.mxu0 %v398
  %452 = vmatmul.mubr.bf16.gmra.mrb[0].mxu0 %v383
  %v453 = vpop.f32.mrb[0].mxu0
  %v454 = vadd.f32 0.0, %v453
  %v455 = vpop.f32.mrb[0].mxu0
  %v456 = vpop.f32.mrb[0].mxu0
  %v457 = vadd.f32 0.0, %v456
  %v458 = vpop.f32.mrb[0].mxu0
  %459 = vmatprep.mubr.bf16.mxu0 %v401
  %460 = vmatmul.mubr.bf16.gmra.mrb[0].mxu0 %v385
  %v461 = vpop.f32.mrb[0].mxu0
  %v462 = vadd.f32 0.0, %v461
  %v463 = vpop.f32.mrb[0].mxu0
  %v464 = vpop.f32.mrb[0].mxu0
  %v465 = vadd.f32 0.0, %v464
  %v466 = vpop.f32.mrb[0].mxu0
  %467 = vdwg.mxu0
  %v468 = vld [vmem:[%s3] sm:$0xff]
  %v469 = vld [vmem:[%s3 + $0x8] sm:$0xff]
  %v470 = vld [vmem:[%s3 + $0x10] sm:$0xff]
  %v471 = vld [vmem:[%s3 + $0x18] sm:$0xff]
  %v472 = vld [vmem:[%s3 + $0x20] sm:$0xff]
  %v473 = vld [vmem:[%s3 + $0x28] sm:$0xff]
  %v474 = vld [vmem:[%s3 + $0x30] sm:$0xff]
  %v475 = vld [vmem:[%s3 + $0x38] sm:$0xff]
  %v484 = vunpack.c.l.b16 %v468
  %v485 = vunpack.c.h.b16 %v468
  %v486 = vunpack.c.l.b16 %v469
  %v487 = vunpack.c.h.b16 %v469
  %v488 = vunpack.c.l.b16 %v470
  %v489 = vunpack.c.h.b16 %v470
  %v490 = vunpack.c.l.b16 %v471
  %v491 = vunpack.c.h.b16 %v471
  %v492 = vunpack.c.l.b16 %v472
  %v493 = vunpack.c.h.b16 %v472
  %v494 = vunpack.c.l.b16 %v473
  %v495 = vunpack.c.h.b16 %v473
  %v496 = vunpack.c.l.b16 %v474
  %v497 = vunpack.c.h.b16 %v474
  %v498 = vunpack.c.l.b16 %v475
  %v499 = vunpack.c.h.b16 %v475
  %v500 = vpack.c.b16 %v486, %v484
  %v501 = vpack.c.b16 %v487, %v485
  %v502 = vpack.c.b16 %v490, %v488
  %v503 = vpack.c.b16 %v491, %v489
  %v504 = vpack.c.b16 %v494, %v492
  %v505 = vpack.c.b16 %v495, %v493
  %v506 = vpack.c.b16 %v498, %v496
  %v507 = vpack.c.b16 %v499, %v497
  %v513 = vsel %vm144, %v501, 0
  %v516 = vsel %vm144, %v503, 0
  %v519 = vsel %vm144, %v505, 0
  %v522 = vsel %vm144, %v507, 0
  %524 = vmatprep.subr.bf16.mxu0 0
  %525 = vmatpush1.bf16.msra.mxu0 %v125
  %526 = vmatprep.subr.bf16.mxu0 0
  %527 = vmatpush1.bf16.msra.mxu0 %v126
  %528 = vmatprep.subr.bf16.mxu0 0
  %529 = vmatpush1.bf16.msra.mxu0 %v127
  %530 = vmatprep.subr.bf16.mxu0 0
  %531 = vmatpush1.bf16.msra.mxu0 %v128
  %532 = vmatprep.subr.bf16.mxu0 0
  %533 = vmatpush1.bf16.msra.mxu0 %v129
  %534 = vmatprep.subr.bf16.mxu0 0
  %535 = vmatpush1.bf16.msra.mxu0 %v130
  %536 = vmatprep.subr.bf16.mxu0 0
  %537 = vmatpush1.bf16.msra.mxu0 %v131
  %538 = vmatprep.subr.bf16.mxu0 0
  %539 = vmatpush1.bf16.msra.mxu0 %v132
  %540 = vmatprep.subr.bf16.mxu0 0
  %541 = vmatpush1.bf16.msra.mxu0 %v133
  %542 = vmatprep.subr.bf16.mxu0 0
  %543 = vmatpush1.bf16.msra.mxu0 %v159
  %544 = vmatprep.subr.bf16.mxu0 0
  %545 = vmatpush1.bf16.msra.mxu0 0
  %546 = vmatprep.subr.bf16.mxu0 0
  %547 = vmatpush1.bf16.msra.mxu0 0
  %548 = vmatprep.subr.bf16.mxu0 0
  %549 = vmatpush1.bf16.msra.mxu0 0
  %550 = vmatprep.subr.bf16.mxu0 0
  %551 = vmatpush1.bf16.msra.mxu0 0
  %552 = vmatprep.subr.bf16.mxu0 0
  %553 = vmatpush1.bf16.msra.mxu0 0
  %554 = vmatprep.subr.bf16.mxu0 0
  %555 = vmatpush1.bf16.msra.mxu0 0
  %556 = vmatprep.mubr.bf16.mxu0 %v513
  %557 = vmatmul.mubr.bf16.gmra.mrb[0].mxu0 %v500
  %v558 = vpop.f32.mrb[0].mxu0
  %v559 = vadd.f32 0.0, %v558
  %v560 = vpop.f32.mrb[0].mxu0
  %v561 = vpop.f32.mrb[0].mxu0
  %v562 = vadd.f32 0.0, %v561
  %v563 = vpop.f32.mrb[0].mxu0
  %564 = vmatprep.mubr.bf16.mxu0 %v516
  %565 = vmatmul.mubr.bf16.gmra.mrb[0].mxu0 %v502
  %v566 = vpop.f32.mrb[0].mxu0
  %v567 = vadd.f32 0.0, %v566
  %v568 = vpop.f32.mrb[0].mxu0
  %v569 = vpop.f32.mrb[0].mxu0
  %v570 = vadd.f32 0.0, %v569
  %v571 = vpop.f32.mrb[0].mxu0
  %572 = vmatprep.mubr.bf16.mxu0 %v519
  %573 = vmatmul.mubr.bf16.gmra.mrb[0].mxu0 %v504
  %v574 = vpop.f32.mrb[0].mxu0
  %v575 = vadd.f32 0.0, %v574
  %v576 = vpop.f32.mrb[0].mxu0
  %v577 = vpop.f32.mrb[0].mxu0
  %v578 = vadd.f32 0.0, %v577
  %v579 = vpop.f32.mrb[0].mxu0
  %580 = vmatprep.mubr.bf16.mxu0 %v522
  %581 = vmatmul.mubr.bf16.gmra.mrb[0].mxu0 %v506
  %v582 = vpop.f32.mrb[0].mxu0
  %v583 = vadd.f32 0.0, %v582
  %v584 = vpop.f32.mrb[0].mxu0
  %v585 = vpop.f32.mrb[0].mxu0
  %v586 = vadd.f32 0.0, %v585
  %v587 = vpop.f32.mrb[0].mxu0
  %588 = vdwg.mxu0
  %v589 = vmax.f32 %v196, %v317
  %v590 = vmax.f32 %v199, %v320
  %v591 = vmax.f32 %v204, %v325
  %v592 = vmax.f32 %v207, %v328
  %v593 = vmax.f32 %v212, %v333
  %v594 = vmax.f32 %v215, %v336
  %v595 = vmax.f32 %v220, %v341
  %v596 = vmax.f32 %v223, %v344
  %v597 = vmax.f32 %v438, %v559
  %v598 = vmax.f32 %v441, %v562
  %v599 = vmax.f32 %v446, %v567
  %v600 = vmax.f32 %v449, %v570
  %v601 = vmax.f32 %v454, %v575
  %v602 = vmax.f32 %v457, %v578
  %v603 = vmax.f32 %v462, %v583
  %v604 = vmax.f32 %v465, %v586
  %v605 = vmax.f32 %v589, %v597
  %v606 = vmax.f32 %v590, %v598
  %v607 = vmax.f32 %v591, %v599
  %v608 = vmax.f32 %v592, %v600
  %v609 = vmax.f32 %v593, %v601
  %v610 = vmax.f32 %v594, %v602
  %v611 = vmax.f32 %v595, %v603
  %v612 = vmax.f32 %v596, %v604
  %v613 = vld [vmem:[%s5] sm:$0x1]
  %v615 = vlaneseq
  %v616 = vshrl.u32 %v615, 7
  %v617 = vsub.s32 0, %v616
  %v618 = vrot.slane %v613, %v617
  %v620 = vadd.f32 %v605, %v618
  %v621 = vadd.f32 %v606, %v618
  %v622 = vadd.f32 %v607, %v618
  %v623 = vadd.f32 %v608, %v618
  %v624 = vadd.f32 %v609, %v618
  %v625 = vadd.f32 %v610, %v618
  %v626 = vadd.f32 %v611, %v618
  %v627 = vadd.f32 %v612, %v618
  %v628 = vmax.f32 %v620, 0.0
  %v629 = vmax.f32 %v621, 0.0
  %v630 = vmax.f32 %v622, 0.0
  %v631 = vmax.f32 %v623, 0.0
  %v632 = vmax.f32 %v624, 0.0
  %v633 = vmax.f32 %v625, 0.0
  %v634 = vmax.f32 %v626, 0.0
  %v635 = vmax.f32 %v627, 0.0
  %v636 = vpack.c.bf16 %v629, %v628
  %v637 = vpack.c.bf16 %v631, %v630
  %v638 = vpack.c.bf16 %v633, %v632
  %v639 = vpack.c.bf16 %v635, %v634
  %v644 = vunpack.c.l.b16 %v636
  %v645 = vunpack.c.h.b16 %v636
  %v646 = vunpack.c.l.b16 %v637
  %v647 = vunpack.c.h.b16 %v637
  %v648 = vunpack.c.l.b16 %v638
  %v649 = vunpack.c.h.b16 %v638
  %v650 = vunpack.c.l.b16 %v639
  %v651 = vunpack.c.h.b16 %v639
  %v652 = vpack.c.b16 %v644, %v644
  %v653 = vpack.c.b16 %v645, %v645
  %v654 = vpack.c.b16 %v646, %v646
  %v655 = vpack.c.b16 %v647, %v647
  %v656 = vpack.c.b16 %v648, %v648
  %v657 = vpack.c.b16 %v649, %v649
  %v658 = vpack.c.b16 %v650, %v650
  %v659 = vpack.c.b16 %v651, %v651
  %668 = vst [vmem:[%s6] sm:$0xf] %v652
  %669 = vst [vmem:[%s6 + $0x4] sm:$0xf] %v653
  %670 = vst [vmem:[%s6 + $0x8] sm:$0xf] %v654
  %671 = vst [vmem:[%s6 + $0xc] sm:$0xf] %v655
  %672 = vst [vmem:[%s6 + $0x10] sm:$0xf] %v656
  %673 = vst [vmem:[%s6 + $0x14] sm:$0xf] %v657
  %674 = vst [vmem:[%s6 + $0x18] sm:$0xf] %v658
  %675 = vst [vmem:[%s6 + $0x1c] sm:$0xf] %v659
  // Predicated region
  $region26: #{lenet_forward.4} parent=0 // pred_check
    _
  $region27: #{lenet_forward.4} parent=0 // pred_check_branch
    %677 = sbr.rel (0) target = $region29
  $region28: #{lenet_forward.4} parent=0 // pred_region
    _
  $region29: #{lenet_forward.4} parent=0 // pred_fallthru
    _
  // Predicated region
  $region30: #{lenet_forward.4} parent=0 // pred_check
    _
  $region31: #{lenet_forward.4} parent=0 // pred_check_branch
    %679 = sbr.rel (0) target = $region33
  $region32: #{lenet_forward.4} parent=0 // pred_region
    _
  $region33: #{lenet_forward.4} parent=0 // pred_fallthru
    _

// kernel: lenet_forward.5
$region0: #{lenet_forward.5}
  #allocation0 [shape = 'u32[]', space=smem, size = 0x4, offset = 0x4, fixed_abs, tag = 'smem constant byte address 0x4 - core index']
  #allocation1 [shape = 'u32[144,128]{1,0:T(1,128)}', space=vmem, size = 0x12000, scoped, tag = 'internal scratch']
  %s0 = inlined_call_operand.vmem [shape: bf16[16,3200], index: 0, kind: input, shape index: {}]
  %s1 = inlined_call_operand.vmem [shape: bf16[3200,128], index: 1, kind: input, shape index: {}]
  %s2 = inlined_call_operand.vmem [shape: f32[1,128], index: 2, kind: input, shape index: {}]
  %s3 = inlined_call_operand.vmem [shape: bf16[128,128], index: 3, kind: input, shape index: {}]
  %s4 = inlined_call_operand.vmem [shape: f32[1,128], index: 4, kind: input, shape index: {}]
  %s5 = inlined_call_operand.vmem [shape: bf16[128,128], index: 5, kind: input, shape index: {}]
  %s6 = inlined_call_operand.vmem [shape: f32[1,128], index: 6, kind: input, shape index: {}]
  %s7 = inlined_call_operand.vmem [shape: f32[16,128], index: 7, kind: output, shape index: {}]
  %s8 = sld [smem:[#allocation0]]
  $region38: #{lenet_forward.5} parent=0
    _
  %s10 = ssub.s32 1, %s8
  %s11 = scalar_select 0, %s10, %s8
  // Predicated region
  $region2: #{lenet_forward.5} parent=0 // pred_check
    _
  $region3: #{lenet_forward.5} parent=0 // pred_check_branch
    %13 = sbr.rel (0) target = $region5
  $region4: #{lenet_forward.5} parent=0 // pred_region
    _
  $region5: #{lenet_forward.5} parent=0 // pred_fallthru
    _
  // Predicated region
  $region6: #{lenet_forward.5} parent=0 // pred_check
    _
  $region7: #{lenet_forward.5} parent=0 // pred_check_branch
    %15 = sbr.rel (0) target = $region9
  $region8: #{lenet_forward.5} parent=0 // pred_region
    _
  $region9: #{lenet_forward.5} parent=0 // pred_fallthru
    _
  // Predicated region
  $region10: #{lenet_forward.5} parent=0 // pred_check
    _
  $region11: #{lenet_forward.5} parent=0 // pred_check_branch
    %17 = sbr.rel (0) target = $region13
  $region12: #{lenet_forward.5} parent=0 // pred_region
    _
  $region13: #{lenet_forward.5} parent=0 // pred_fallthru
    _
  // Predicated region
  $region14: #{lenet_forward.5} parent=0 // pred_check
    _
  $region15: #{lenet_forward.5} parent=0 // pred_check_branch
    %19 = sbr.rel (0) target = $region17
  $region16: #{lenet_forward.5} parent=0 // pred_region
    _
  $region17: #{lenet_forward.5} parent=0 // pred_fallthru
    _
  // Predicated region
  $region18: #{lenet_forward.5} parent=0 // pred_check
    _
  $region19: #{lenet_forward.5} parent=0 // pred_check_branch
    %21 = sbr.rel (0) target = $region21
  $region20: #{lenet_forward.5} parent=0 // pred_region
    _
  $region21: #{lenet_forward.5} parent=0 // pred_fallthru
    _
  // Predicated region
  $region22: #{lenet_forward.5} parent=0 // pred_check
    _
  $region23: #{lenet_forward.5} parent=0 // pred_check_branch
    %23 = sbr.rel (0) target = $region25
  $region24: #{lenet_forward.5} parent=0 // pred_region
    _
  $region25: #{lenet_forward.5} parent=0 // pred_fallthru
    _
  // Predicated region
  $region26: #{lenet_forward.5} parent=0 // pred_check
    _
  $region27: #{lenet_forward.5} parent=0 // pred_check_branch
    %25 = sbr.rel (0) target = $region29
  $region28: #{lenet_forward.5} parent=0 // pred_region
    _
  $region29: #{lenet_forward.5} parent=0 // pred_fallthru
    _
  %v27 = vld [vmem:[%s0] sm:$0xff]
  %v28 = vld [vmem:[%s0 + $0x8] sm:$0xff]
  %v29 = vld [vmem:[%s0 + $0x10] sm:$0xff]
  %v30 = vld [vmem:[%s0 + $0x18] sm:$0xff]
  %v31 = vld [vmem:[%s0 + $0x20] sm:$0xff]
  %v32 = vld [vmem:[%s0 + $0x28] sm:$0xff]
  %v33 = vld [vmem:[%s0 + $0x30] sm:$0xff]
  %v34 = vld [vmem:[%s0 + $0x38] sm:$0xff]
  %v35 = vld [vmem:[%s0 + $0x40] sm:$0xff]
  %v36 = vld [vmem:[%s0 + $0x48] sm:$0xff]
  %v37 = vld [vmem:[%s0 + $0x50] sm:$0xff]
  %v38 = vld [vmem:[%s0 + $0x58] sm:$0xff]
  %v39 = vld [vmem:[%s0 + $0x60] sm:$0xf]
  %v40 = vld [vmem:[%s0 + $0x64] sm:$0xff]
  %v41 = vld [vmem:[%s0 + $0x6c] sm:$0xff]
  %v42 = vld [vmem:[%s0 + $0x74] sm:$0xff]
  %v43 = vld [vmem:[%s0 + $0x7c] sm:$0xff]
  %v44 = vld [vmem:[%s0 + $0x84] sm:$0xff]
  %v45 = vld [vmem:[%s0 + $0x8c] sm:$0xff]
  %v46 = vld [vmem:[%s0 + $0x94] sm:$0xff]
  %v47 = vld [vmem:[%s0 + $0x9c] sm:$0xff]
  %v48 = vld [vmem:[%s0 + $0xa4] sm:$0xff]
  %v49 = vld [vmem:[%s0 + $0xac] sm:$0xff]
  %v50 = vld [vmem:[%s0 + $0xb4] sm:$0xff]
  %v51 = vld [vmem:[%s0 + $0xbc] sm:$0xff]
  %v52 = vld [vmem:[%s0 + $0xc4] sm:$0xf]
  %v53 = vld [vmem:[%s1] sm:$0xf]
  %v54 = vld [vmem:[%s1 + $0x4] sm:$0xf]
  %v55 = vld [vmem:[%s1 + $0x8] sm:$0xf]
  %v56 = vld [vmem:[%s1 + $0xc] sm:$0xf]
  %v57 = vld [vmem:[%s1 + $0x10] sm:$0xf]
  %v58 = vld [vmem:[%s1 + $0x14] sm:$0xf]
  %v59 = vld [vmem:[%s1 + $0x18] sm:$0xf]
  %v60 = vld [vmem:[%s1 + $0x1c] sm:$0xf]
  %v61 = vld [vmem:[%s1 + $0x20] sm:$0xf]
  %v62 = vld [vmem:[%s1 + $0x24] sm:$0xf]
  %v63 = vld [vmem:[%s1 + $0x28] sm:$0xf]
  %v64 = vld [vmem:[%s1 + $0x2c] sm:$0xf]
  %v65 = vld [vmem:[%s1 + $0x30] sm:$0xf]
  %v66 = vld [vmem:[%s1 + $0x34] sm:$0xf]
  %v67 = vld [vmem:[%s1 + $0x38] sm:$0xf]
  %v68 = vld [vmem:[%s1 + $0x3c] sm:$0xf]
  %v69 = vld [vmem:[%s1 + $0x40] sm:$0xf]
  %v70 = vld [vmem:[%s1 + $0x44] sm:$0xf]
  %v71 = vld [vmem:[%s1 + $0x48] sm:$0xf]
  %v72 = vld [vmem:[%s1 + $0x4c] sm:$0xf]
  %v73 = vld [vmem:[%s1 + $0x50] sm:$0xf]
  %v74 = vld [vmem:[%s1 + $0x54] sm:$0xf]
  %v75 = vld [vmem:[%s1 + $0x58] sm:$0xf]
  %v76 = vld [vmem:[%s1 + $0x5c] sm:$0xf]
  %v77 = vld [vmem:[%s1 + $0x60] sm:$0xf]
  %v78 = vld [vmem:[%s1 + $0x64] sm:$0xf]
  %v79 = vld [vmem:[%s1 + $0x68] sm:$0xf]
  %v80 = vld [vmem:[%s1 + $0x6c] sm:$0xf]
  %v81 = vld [vmem:[%s1 + $0x70] sm:$0xf]
  %v82 = vld [vmem:[%s1 + $0x74] sm:$0xf]
  %v83 = vld [vmem:[%s1 + $0x78] sm:$0xf]
  %v84 = vld [vmem:[%s1 + $0x7c] sm:$0xf]
  %v85 = vld [vmem:[%s1 + $0x80] sm:$0xf]
  %v86 = vld [vmem:[%s1 + $0x84] sm:$0xf]
  %v87 = vld [vmem:[%s1 + $0x88] sm:$0xf]
  %v88 = vld [vmem:[%s1 + $0x8c] sm:$0xf]
  %v89 = vld [vmem:[%s1 + $0x90] sm:$0xf]
  %v90 = vld [vmem:[%s1 + $0x94] sm:$0xf]
  %v91 = vld [vmem:[%s1 + $0x98] sm:$0xf]
  %v92 = vld [vmem:[%s1 + $0x9c] sm:$0xf]
  %v93 = vld [vmem:[%s1 + $0xa0] sm:$0xf]
  %v94 = vld [vmem:[%s1 + $0xa4] sm:$0xf]
  %v95 = vld [vmem:[%s1 + $0xa8] sm:$0xf]
  %v96 = vld [vmem:[%s1 + $0xac] sm:$0xf]
  %v97 = vld [vmem:[%s1 + $0xb0] sm:$0xf]
  %v98 = vld [vmem:[%s1 + $0xb4] sm:$0xf]
  %v99 = vld [vmem:[%s1 + $0xb8] sm:$0xf]
  %v100 = vld [vmem:[%s1 + $0xbc] sm:$0xf]
  %v101 = vld [vmem:[%s1 + $0xc0] sm:$0xf]
  %v102 = vld [vmem:[%s1 + $0xc4] sm:$0xf]
  %v103 = vld [vmem:[%s1 + $0xc8] sm:$0xf]
  %v104 = vld [vmem:[%s1 + $0xcc] sm:$0xf]
  %v105 = vld [vmem:[%s1 + $0xd0] sm:$0xf]
  %v106 = vld [vmem:[%s1 + $0xd4] sm:$0xf]
  %v107 = vld [vmem:[%s1 + $0xd8] sm:$0xf]
  %v108 = vld [vmem:[%s1 + $0xdc] sm:$0xf]
  %v109 = vld [vmem:[%s1 + $0xe0] sm:$0xf]
  %v110 = vld [vmem:[%s1 + $0xe4] sm:$0xf]
  %v111 = vld [vmem:[%s1 + $0xe8] sm:$0xf]
  %v112 = vld [vmem:[%s1 + $0xec] sm:$0xf]
  %v113 = vld [vmem:[%s1 + $0xf0] sm:$0xf]
  %v114 = vld [vmem:[%s1 + $0xf4] sm:$0xf]
  %v115 = vld [vmem:[%s1 + $0xf8] sm:$0xf]
  %v116 = vld [vmem:[%s1 + $0xfc] sm:$0xf]
  %v117 = vld [vmem:[%s1 + $0x100] sm:$0xf]
  %v118 = vld [vmem:[%s1 + $0x104] sm:$0xf]
  %v119 = vld [vmem:[%s1 + $0x108] sm:$0xf]
  %v120 = vld [vmem:[%s1 + $0x10c] sm:$0xf]
  %v121 = vld [vmem:[%s1 + $0x110] sm:$0xf]
  %v122 = vld [vmem:[%s1 + $0x114] sm:$0xf]
  %v123 = vld [vmem:[%s1 + $0x118] sm:$0xf]
  %v124 = vld [vmem:[%s1 + $0x11c] sm:$0xf]
  %v125 = vld [vmem:[%s1 + $0x120] sm:$0xf]
  %v126 = vld [vmem:[%s1 + $0x124] sm:$0xf]
  %v127 = vld [vmem:[%s1 + $0x128] sm:$0xf]
  %v128 = vld [vmem:[%s1 + $0x12c] sm:$0xf]
  %v129 = vld [vmem:[%s1 + $0x130] sm:$0xf]
  %v130 = vld [vmem:[%s1 + $0x134] sm:$0xf]
  %v131 = vld [vmem:[%s1 + $0x138] sm:$0xf]
  %v132 = vld [vmem:[%s1 + $0x13c] sm:$0xf]
  %v133 = vld [vmem:[%s1 + $0x140] sm:$0xf]
  %v134 = vld [vmem:[%s1 + $0x144] sm:$0xf]
  %v135 = vld [vmem:[%s1 + $0x148] sm:$0xf]
  %v136 = vld [vmem:[%s1 + $0x14c] sm:$0xf]
  %v137 = vld [vmem:[%s1 + $0x150] sm:$0xf]
  %v138 = vld [vmem:[%s1 + $0x154] sm:$0xf]
  %v139 = vld [vmem:[%s1 + $0x158] sm:$0xf]
  %v140 = vld [vmem:[%s1 + $0x15c] sm:$0xf]
  %v141 = vld [vmem:[%s1 + $0x160] sm:$0xf]
  %v142 = vld [vmem:[%s1 + $0x164] sm:$0xf]
  %v143 = vld [vmem:[%s1 + $0x168] sm:$0xf]
  %v144 = vld [vmem:[%s1 + $0x16c] sm:$0xf]
  %v145 = vld [vmem:[%s1 + $0x170] sm:$0xf]
  %v146 = vld [vmem:[%s1 + $0x174] sm:$0xf]
  %v147 = vld [vmem:[%s1 + $0x178] sm:$0xf]
  %v148 = vld [vmem:[%s1 + $0x17c] sm:$0xf]
  %v149 = vld [vmem:[%s1 + $0x180] sm:$0xf]
  %v150 = vld [vmem:[%s1 + $0x184] sm:$0xf]
  %v151 = vld [vmem:[%s1 + $0x188] sm:$0xf]
  %v152 = vld [vmem:[%s1 + $0x18c] sm:$0xf]
  %v153 = vld [vmem:[%s1 + $0x190] sm:$0xf]
  %v154 = vld [vmem:[%s1 + $0x194] sm:$0xf]
  %v155 = vld [vmem:[%s1 + $0x198] sm:$0xf]
  %v156 = vld [vmem:[%s1 + $0x19c] sm:$0xf]
  %v157 = vld [vmem:[%s1 + $0x1a0] sm:$0xf]
  %v158 = vld [vmem:[%s1 + $0x1a4] sm:$0xf]
  %v159 = vld [vmem:[%s1 + $0x1a8] sm:$0xf]
  %v160 = vld [vmem:[%s1 + $0x1ac] sm:$0xf]
  %v161 = vld [vmem:[%s1 + $0x1b0] sm:$0xf]
  %v162 = vld [vmem:[%s1 + $0x1b4] sm:$0xf]
  %v163 = vld [vmem:[%s1 + $0x1b8] sm:$0xf]
  %v164 = vld [vmem:[%s1 + $0x1bc] sm:$0xf]
  %v165 = vld [vmem:[%s1 + $0x1c0] sm:$0xf]
  %v166 = vld [vmem:[%s1 + $0x1c4] sm:$0xf]
  %v167 = vld [vmem:[%s1 + $0x1c8] sm:$0xf]
  %v168 = vld [vmem:[%s1 + $0x1cc] sm:$0xf]
  %v169 = vld [vmem:[%s1 + $0x1d0] sm:$0xf]
  %v170 = vld [vmem:[%s1 + $0x1d4] sm:$0xf]
  %v171 = vld [vmem:[%s1 + $0x1d8] sm:$0xf]
  %v172 = vld [vmem:[%s1 + $0x1dc] sm:$0xf]
  %v173 = vld [vmem:[%s1 + $0x1e0] sm:$0xf]
  %v174 = vld [vmem:[%s1 + $0x1e4] sm:$0xf]
  %v175 = vld [vmem:[%s1 + $0x1e8] sm:$0xf]
  %v176 = vld [vmem:[%s1 + $0x1ec] sm:$0xf]
  %v177 = vld [vmem:[%s1 + $0x1f0] sm:$0xf]
  %v178 = vld [vmem:[%s1 + $0x1f4] sm:$0xf]
  %v179 = vld [vmem:[%s1 + $0x1f8] sm:$0xf]
  %v180 = vld [vmem:[%s1 + $0x1fc] sm:$0xf]
  %v181 = vld [vmem:[%s1 + $0x200] sm:$0xf]
  %v182 = vld [vmem:[%s1 + $0x204] sm:$0xf]
  %v183 = vld [vmem:[%s1 + $0x208] sm:$0xf]
  %v184 = vld [vmem:[%s1 + $0x20c] sm:$0xf]
  %v185 = vld [vmem:[%s1 + $0x210] sm:$0xf]
  %v186 = vld [vmem:[%s1 + $0x214] sm:$0xf]
  %v187 = vld [vmem:[%s1 + $0x218] sm:$0xf]
  %v188 = vld [vmem:[%s1 + $0x21c] sm:$0xf]
  %v189 = vld [vmem:[%s1 + $0x220] sm:$0xf]
  %v190 = vld [vmem:[%s1 + $0x224] sm:$0xf]
  %v191 = vld [vmem:[%s1 + $0x228] sm:$0xf]
  %v192 = vld [vmem:[%s1 + $0x22c] sm:$0xf]
  %v193 = vld [vmem:[%s1 + $0x230] sm:$0xf]
  %v194 = vld [vmem:[%s1 + $0x234] sm:$0xf]
  %v195 = vld [vmem:[%s1 + $0x238] sm:$0xf]
  %v196 = vld [vmem:[%s1 + $0x23c] sm:$0xf]
  %v197 = vld [vmem:[%s1 + $0x240] sm:$0xf]
  %v198 = vld [vmem:[%s1 + $0x244] sm:$0xf]
  %v199 = vld [vmem:[%s1 + $0x248] sm:$0xf]
  %v200 = vld [vmem:[%s1 + $0x24c] sm:$0xf]
  %v201 = vld [vmem:[%s1 + $0x250] sm:$0xf]
  %v202 = vld [vmem:[%s1 + $0x254] sm:$0xf]
  %v203 = vld [vmem:[%s1 + $0x258] sm:$0xf]
  %v204 = vld [vmem:[%s1 + $0x25c] sm:$0xf]
  %v205 = vld [vmem:[%s1 + $0x260] sm:$0xf]
  %v206 = vld [vmem:[%s1 + $0x264] sm:$0xf]
  %v207 = vld [vmem:[%s1 + $0x268] sm:$0xf]
  %v208 = vld [vmem:[%s1 + $0x26c] sm:$0xf]
  %v209 = vld [vmem:[%s1 + $0x270] sm:$0xf]
  %v210 = vld [vmem:[%s1 + $0x274] sm:$0xf]
  %v211 = vld [vmem:[%s1 + $0x278] sm:$0xf]
  %v212 = vld [vmem:[%s1 + $0x27c] sm:$0xf]
  %v213 = vld [vmem:[%s1 + $0x280] sm:$0xf]
  %v214 = vld [vmem:[%s1 + $0x284] sm:$0xf]
  %v215 = vld [vmem:[%s1 + $0x288] sm:$0xf]
  %v216 = vld [vmem:[%s1 + $0x28c] sm:$0xf]
  %v217 = vld [vmem:[%s1 + $0x290] sm:$0xf]
  %v218 = vld [vmem:[%s1 + $0x294] sm:$0xf]
  %v219 = vld [vmem:[%s1 + $0x298] sm:$0xf]
  %v220 = vld [vmem:[%s1 + $0x29c] sm:$0xf]
  %v221 = vld [vmem:[%s1 + $0x2a0] sm:$0xf]
  %v222 = vld [vmem:[%s1 + $0x2a4] sm:$0xf]
  %v223 = vld [vmem:[%s1 + $0x2a8] sm:$0xf]
  %v224 = vld [vmem:[%s1 + $0x2ac] sm:$0xf]
  %v225 = vld [vmem:[%s1 + $0x2b0] sm:$0xf]
  %v226 = vld [vmem:[%s1 + $0x2b4] sm:$0xf]
  %v227 = vld [vmem:[%s1 + $0x2b8] sm:$0xf]
  %v228 = vld [vmem:[%s1 + $0x2bc] sm:$0xf]
  %v229 = vld [vmem:[%s1 + $0x2c0] sm:$0xf]
  %v230 = vld [vmem:[%s1 + $0x2c4] sm:$0xf]
  %v231 = vld [vmem:[%s1 + $0x2c8] sm:$0xf]
  %v232 = vld [vmem:[%s1 + $0x2cc] sm:$0xf]
  %v233 = vld [vmem:[%s1 + $0x2d0] sm:$0xf]
  %v234 = vld [vmem:[%s1 + $0x2d4] sm:$0xf]
  %v235 = vld [vmem:[%s1 + $0x2d8] sm:$0xf]
  %v236 = vld [vmem:[%s1 + $0x2dc] sm:$0xf]
  %v237 = vld [vmem:[%s1 + $0x2e0] sm:$0xf]
  %v238 = vld [vmem:[%s1 + $0x2e4] sm:$0xf]
  %v239 = vld [vmem:[%s1 + $0x2e8] sm:$0xf]
  %v240 = vld [vmem:[%s1 + $0x2ec] sm:$0xf]
  %v241 = vld [vmem:[%s1 + $0x2f0] sm:$0xf]
  %v242 = vld [vmem:[%s1 + $0x2f4] sm:$0xf]
  %v243 = vld [vmem:[%s1 + $0x2f8] sm:$0xf]
  %v244 = vld [vmem:[%s1 + $0x2fc] sm:$0xf]
  %v245 = vld [vmem:[%s1 + $0x300] sm:$0xf]
  %v246 = vld [vmem:[%s1 + $0x304] sm:$0xf]
  %v247 = vld [vmem:[%s1 + $0x308] sm:$0xf]
  %v248 = vld [vmem:[%s1 + $0x30c] sm:$0xf]
  %v249 = vld [vmem:[%s1 + $0x310] sm:$0xf]
  %v250 = vld [vmem:[%s1 + $0x314] sm:$0xf]
  %v251 = vld [vmem:[%s1 + $0x318] sm:$0xf]
  %v252 = vld [vmem:[%s1 + $0x31c] sm:$0xf]
  %v253 = vld [vmem:[%s1 + $0x320] sm:$0xf]
  %v254 = vld [vmem:[%s1 + $0x324] sm:$0xf]
  %v255 = vld [vmem:[%s1 + $0x328] sm:$0xf]
  %v256 = vld [vmem:[%s1 + $0x32c] sm:$0xf]
  %v257 = vld [vmem:[%s1 + $0x330] sm:$0xf]
  %v258 = vld [vmem:[%s1 + $0x334] sm:$0xf]
  %v259 = vld [vmem:[%s1 + $0x338] sm:$0xf]
  %v260 = vld [vmem:[%s1 + $0x33c] sm:$0xf]
  %v261 = vld [vmem:[%s1 + $0x340] sm:$0xf]
  %v262 = vld [vmem:[%s1 + $0x344] sm:$0xf]
  %v263 = vld [vmem:[%s1 + $0x348] sm:$0xf]
  %v264 = vld [vmem:[%s1 + $0x34c] sm:$0xf]
  %v265 = vld [vmem:[%s1 + $0x350] sm:$0xf]
  %v266 = vld [vmem:[%s1 + $0x354] sm:$0xf]
  %v267 = vld [vmem:[%s1 + $0x358] sm:$0xf]
  %v268 = vld [vmem:[%s1 + $0x35c] sm:$0xf]
  %v269 = vld [vmem:[%s1 + $0x360] sm:$0xf]
  %v270 = vld [vmem:[%s1 + $0x364] sm:$0xf]
  %v271 = vld [vmem:[%s1 + $0x368] sm:$0xf]
  %v272 = vld [vmem:[%s1 + $0x36c] sm:$0xf]
  %v273 = vld [vmem:[%s1 + $0x370] sm:$0xf]
  %v274 = vld [vmem:[%s1 + $0x374] sm:$0xf]
  %v275 = vld [vmem:[%s1 + $0x378] sm:$0xf]
  %v276 = vld [vmem:[%s1 + $0x37c] sm:$0xf]
  %v277 = vld [vmem:[%s1 + $0x380] sm:$0xf]
  %v278 = vld [vmem:[%s1 + $0x384] sm:$0xf]
  %v279 = vld [vmem:[%s1 + $0x388] sm:$0xf]
  %v280 = vld [vmem:[%s1 + $0x38c] sm:$0xf]
  %v281 = vld [vmem:[%s1 + $0x390] sm:$0xf]
  %v282 = vld [vmem:[%s1 + $0x394] sm:$0xf]
  %v283 = vld [vmem:[%s1 + $0x398] sm:$0xf]
  %v284 = vld [vmem:[%s1 + $0x39c] sm:$0xf]
  %v285 = vld [vmem:[%s1 + $0x3a0] sm:$0xf]
  %v286 = vld [vmem:[%s1 + $0x3a4] sm:$0xf]
  %v287 = vld [vmem:[%s1 + $0x3a8] sm:$0xf]
  %v288 = vld [vmem:[%s1 + $0x3ac] sm:$0xf]
  %v289 = vld [vmem:[%s1 + $0x3b0] sm:$0xf]
  %v290 = vld [vmem:[%s1 + $0x3b4] sm:$0xf]
  %v291 = vld [vmem:[%s1 + $0x3b8] sm:$0xf]
  %v292 = vld [vmem:[%s1 + $0x3bc] sm:$0xf]
  %v293 = vld [vmem:[%s1 + $0x3c0] sm:$0xf]
  %v294 = vld [vmem:[%s1 + $0x3c4] sm:$0xf]
  %v295 = vld [vmem:[%s1 + $0x3c8] sm:$0xf]
  %v296 = vld [vmem:[%s1 + $0x3cc] sm:$0xf]
  %v297 = vld [vmem:[%s1 + $0x3d0] sm:$0xf]
  %v298 = vld [vmem:[%s1 + $0x3d4] sm:$0xf]
  %v299 = vld [vmem:[%s1 + $0x3d8] sm:$0xf]
  %v300 = vld [vmem:[%s1 + $0x3dc] sm:$0xf]
  %v301 = vld [vmem:[%s1 + $0x3e0] sm:$0xf]
  %v302 = vld [vmem:[%s1 + $0x3e4] sm:$0xf]
  %v303 = vld [vmem:[%s1 + $0x3e8] sm:$0xf]
  %v304 = vld [vmem:[%s1 + $0x3ec] sm:$0xf]
  %v305 = vld [vmem:[%s1 + $0x3f0] sm:$0xf]
  %v306 = vld [vmem:[%s1 + $0x3f4] sm:$0xf]
  %v307 = vld [vmem:[%s1 + $0x3f8] sm:$0xf]
  %v308 = vld [vmem:[%s1 + $0x3fc] sm:$0xf]
  %v309 = vld [vmem:[%s1 + $0x400] sm:$0xf]
  %v310 = vld [vmem:[%s1 + $0x404] sm:$0xf]
  %v311 = vld [vmem:[%s1 + $0x408] sm:$0xf]
  %v312 = vld [vmem:[%s1 + $0x40c] sm:$0xf]
  %v313 = vld [vmem:[%s1 + $0x410] sm:$0xf]
  %v314 = vld [vmem:[%s1 + $0x414] sm:$0xf]
  %v315 = vld [vmem:[%s1 + $0x418] sm:$0xf]
  %v316 = vld [vmem:[%s1 + $0x41c] sm:$0xf]
  %v317 = vld [vmem:[%s1 + $0x420] sm:$0xf]
  %v318 = vld [vmem:[%s1 + $0x424] sm:$0xf]
  %v319 = vld [vmem:[%s1 + $0x428] sm:$0xf]
  %v320 = vld [vmem:[%s1 + $0x42c] sm:$0xf]
  %v321 = vld [vmem:[%s1 + $0x430] sm:$0xf]
  %v322 = vld [vmem:[%s1 + $0x434] sm:$0xf]
  %v323 = vld [vmem:[%s1 + $0x438] sm:$0xf]
  %v324 = vld [vmem:[%s1 + $0x43c] sm:$0xf]
  %v325 = vld [vmem:[%s1 + $0x440] sm:$0xf]
  %v326 = vld [vmem:[%s1 + $0x444] sm:$0xf]
  %v327 = vld [vmem:[%s1 + $0x448] sm:$0xf]
  %v328 = vld [vmem:[%s1 + $0x44c] sm:$0xf]
  %v329 = vld [vmem:[%s1 + $0x450] sm:$0xf]
  %v330 = vld [vmem:[%s1 + $0x454] sm:$0xf]
  %v331 = vld [vmem:[%s1 + $0x458] sm:$0xf]
  %v332 = vld [vmem:[%s1 + $0x45c] sm:$0xf]
  %v333 = vld [vmem:[%s1 + $0x460] sm:$0xf]
  %v334 = vld [vmem:[%s1 + $0x464] sm:$0xf]
  %v335 = vld [vmem:[%s1 + $0x468] sm:$0xf]
  %v336 = vld [vmem:[%s1 + $0x46c] sm:$0xf]
  %v337 = vld [vmem:[%s1 + $0x470] sm:$0xf]
  %v338 = vld [vmem:[%s1 + $0x474] sm:$0xf]
  %v339 = vld [vmem:[%s1 + $0x478] sm:$0xf]
  %v340 = vld [vmem:[%s1 + $0x47c] sm:$0xf]
  %v341 = vld [vmem:[%s1 + $0x480] sm:$0xf]
  %v342 = vld [vmem:[%s1 + $0x484] sm:$0xf]
  %v343 = vld [vmem:[%s1 + $0x488] sm:$0xf]
  %v344 = vld [vmem:[%s1 + $0x48c] sm:$0xf]
  %v345 = vld [vmem:[%s1 + $0x490] sm:$0xf]
  %v346 = vld [vmem:[%s1 + $0x494] sm:$0xf]
  %v347 = vld [vmem:[%s1 + $0x498] sm:$0xf]
  %v348 = vld [vmem:[%s1 + $0x49c] sm:$0xf]
  %v349 = vld [vmem:[%s1 + $0x4a0] sm:$0xf]
  %v350 = vld [vmem:[%s1 + $0x4a4] sm:$0xf]
  %v351 = vld [vmem:[%s1 + $0x4a8] sm:$0xf]
  %v352 = vld [vmem:[%s1 + $0x4ac] sm:$0xf]
  %v353 = vld [vmem:[%s1 + $0x4b0] sm:$0xf]
  %v354 = vld [vmem:[%s1 + $0x4b4] sm:$0xf]
  %v355 = vld [vmem:[%s1 + $0x4b8] sm:$0xf]
  %v356 = vld [vmem:[%s1 + $0x4bc] sm:$0xf]
  %v357 = vld [vmem:[%s1 + $0x4c0] sm:$0xf]
  %v358 = vld [vmem:[%s1 + $0x4c4] sm:$0xf]
  %v359 = vld [vmem:[%s1 + $0x4c8] sm:$0xf]
  %v360 = vld [vmem:[%s1 + $0x4cc] sm:$0xf]
  %v361 = vld [vmem:[%s1 + $0x4d0] sm:$0xf]
  %v362 = vld [vmem:[%s1 + $0x4d4] sm:$0xf]
  %v363 = vld [vmem:[%s1 + $0x4d8] sm:$0xf]
  %v364 = vld [vmem:[%s1 + $0x4dc] sm:$0xf]
  %v365 = vld [vmem:[%s1 + $0x4e0] sm:$0xf]
  %v366 = vld [vmem:[%s1 + $0x4e4] sm:$0xf]
  %v367 = vld [vmem:[%s1 + $0x4e8] sm:$0xf]
  %v368 = vld [vmem:[%s1 + $0x4ec] sm:$0xf]
  %v369 = vld [vmem:[%s1 + $0x4f0] sm:$0xf]
  %v370 = vld [vmem:[%s1 + $0x4f4] sm:$0xf]
  %v371 = vld [vmem:[%s1 + $0x4f8] sm:$0xf]
  %v372 = vld [vmem:[%s1 + $0x4fc] sm:$0xf]
  %v373 = vld [vmem:[%s1 + $0x500] sm:$0xf]
  %v374 = vld [vmem:[%s1 + $0x504] sm:$0xf]
  %v375 = vld [vmem:[%s1 + $0x508] sm:$0xf]
  %v376 = vld [vmem:[%s1 + $0x50c] sm:$0xf]
  %v377 = vld [vmem:[%s1 + $0x510] sm:$0xf]
  %v378 = vld [vmem:[%s1 + $0x514] sm:$0xf]
  %v379 = vld [vmem:[%s1 + $0x518] sm:$0xf]
  %v380 = vld [vmem:[%s1 + $0x51c] sm:$0xf]
  %v381 = vld [vmem:[%s1 + $0x520] sm:$0xf]
  %v382 = vld [vmem:[%s1 + $0x524] sm:$0xf]
  %v383 = vld [vmem:[%s1 + $0x528] sm:$0xf]
  %v384 = vld [vmem:[%s1 + $0x52c] sm:$0xf]
  %v385 = vld [vmem:[%s1 + $0x530] sm:$0xf]
  %v386 = vld [vmem:[%s1 + $0x534] sm:$0xf]
  %v387 = vld [vmem:[%s1 + $0x538] sm:$0xf]
  %v388 = vld [vmem:[%s1 + $0x53c] sm:$0xf]
  %v389 = vld [vmem:[%s1 + $0x540] sm:$0xf]
  %v390 = vld [vmem:[%s1 + $0x544] sm:$0xf]
  %v391 = vld [vmem:[%s1 + $0x548] sm:$0xf]
  %v392 = vld [vmem:[%s1 + $0x54c] sm:$0xf]
  %v393 = vld [vmem:[%s1 + $0x550] sm:$0xf]
  %v394 = vld [vmem:[%s1 + $0x554] sm:$0xf]
  %v395 = vld [vmem:[%s1 + $0x558] sm:$0xf]
  %v396 = vld [vmem:[%s1 + $0x55c] sm:$0xf]
  %v397 = vld [vmem:[%s1 + $0x560] sm:$0xf]
  %v398 = vld [vmem:[%s1 + $0x564] sm:$0xf]
  %v399 = vld [vmem:[%s1 + $0x568] sm:$0xf]
  %v400 = vld [vmem:[%s1 + $0x56c] sm:$0xf]
  %v401 = vld [vmem:[%s1 + $0x570] sm:$0xf]
  %v402 = vld [vmem:[%s1 + $0x574] sm:$0xf]
  %v403 = vld [vmem:[%s1 + $0x578] sm:$0xf]
  %v404 = vld [vmem:[%s1 + $0x57c] sm:$0xf]
  %v405 = vld [vmem:[%s1 + $0x580] sm:$0xf]
  %v406 = vld [vmem:[%s1 + $0x584] sm:$0xf]
  %v407 = vld [vmem:[%s1 + $0x588] sm:$0xf]
  %v408 = vld [vmem:[%s1 + $0x58c] sm:$0xf]
  %v409 = vld [vmem:[%s1 + $0x590] sm:$0xf]
  %v410 = vld [vmem:[%s1 + $0x594] sm:$0xf]
  %v411 = vld [vmem:[%s1 + $0x598] sm:$0xf]
  %v412 = vld [vmem:[%s1 + $0x59c] sm:$0xf]
  %v413 = vld [vmem:[%s1 + $0x5a0] sm:$0xf]
  %v414 = vld [vmem:[%s1 + $0x5a4] sm:$0xf]
  %v415 = vld [vmem:[%s1 + $0x5a8] sm:$0xf]
  %v416 = vld [vmem:[%s1 + $0x5ac] sm:$0xf]
  %v417 = vld [vmem:[%s1 + $0x5b0] sm:$0xf]
  %v418 = vld [vmem:[%s1 + $0x5b4] sm:$0xf]
  %v419 = vld [vmem:[%s1 + $0x5b8] sm:$0xf]
  %v420 = vld [vmem:[%s1 + $0x5bc] sm:$0xf]
  %v421 = vld [vmem:[%s1 + $0x5c0] sm:$0xf]
  %v422 = vld [vmem:[%s1 + $0x5c4] sm:$0xf]
  %v423 = vld [vmem:[%s1 + $0x5c8] sm:$0xf]
  %v424 = vld [vmem:[%s1 + $0x5cc] sm:$0xf]
  %v425 = vld [vmem:[%s1 + $0x5d0] sm:$0xf]
  %v426 = vld [vmem:[%s1 + $0x5d4] sm:$0xf]
  %v427 = vld [vmem:[%s1 + $0x5d8] sm:$0xf]
  %v428 = vld [vmem:[%s1 + $0x5dc] sm:$0xf]
  %v429 = vld [vmem:[%s1 + $0x5e0] sm:$0xf]
  %v430 = vld [vmem:[%s1 + $0x5e4] sm:$0xf]
  %v431 = vld [vmem:[%s1 + $0x5e8] sm:$0xf]
  %v432 = vld [vmem:[%s1 + $0x5ec] sm:$0xf]
  %v433 = vld [vmem:[%s1 + $0x5f0] sm:$0xf]
  %v434 = vld [vmem:[%s1 + $0x5f4] sm:$0xf]
  %v435 = vld [vmem:[%s1 + $0x5f8] sm:$0xf]
  %v436 = vld [vmem:[%s1 + $0x5fc] sm:$0xf]
  %v437 = vld [vmem:[%s1 + $0x600] sm:$0xf]
  %v438 = vld [vmem:[%s1 + $0x604] sm:$0xf]
  %v439 = vld [vmem:[%s1 + $0x608] sm:$0xf]
  %v440 = vld [vmem:[%s1 + $0x60c] sm:$0xf]
  %v441 = vld [vmem:[%s1 + $0x610] sm:$0xf]
  %v442 = vld [vmem:[%s1 + $0x614] sm:$0xf]
  %v443 = vld [vmem:[%s1 + $0x618] sm:$0xf]
  %v444 = vld [vmem:[%s1 + $0x61c] sm:$0xf]
  %v445 = vld [vmem:[%s1 + $0x620] sm:$0xf]
  %v446 = vld [vmem:[%s1 + $0x624] sm:$0xf]
  %v447 = vld [vmem:[%s1 + $0x628] sm:$0xf]
  %v448 = vld [vmem:[%s1 + $0x62c] sm:$0xf]
  %v449 = vld [vmem:[%s1 + $0x630] sm:$0xf]
  %v450 = vld [vmem:[%s1 + $0x634] sm:$0xf]
  %v451 = vld [vmem:[%s1 + $0x638] sm:$0xf]
  %v452 = vld [vmem:[%s1 + $0x63c] sm:$0xf]
  %v453 = vld [vmem:[%s2] sm:$0x1]
  %v455 = vlaneseq
  %v456 = vshrl.u32 %v455, 7
  %v457 = vsub.s32 0, %v456
  %v458 = vrot.slane %v453, %v457
  %v486 = vunpack.c.l.b16 %v27
  %v487 = vunpack.c.h.b16 %v27
  %v488 = vunpack.c.l.b16 %v28
  %v489 = vunpack.c.h.b16 %v28
  %v490 = vunpack.c.l.b16 %v29
  %v491 = vunpack.c.h.b16 %v29
  %v492 = vunpack.c.l.b16 %v30
  %v493 = vunpack.c.h.b16 %v30
  %v494 = vunpack.c.l.b16 %v31
  %v495 = vunpack.c.h.b16 %v31
  %v496 = vunpack.c.l.b16 %v32
  %v497 = vunpack.c.h.b16 %v32
  %v498 = vunpack.c.l.b16 %v33
  %v499 = vunpack.c.h.b16 %v33
  %v500 = vunpack.c.l.b16 %v34
  %v501 = vunpack.c.h.b16 %v34
  %v502 = vunpack.c.l.b16 %v35
  %v503 = vunpack.c.h.b16 %v35
  %v504 = vunpack.c.l.b16 %v36
  %v505 = vunpack.c.h.b16 %v36
  %v506 = vunpack.c.l.b16 %v37
  %v507 = vunpack.c.h.b16 %v37
  %v508 = vunpack.c.l.b16 %v38
  %v509 = vunpack.c.h.b16 %v38
  %v510 = vunpack.c.l.b16 %v39
  %v511 = vunpack.c.l.b16 %v40
  %v512 = vunpack.c.h.b16 %v40
  %v513 = vunpack.c.l.b16 %v41
  %v514 = vunpack.c.h.b16 %v41
  %v515 = vunpack.c.l.b16 %v42
  %v516 = vunpack.c.h.b16 %v42
  %v517 = vunpack.c.l.b16 %v43
  %v518 = vunpack.c.h.b16 %v43
  %v519 = vunpack.c.l.b16 %v44
  %v520 = vunpack.c.h.b16 %v44
  %v521 = vunpack.c.l.b16 %v45
  %v522 = vunpack.c.h.b16 %v45
  %v523 = vunpack.c.l.b16 %v46
  %v524 = vunpack.c.h.b16 %v46
  %v525 = vunpack.c.l.b16 %v47
  %v526 = vunpack.c.h.b16 %v47
  %v527 = vunpack.c.l.b16 %v48
  %v528 = vunpack.c.h.b16 %v48
  %v529 = vunpack.c.l.b16 %v49
  %v530 = vunpack.c.h.b16 %v49
  %v531 = vunpack.c.l.b16 %v50
  %v532 = vunpack.c.h.b16 %v50
  %v533 = vunpack.c.l.b16 %v51
  %v534 = vunpack.c.h.b16 %v51
  %v535 = vunpack.c.l.b16 %v52
  %v536 = vpack.c.b16 %v511, %v486
  %v537 = vpack.c.b16 %v512, %v487
  %v538 = vpack.c.b16 %v513, %v488
  %v539 = vpack.c.b16 %v514, %v489
  %v540 = vpack.c.b16 %v515, %v490
  %v541 = vpack.c.b16 %v516, %v491
  %v542 = vpack.c.b16 %v517, %v492
  %v543 = vpack.c.b16 %v518, %v493
  %v544 = vpack.c.b16 %v519, %v494
  %v545 = vpack.c.b16 %v520, %v495
  %v546 = vpack.c.b16 %v521, %v496
  %v547 = vpack.c.b16 %v522, %v497
  %v548 = vpack.c.b16 %v523, %v498
  %v549 = vpack.c.b16 %v524, %v499
  %v550 = vpack.c.b16 %v525, %v500
  %v551 = vpack.c.b16 %v526, %v501
  %v552 = vpack.c.b16 %v527, %v502
  %v553 = vpack.c.b16 %v528, %v503
  %v554 = vpack.c.b16 %v529, %v504
  %v555 = vpack.c.b16 %v530, %v505
  %v556 = vpack.c.b16 %v531, %v506
  %v557 = vpack.c.b16 %v532, %v507
  %v558 = vpack.c.b16 %v533, %v508
  %v559 = vpack.c.b16 %v534, %v509
  %v560 = vpack.c.b16 %v535, %v510
  %v986 = vunpack.c.l.b16 %v53
  %v987 = vunpack.c.l.b16 %v54
  %v988 = vunpack.c.l.b16 %v55
  %v989 = vunpack.c.l.b16 %v56
  %v990 = vunpack.c.l.b16 %v57
  %v991 = vunpack.c.l.b16 %v58
  %v992 = vunpack.c.l.b16 %v59
  %v993 = vunpack.c.l.b16 %v60
  %v994 = vunpack.c.l.b16 %v61
  %v995 = vunpack.c.l.b16 %v62
  %v996 = vunpack.c.l.b16 %v63
  %v997 = vunpack.c.l.b16 %v64
  %v998 = vunpack.c.l.b16 %v65
  %v999 = vunpack.c.l.b16 %v66
  %v1000 = vunpack.c.l.b16 %v67
  %v1001 = vunpack.c.l.b16 %v68
  %v1002 = vunpack.c.l.b16 %v69
  %v1003 = vunpack.c.l.b16 %v70
  %v1004 = vunpack.c.l.b16 %v71
  %v1005 = vunpack.c.l.b16 %v72
  %v1006 = vunpack.c.l.b16 %v73
  %v1007 = vunpack.c.l.b16 %v74
  %v1008 = vunpack.c.l.b16 %v75
  %v1009 = vunpack.c.l.b16 %v76
  %v1010 = vunpack.c.l.b16 %v77
  %v1011 = vunpack.c.l.b16 %v78
  %v1012 = vunpack.c.l.b16 %v79
  %v1013 = vunpack.c.l.b16 %v80
  %v1014 = vunpack.c.l.b16 %v81
  %v1015 = vunpack.c.l.b16 %v82
  %v1016 = vunpack.c.l.b16 %v83
  %v1017 = vunpack.c.l.b16 %v84
  %v1018 = vunpack.c.l.b16 %v85
  %v1019 = vunpack.c.l.b16 %v86
  %v1020 = vunpack.c.l.b16 %v87
  %v1021 = vunpack.c.l.b16 %v88
  %v1022 = vunpack.c.l.b16 %v89
  %v1023 = vunpack.c.l.b16 %v90
  %v1024 = vunpack.c.l.b16 %v91
  %v1025 = vunpack.c.l.b16 %v92
  %v1026 = vunpack.c.l.b16 %v93
  %v1027 = vunpack.c.l.b16 %v94
  %v1028 = vunpack.c.l.b16 %v95
  %v1029 = vunpack.c.l.b16 %v96
  %v1030 = vunpack.c.l.b16 %v97
  %v1031 = vunpack.c.l.b16 %v98
  %v1032 = vunpack.c.l.b16 %v99
  %v1033 = vunpack.c.l.b16 %v100
  %v1034 = vunpack.c.l.b16 %v101
  %v1035 = vunpack.c.l.b16 %v102
  %v1036 = vunpack.c.l.b16 %v103
  %v1037 = vunpack.c.l.b16 %v104
  %v1038 = vunpack.c.l.b16 %v105
  %v1039 = vunpack.c.l.b16 %v106
  %v1040 = vunpack.c.l.b16 %v107
  %v1041 = vunpack.c.l.b16 %v108
  %v1042 = vunpack.c.l.b16 %v109
  %v1043 = vunpack.c.l.b16 %v110
  %v1044 = vunpack.c.l.b16 %v111
  %v1045 = vunpack.c.l.b16 %v112
  %v1046 = vunpack.c.l.b16 %v113
  %v1047 = vunpack.c.l.b16 %v114
  %v1048 = vunpack.c.l.b16 %v115
  %v1049 = vunpack.c.l.b16 %v116
  %v1050 = vunpack.c.l.b16 %v117
  %v1051 = vunpack.c.l.b16 %v118
  %v1052 = vunpack.c.l.b16 %v119
  %v1053 = vunpack.c.l.b16 %v120
  %v1054 = vunpack.c.l.b16 %v121
  %v1055 = vunpack.c.l.b16 %v122
  %v1056 = vunpack.c.l.b16 %v123
  %v1057 = vunpack.c.l.b16 %v124
  %v1058 = vunpack.c.l.b16 %v125
  %v1059 = vunpack.c.l.b16 %v126
  %v1060 = vunpack.c.l.b16 %v127
  %v1061 = vunpack.c.l.b16 %v128
  %v1062 = vunpack.c.l.b16 %v129
  %v1063 = vunpack.c.l.b16 %v130
  %v1064 = vunpack.c.l.b16 %v131
  %v1065 = vunpack.c.l.b16 %v132
  %v1066 = vunpack.c.l.b16 %v133
  %v1067 = vunpack.c.l.b16 %v134
  %v1068 = vunpack.c.l.b16 %v135
  %v1069 = vunpack.c.l.b16 %v136
  %v1070 = vunpack.c.l.b16 %v137
  %v1071 = vunpack.c.l.b16 %v138
  %v1072 = vunpack.c.l.b16 %v139
  %v1073 = vunpack.c.l.b16 %v140
  %v1074 = vunpack.c.l.b16 %v141
  %v1075 = vunpack.c.l.b16 %v142
  %v1076 = vunpack.c.l.b16 %v143
  %v1077 = vunpack.c.l.b16 %v144
  %v1078 = vunpack.c.l.b16 %v145
  %v1079 = vunpack.c.l.b16 %v146
  %v1080 = vunpack.c.l.b16 %v147
  %v1081 = vunpack.c.l.b16 %v148
  %v1082 = vunpack.c.l.b16 %v149
  %v1083 = vunpack.c.l.b16 %v150
  %v1084 = vunpack.c.l.b16 %v151
  %v1085 = vunpack.c.l.b16 %v152
  %v1086 = vunpack.c.l.b16 %v153
  %v1087 = vunpack.c.l.b16 %v154
  %v1088 = vunpack.c.l.b16 %v155
  %v1089 = vunpack.c.l.b16 %v156
  %v1090 = vunpack.c.l.b16 %v157
  %v1091 = vunpack.c.l.b16 %v158
  %v1092 = vunpack.c.l.b16 %v159
  %v1093 = vunpack.c.l.b16 %v160
  %v1094 = vunpack.c.l.b16 %v161
  %v1095 = vunpack.c.l.b16 %v162
  %v1096 = vunpack.c.l.b16 %v163
  %v1097 = vunpack.c.l.b16 %v164
  %v1098 = vunpack.c.l.b16 %v165
  %v1099 = vunpack.c.l.b16 %v166
  %v1100 = vunpack.c.l.b16 %v167
  %v1101 = vunpack.c.l.b16 %v168
  %v1102 = vunpack.c.l.b16 %v169
  %v1103 = vunpack.c.l.b16 %v170
  %v1104 = vunpack.c.l.b16 %v171
  %v1105 = vunpack.c.l.b16 %v172
  %v1106 = vunpack.c.l.b16 %v173
  %v1107 = vunpack.c.l.b16 %v174
  %v1108 = vunpack.c.l.b16 %v175
  %v1109 = vunpack.c.l.b16 %v176
  %v1110 = vunpack.c.l.b16 %v177
  %v1111 = vunpack.c.l.b16 %v178
  %v1112 = vunpack.c.l.b16 %v179
  %v1113 = vunpack.c.l.b16 %v180
  %v1114 = vunpack.c.l.b16 %v181
  %v1115 = vunpack.c.l.b16 %v182
  %v1116 = vunpack.c.l.b16 %v183
  %v1117 = vunpack.c.l.b16 %v184
  %v1118 = vunpack.c.l.b16 %v185
  %v1119 = vunpack.c.l.b16 %v186
  %v1120 = vunpack.c.l.b16 %v187
  %v1121 = vunpack.c.l.b16 %v188
  %v1122 = vunpack.c.l.b16 %v189
  %v1123 = vunpack.c.l.b16 %v190
  %v1124 = vunpack.c.l.b16 %v191
  %v1125 = vunpack.c.l.b16 %v192
  %v1126 = vunpack.c.l.b16 %v193
  %v1127 = vunpack.c.l.b16 %v194
  %v1128 = vunpack.c.l.b16 %v195
  %v1129 = vunpack.c.l.b16 %v196
  %v1130 = vunpack.c.l.b16 %v197
  %v1131 = vunpack.c.l.b16 %v198
  %v1132 = vunpack.c.l.b16 %v199
  %v1133 = vunpack.c.l.b16 %v200
  %v1134 = vunpack.c.l.b16 %v201
  %v1135 = vunpack.c.l.b16 %v202
  %v1136 = vunpack.c.l.b16 %v203
  %v1137 = vunpack.c.l.b16 %v204
  %v1138 = vunpack.c.l.b16 %v205
  %v1139 = vunpack.c.l.b16 %v206
  %v1140 = vunpack.c.l.b16 %v207
  %v1141 = vunpack.c.l.b16 %v208
  %v1142 = vunpack.c.l.b16 %v209
  %v1143 = vunpack.c.l.b16 %v210
  %v1144 = vunpack.c.l.b16 %v211
  %v1145 = vunpack.c.l.b16 %v212
  %v1146 = vunpack.c.l.b16 %v213
  %v1147 = vunpack.c.l.b16 %v214
  %v1148 = vunpack.c.l.b16 %v215
  %v1149 = vunpack.c.l.b16 %v216
  %v1150 = vunpack.c.l.b16 %v217
  %v1151 = vunpack.c.l.b16 %v218
  %v1152 = vunpack.c.l.b16 %v219
  %v1153 = vunpack.c.l.b16 %v220
  %v1154 = vunpack.c.l.b16 %v221
  %v1155 = vunpack.c.l.b16 %v222
  %v1156 = vunpack.c.l.b16 %v223
  %v1157 = vunpack.c.l.b16 %v224
  %v1158 = vunpack.c.l.b16 %v225
  %v1159 = vunpack.c.l.b16 %v226
  %v1160 = vunpack.c.l.b16 %v227
  %v1161 = vunpack.c.l.b16 %v228
  %v1162 = vunpack.c.l.b16 %v229
  %v1163 = vunpack.c.l.b16 %v230
  %v1164 = vunpack.c.l.b16 %v231
  %v1165 = vunpack.c.l.b16 %v232
  %v1166 = vunpack.c.l.b16 %v233
  %v1167 = vunpack.c.l.b16 %v234
  %v1168 = vunpack.c.l.b16 %v235
  %v1169 = vunpack.c.l.b16 %v236
  %v1170 = vunpack.c.l.b16 %v237
  %v1171 = vunpack.c.l.b16 %v238
  %v1172 = vunpack.c.l.b16 %v239
  %v1173 = vunpack.c.l.b16 %v240
  %v1174 = vunpack.c.l.b16 %v241
  %v1175 = vunpack.c.l.b16 %v242
  %v1176 = vunpack.c.l.b16 %v243
  %v1177 = vunpack.c.l.b16 %v244
  %v1178 = vunpack.c.l.b16 %v245
  %v1179 = vunpack.c.l.b16 %v246
  %v1180 = vunpack.c.l.b16 %v247
  %v1181 = vunpack.c.l.b16 %v248
  %v1182 = vunpack.c.l.b16 %v249
  %v1183 = vunpack.c.l.b16 %v250
  %v1184 = vunpack.c.l.b16 %v251
  %v1185 = vunpack.c.l.b16 %v252
  %v1186 = vunpack.c.l.b16 %v253
  %v1187 = vunpack.c.l.b16 %v254
  %v1188 = vunpack.c.l.b16 %v255
  %v1189 = vunpack.c.l.b16 %v256
  %v1190 = vunpack.c.l.b16 %v257
  %v1191 = vunpack.c.l.b16 %v258
  %v1192 = vunpack.c.l.b16 %v259
  %v1193 = vunpack.c.l.b16 %v260
  %v1194 = vunpack.c.l.b16 %v261
  %v1195 = vunpack.c.l.b16 %v262
  %v1196 = vunpack.c.l.b16 %v263
  %v1197 = vunpack.c.l.b16 %v264
  %v1198 = vunpack.c.l.b16 %v265
  %v1199 = vunpack.c.l.b16 %v266
  %v1200 = vunpack.c.l.b16 %v267
  %v1201 = vunpack.c.l.b16 %v268
  %v1202 = vunpack.c.l.b16 %v269
  %v1203 = vunpack.c.l.b16 %v270
  %v1204 = vunpack.c.l.b16 %v271
  %v1205 = vunpack.c.l.b16 %v272
  %v1206 = vunpack.c.l.b16 %v273
  %v1207 = vunpack.c.l.b16 %v274
  %v1208 = vunpack.c.l.b16 %v275
  %v1209 = vunpack.c.l.b16 %v276
  %v1210 = vunpack.c.l.b16 %v277
  %v1211 = vunpack.c.l.b16 %v278
  %v1212 = vunpack.c.l.b16 %v279
  %v1213 = vunpack.c.l.b16 %v280
  %v1214 = vunpack.c.l.b16 %v281
  %v1215 = vunpack.c.l.b16 %v282
  %v1216 = vunpack.c.l.b16 %v283
  %v1217 = vunpack.c.l.b16 %v284
  %v1218 = vunpack.c.l.b16 %v285
  %v1219 = vunpack.c.l.b16 %v286
  %v1220 = vunpack.c.l.b16 %v287
  %v1221 = vunpack.c.l.b16 %v288
  %v1222 = vunpack.c.l.b16 %v289
  %v1223 = vunpack.c.l.b16 %v290
  %v1224 = vunpack.c.l.b16 %v291
  %v1225 = vunpack.c.l.b16 %v292
  %v1226 = vunpack.c.l.b16 %v293
  %v1227 = vunpack.c.l.b16 %v294
  %v1228 = vunpack.c.l.b16 %v295
  %v1229 = vunpack.c.l.b16 %v296
  %v1230 = vunpack.c.l.b16 %v297
  %v1231 = vunpack.c.l.b16 %v298
  %v1232 = vunpack.c.l.b16 %v299
  %v1233 = vunpack.c.l.b16 %v300
  %v1234 = vunpack.c.l.b16 %v301
  %v1235 = vunpack.c.l.b16 %v302
  %v1236 = vunpack.c.l.b16 %v303
  %v1237 = vunpack.c.l.b16 %v304
  %v1238 = vunpack.c.l.b16 %v305
  %v1239 = vunpack.c.l.b16 %v306
  %v1240 = vunpack.c.l.b16 %v307
  %v1241 = vunpack.c.l.b16 %v308
  %v1242 = vunpack.c.l.b16 %v309
  %v1243 = vunpack.c.l.b16 %v310
  %v1244 = vunpack.c.l.b16 %v311
  %v1245 = vunpack.c.l.b16 %v312
  %v1246 = vunpack.c.l.b16 %v313
  %v1247 = vunpack.c.l.b16 %v314
  %v1248 = vunpack.c.l.b16 %v315
  %v1249 = vunpack.c.l.b16 %v316
  %v1250 = vunpack.c.l.b16 %v317
  %v1251 = vunpack.c.l.b16 %v318
  %v1252 = vunpack.c.l.b16 %v319
  %v1253 = vunpack.c.l.b16 %v320
  %v1254 = vunpack.c.l.b16 %v321
  %v1255 = vunpack.c.l.b16 %v322
  %v1256 = vunpack.c.l.b16 %v323
  %v1257 = vunpack.c.l.b16 %v324
  %v1258 = vunpack.c.l.b16 %v325
  %v1259 = vunpack.c.l.b16 %v326
  %v1260 = vunpack.c.l.b16 %v327
  %v1261 = vunpack.c.l.b16 %v328
  %v1262 = vunpack.c.l.b16 %v329
  %v1263 = vunpack.c.l.b16 %v330
  %v1264 = vunpack.c.l.b16 %v331
  %v1265 = vunpack.c.l.b16 %v332
  %v1266 = vunpack.c.l.b16 %v333
  %v1267 = vunpack.c.l.b16 %v334
  %v1268 = vunpack.c.l.b16 %v335
  %v1269 = vunpack.c.l.b16 %v336
  %v1270 = vunpack.c.l.b16 %v337
  %v1271 = vunpack.c.l.b16 %v338
  %v1272 = vunpack.c.l.b16 %v339
  %v1273 = vunpack.c.l.b16 %v340
  %v1274 = vunpack.c.l.b16 %v341
  %v1275 = vunpack.c.l.b16 %v342
  %v1276 = vunpack.c.l.b16 %v343
  %v1277 = vunpack.c.l.b16 %v344
  %v1278 = vunpack.c.l.b16 %v345
  %v1279 = vunpack.c.l.b16 %v346
  %v1280 = vunpack.c.l.b16 %v347
  %v1281 = vunpack.c.l.b16 %v348
  %v1282 = vunpack.c.l.b16 %v349
  %v1283 = vunpack.c.l.b16 %v350
  %v1284 = vunpack.c.l.b16 %v351
  %v1285 = vunpack.c.l.b16 %v352
  %v1286 = vunpack.c.l.b16 %v353
  %v1287 = vunpack.c.l.b16 %v354
  %v1288 = vunpack.c.l.b16 %v355
  %v1289 = vunpack.c.l.b16 %v356
  %v1290 = vunpack.c.l.b16 %v357
  %v1291 = vunpack.c.l.b16 %v358
  %v1292 = vunpack.c.l.b16 %v359
  %v1293 = vunpack.c.l.b16 %v360
  %v1294 = vunpack.c.l.b16 %v361
  %v1295 = vunpack.c.l.b16 %v362
  %v1296 = vunpack.c.l.b16 %v363
  %v1297 = vunpack.c.l.b16 %v364
  %v1298 = vunpack.c.l.b16 %v365
  %v1299 = vunpack.c.l.b16 %v366
  %v1300 = vunpack.c.l.b16 %v367
  %v1301 = vunpack.c.l.b16 %v368
  %v1302 = vunpack.c.l.b16 %v369
  %v1303 = vunpack.c.l.b16 %v370
  %v1304 = vunpack.c.l.b16 %v371
  %v1305 = vunpack.c.l.b16 %v372
  %v1306 = vunpack.c.l.b16 %v373
  %v1307 = vunpack.c.l.b16 %v374
  %v1308 = vunpack.c.l.b16 %v375
  %v1309 = vunpack.c.l.b16 %v376
  %v1310 = vunpack.c.l.b16 %v377
  %v1311 = vunpack.c.l.b16 %v378
  %v1312 = vunpack.c.l.b16 %v379
  %v1313 = vunpack.c.l.b16 %v380
  %v1314 = vunpack.c.l.b16 %v381
  %v1315 = vunpack.c.l.b16 %v382
  %v1316 = vunpack.c.l.b16 %v383
  %v1317 = vunpack.c.l.b16 %v384
  %v1318 = vunpack.c.l.b16 %v385
  %v1319 = vunpack.c.l.b16 %v386
  %v1320 = vunpack.c.l.b16 %v387
  %v1321 = vunpack.c.l.b16 %v388
  %v1322 = vunpack.c.l.b16 %v389
  %v1323 = vunpack.c.l.b16 %v390
  %v1324 = vunpack.c.l.b16 %v391
  %v1325 = vunpack.c.l.b16 %v392
  %v1326 = vunpack.c.l.b16 %v393
  %v1327 = vunpack.c.l.b16 %v394
  %v1328 = vunpack.c.l.b16 %v395
  %v1329 = vunpack.c.l.b16 %v396
  %v1330 = vunpack.c.l.b16 %v397
  %v1331 = vunpack.c.l.b16 %v398
  %v1332 = vunpack.c.l.b16 %v399
  %v1333 = vunpack.c.l.b16 %v400
  %v1334 = vunpack.c.l.b16 %v401
  %v1335 = vunpack.c.l.b16 %v402
  %v1336 = vunpack.c.l.b16 %v403
  %v1337 = vunpack.c.l.b16 %v404
  %v1338 = vunpack.c.l.b16 %v405
  %v1339 = vunpack.c.l.b16 %v406
  %v1340 = vunpack.c.l.b16 %v407
  %v1341 = vunpack.c.l.b16 %v408
  %v1342 = vunpack.c.l.b16 %v409
  %v1343 = vunpack.c.l.b16 %v410
  %v1344 = vunpack.c.l.b16 %v411
  %v1345 = vunpack.c.l.b16 %v412
  %v1346 = vunpack.c.l.b16 %v413
  %v1347 = vunpack.c.l.b16 %v414
  %v1348 = vunpack.c.l.b16 %v415
  %v1349 = vunpack.c.l.b16 %v416
  %v1350 = vunpack.c.l.b16 %v417
  %v1351 = vunpack.c.l.b16 %v418
  %v1352 = vunpack.c.l.b16 %v419
  %v1353 = vunpack.c.l.b16 %v420
  %v1354 = vunpack.c.l.b16 %v421
  %v1355 = vunpack.c.l.b16 %v422
  %v1356 = vunpack.c.l.b16 %v423
  %v1357 = vunpack.c.l.b16 %v424
  %v1358 = vunpack.c.l.b16 %v425
  %v1359 = vunpack.c.l.b16 %v426
  %v1360 = vunpack.c.l.b16 %v427
  %v1361 = vunpack.c.l.b16 %v428
  %v1362 = vunpack.c.l.b16 %v429
  %v1363 = vunpack.c.l.b16 %v430
  %v1364 = vunpack.c.l.b16 %v431
  %v1365 = vunpack.c.l.b16 %v432
  %v1366 = vunpack.c.l.b16 %v433
  %v1367 = vunpack.c.l.b16 %v434
  %v1368 = vunpack.c.l.b16 %v435
  %v1369 = vunpack.c.l.b16 %v436
  %v1370 = vunpack.c.l.b16 %v437
  %v1371 = vunpack.c.l.b16 %v438
  %v1372 = vunpack.c.l.b16 %v439
  %v1373 = vunpack.c.l.b16 %v440
  %v1374 = vunpack.c.l.b16 %v441
  %v1375 = vunpack.c.l.b16 %v442
  %v1376 = vunpack.c.l.b16 %v443
  %v1377 = vunpack.c.l.b16 %v444
  %v1378 = vunpack.c.l.b16 %v445
  %v1379 = vunpack.c.l.b16 %v446
  %v1380 = vunpack.c.l.b16 %v447
  %v1381 = vunpack.c.l.b16 %v448
  %v1382 = vunpack.c.l.b16 %v449
  %v1383 = vunpack.c.l.b16 %v450
  %v1384 = vunpack.c.l.b16 %v451
  %v1385 = vunpack.c.l.b16 %v452
  %v1386 = vpack.c.b16 %v987, %v986
  %v1387 = vpack.c.b16 %v989, %v988
  %v1388 = vpack.c.b16 %v991, %v990
  %v1389 = vpack.c.b16 %v993, %v992
  %v1390 = vpack.c.b16 %v995, %v994
  %v1391 = vpack.c.b16 %v997, %v996
  %v1392 = vpack.c.b16 %v999, %v998
  %v1393 = vpack.c.b16 %v1001, %v1000
  %v1394 = vpack.c.b16 %v1003, %v1002
  %v1395 = vpack.c.b16 %v1005, %v1004
  %v1396 = vpack.c.b16 %v1007, %v1006
  %v1397 = vpack.c.b16 %v1009, %v1008
  %v1398 = vpack.c.b16 %v1011, %v1010
  %v1399 = vpack.c.b16 %v1013, %v1012
  %v1400 = vpack.c.b16 %v1015, %v1014
  %v1401 = vpack.c.b16 %v1017, %v1016
  %v1402 = vpack.c.b16 %v1019, %v1018
  %v1403 = vpack.c.b16 %v1021, %v1020
  %v1404 = vpack.c.b16 %v1023, %v1022
  %v1405 = vpack.c.b16 %v1025, %v1024
  %v1406 = vpack.c.b16 %v1027, %v1026
  %v1407 = vpack.c.b16 %v1029, %v1028
  %v1408 = vpack.c.b16 %v1031, %v1030
  %v1409 = vpack.c.b16 %v1033, %v1032
  %v1410 = vpack.c.b16 %v1035, %v1034
  %v1411 = vpack.c.b16 %v1037, %v1036
  %v1412 = vpack.c.b16 %v1039, %v1038
  %v1413 = vpack.c.b16 %v1041, %v1040
  %v1414 = vpack.c.b16 %v1043, %v1042
  %v1415 = vpack.c.b16 %v1045, %v1044
  %v1416 = vpack.c.b16 %v1047, %v1046
  %v1417 = vpack.c.b16 %v1049, %v1048
  %v1418 = vpack.c.b16 %v1051, %v1050
  %v1419 = vpack.c.b16 %v1053, %v1052
  %v1420 = vpack.c.b16 %v1055, %v1054
  %v1421 = vpack.c.b16 %v1057, %v1056
  %v1422 = vpack.c.b16 %v1059, %v1058
  %v1423 = vpack.c.b16 %v1061, %v1060
  %v1424 = vpack.c.b16 %v1063, %v1062
  %v1425 = vpack.c.b16 %v1065, %v1064
  %v1426 = vpack.c.b16 %v1067, %v1066
  %v1427 = vpack.c.b16 %v1069, %v1068
  %v1428 = vpack.c.b16 %v1071, %v1070
  %v1429 = vpack.c.b16 %v1073, %v1072
  %v1430 = vpack.c.b16 %v1075, %v1074
  %v1431 = vpack.c.b16 %v1077, %v1076
  %v1432 = vpack.c.b16 %v1079, %v1078
  %v1433 = vpack.c.b16 %v1081, %v1080
  %v1434 = vpack.c.b16 %v1083, %v1082
  %v1435 = vpack.c.b16 %v1085, %v1084
  %v1436 = vpack.c.b16 %v1087, %v1086
  %v1437 = vpack.c.b16 %v1089, %v1088
  %v1438 = vpack.c.b16 %v1091, %v1090
  %v1439 = vpack.c.b16 %v1093, %v1092
  %v1440 = vpack.c.b16 %v1095, %v1094
  %v1441 = vpack.c.b16 %v1097, %v1096
  %v1442 = vpack.c.b16 %v1099, %v1098
  %v1443 = vpack.c.b16 %v1101, %v1100
  %v1444 = vpack.c.b16 %v1103, %v1102
  %v1445 = vpack.c.b16 %v1105, %v1104
  %v1446 = vpack.c.b16 %v1107, %v1106
  %v1447 = vpack.c.b16 %v1109, %v1108
  %v1448 = vpack.c.b16 %v1111, %v1110
  %v1449 = vpack.c.b16 %v1113, %v1112
  %v1450 = vpack.c.b16 %v1115, %v1114
  %v1451 = vpack.c.b16 %v1117, %v1116
  %v1452 = vpack.c.b16 %v1119, %v1118
  %v1453 = vpack.c.b16 %v1121, %v1120
  %v1454 = vpack.c.b16 %v1123, %v1122
  %v1455 = vpack.c.b16 %v1125, %v1124
  %v1456 = vpack.c.b16 %v1127, %v1126
  %v1457 = vpack.c.b16 %v1129, %v1128
  %v1458 = vpack.c.b16 %v1131, %v1130
  %v1459 = vpack.c.b16 %v1133, %v1132
  %v1460 = vpack.c.b16 %v1135, %v1134
  %v1461 = vpack.c.b16 %v1137, %v1136
  %v1462 = vpack.c.b16 %v1139, %v1138
  %v1463 = vpack.c.b16 %v1141, %v1140
  %v1464 = vpack.c.b16 %v1143, %v1142
  %v1465 = vpack.c.b16 %v1145, %v1144
  %v1466 = vpack.c.b16 %v1147, %v1146
  %v1467 = vpack.c.b16 %v1149, %v1148
  %v1468 = vpack.c.b16 %v1151, %v1150
  %v1469 = vpack.c.b16 %v1153, %v1152
  %v1470 = vpack.c.b16 %v1155, %v1154
  %v1471 = vpack.c.b16 %v1157, %v1156
  %v1472 = vpack.c.b16 %v1159, %v1158
  %v1473 = vpack.c.b16 %v1161, %v1160
  %v1474 = vpack.c.b16 %v1163, %v1162
  %v1475 = vpack.c.b16 %v1165, %v1164
  %v1476 = vpack.c.b16 %v1167, %v1166
  %v1477 = vpack.c.b16 %v1169, %v1168
  %v1478 = vpack.c.b16 %v1171, %v1170
  %v1479 = vpack.c.b16 %v1173, %v1172
  %v1480 = vpack.c.b16 %v1175, %v1174
  %v1481 = vpack.c.b16 %v1177, %v1176
  %v1482 = vpack.c.b16 %v1179, %v1178
  %v1483 = vpack.c.b16 %v1181, %v1180
  %v1484 = vpack.c.b16 %v1183, %v1182
  %v1485 = vpack.c.b16 %v1185, %v1184
  %v1486 = vpack.c.b16 %v1187, %v1186
  %v1487 = vpack.c.b16 %v1189, %v1188
  %v1488 = vpack.c.b16 %v1191, %v1190
  %v1489 = vpack.c.b16 %v1193, %v1192
  %v1490 = vpack.c.b16 %v1195, %v1194
  %v1491 = vpack.c.b16 %v1197, %v1196
  %v1492 = vpack.c.b16 %v1199, %v1198
  %v1493 = vpack.c.b16 %v1201, %v1200
  %v1494 = vpack.c.b16 %v1203, %v1202
  %v1495 = vpack.c.b16 %v1205, %v1204
  %v1496 = vpack.c.b16 %v1207, %v1206
  %v1497 = vpack.c.b16 %v1209, %v1208
  %v1498 = vpack.c.b16 %v1211, %v1210
  %v1499 = vpack.c.b16 %v1213, %v1212
  %v1500 = vpack.c.b16 %v1215, %v1214
  %v1501 = vpack.c.b16 %v1217, %v1216
  %v1502 = vpack.c.b16 %v1219, %v1218
  %v1503 = vpack.c.b16 %v1221, %v1220
  %v1504 = vpack.c.b16 %v1223, %v1222
  %v1505 = vpack.c.b16 %v1225, %v1224
  %v1506 = vpack.c.b16 %v1227, %v1226
  %v1507 = vpack.c.b16 %v1229, %v1228
  %v1508 = vpack.c.b16 %v1231, %v1230
  %v1509 = vpack.c.b16 %v1233, %v1232
  %v1510 = vpack.c.b16 %v1235, %v1234
  %v1511 = vpack.c.b16 %v1237, %v1236
  %v1512 = vpack.c.b16 %v1239, %v1238
  %v1513 = vpack.c.b16 %v1241, %v1240
  %v1514 = vpack.c.b16 %v1243, %v1242
  %v1515 = vpack.c.b16 %v1245, %v1244
  %v1516 = vpack.c.b16 %v1247, %v1246
  %v1517 = vpack.c.b16 %v1249, %v1248
  %v1518 = vpack.c.b16 %v1251, %v1250
  %v1519 = vpack.c.b16 %v1253, %v1252
  %v1520 = vpack.c.b16 %v1255, %v1254
  %v1521 = vpack.c.b16 %v1257, %v1256
  %v1522 = vpack.c.b16 %v1259, %v1258
  %v1523 = vpack.c.b16 %v1261, %v1260
  %v1524 = vpack.c.b16 %v1263, %v1262
  %v1525 = vpack.c.b16 %v1265, %v1264
  %v1526 = vpack.c.b16 %v1267, %v1266
  %v1527 = vpack.c.b16 %v1269, %v1268
  %v1528 = vpack.c.b16 %v1271, %v1270
  %v1529 = vpack.c.b16 %v1273, %v1272
  %v1530 = vpack.c.b16 %v1275, %v1274
  %v1531 = vpack.c.b16 %v1277, %v1276
  %v1532 = vpack.c.b16 %v1279, %v1278
  %v1533 = vpack.c.b16 %v1281, %v1280
  %v1534 = vpack.c.b16 %v1283, %v1282
  %v1535 = vpack.c.b16 %v1285, %v1284
  %v1536 = vpack.c.b16 %v1287, %v1286
  %v1537 = vpack.c.b16 %v1289, %v1288
  %v1538 = vpack.c.b16 %v1291, %v1290
  %v1539 = vpack.c.b16 %v1293, %v1292
  %v1540 = vpack.c.b16 %v1295, %v1294
  %v1541 = vpack.c.b16 %v1297, %v1296
  %v1542 = vpack.c.b16 %v1299, %v1298
  %v1543 = vpack.c.b16 %v1301, %v1300
  %v1544 = vpack.c.b16 %v1303, %v1302
  %v1545 = vpack.c.b16 %v1305, %v1304
  %v1546 = vpack.c.b16 %v1307, %v1306
  %v1547 = vpack.c.b16 %v1309, %v1308
  %v1548 = vpack.c.b16 %v1311, %v1310
  %v1549 = vpack.c.b16 %v1313, %v1312
  %v1550 = vpack.c.b16 %v1315, %v1314
  %v1551 = vpack.c.b16 %v1317, %v1316
  %v1552 = vpack.c.b16 %v1319, %v1318
  %v1553 = vpack.c.b16 %v1321, %v1320
  %v1554 = vpack.c.b16 %v1323, %v1322
  %v1555 = vpack.c.b16 %v1325, %v1324
  %v1556 = vpack.c.b16 %v1327, %v1326
  %v1557 = vpack.c.b16 %v1329, %v1328
  %v1558 = vpack.c.b16 %v1331, %v1330
  %v1559 = vpack.c.b16 %v1333, %v1332
  %v1560 = vpack.c.b16 %v1335, %v1334
  %v1561 = vpack.c.b16 %v1337, %v1336
  %v1562 = vpack.c.b16 %v1339, %v1338
  %v1563 = vpack.c.b16 %v1341, %v1340
  %v1564 = vpack.c.b16 %v1343, %v1342
  %v1565 = vpack.c.b16 %v1345, %v1344
  %v1566 = vpack.c.b16 %v1347, %v1346
  %v1567 = vpack.c.b16 %v1349, %v1348
  %v1568 = vpack.c.b16 %v1351, %v1350
  %v1569 = vpack.c.b16 %v1353, %v1352
  %v1570 = vpack.c.b16 %v1355, %v1354
  %v1571 = vpack.c.b16 %v1357, %v1356
  %v1572 = vpack.c.b16 %v1359, %v1358
  %v1573 = vpack.c.b16 %v1361, %v1360
  %v1574 = vpack.c.b16 %v1363, %v1362
  %v1575 = vpack.c.b16 %v1365, %v1364
  %v1576 = vpack.c.b16 %v1367, %v1366
  %v1577 = vpack.c.b16 %v1369, %v1368
  %v1578 = vpack.c.b16 %v1371, %v1370
  %v1579 = vpack.c.b16 %v1373, %v1372
  %v1580 = vpack.c.b16 %v1375, %v1374
  %v1581 = vpack.c.b16 %v1377, %v1376
  %v1582 = vpack.c.b16 %v1379, %v1378
  %v1583 = vpack.c.b16 %v1381, %v1380
  %v1584 = vpack.c.b16 %v1383, %v1382
  %v1585 = vpack.c.b16 %v1385, %v1384
  %1786 = vmatprep.subr.bf16.mxu0 0
  %1787 = vmatpush1.bf16.msra.mxu0 %v1386
  %1788 = vmatprep.subr.bf16.mxu0 0
  %1789 = vmatpush1.bf16.msra.mxu0 %v1387
  %1790 = vmatprep.subr.bf16.mxu0 0
  %1791 = vmatpush1.bf16.msra.mxu0 %v1388
  %1792 = vmatprep.subr.bf16.mxu0 0
  %1793 = vmatpush1.bf16.msra.mxu0 %v1389
  %1794 = vmatprep.subr.bf16.mxu0 0
  %1795 = vmatpush1.bf16.msra.mxu0 %v1390
  %1796 = vmatprep.subr.bf16.mxu0 0
  %1797 = vmatpush1.bf16.msra.mxu0 %v1391
  %1798 = vmatprep.subr.bf16.mxu0 0
  %1799 = vmatpush1.bf16.msra.mxu0 %v1392
  %1800 = vmatprep.subr.bf16.mxu0 0
  %1801 = vmatpush1.bf16.msra.mxu0 %v1393
  %1802 = vmatprep.subr.bf16.mxu0 0
  %1803 = vmatpush1.bf16.msra.mxu0 %v1394
  %1804 = vmatprep.subr.bf16.mxu0 0
  %1805 = vmatpush1.bf16.msra.mxu0 %v1395
  %1806 = vmatprep.subr.bf16.mxu0 0
  %1807 = vmatpush1.bf16.msra.mxu0 %v1396
  %1808 = vmatprep.subr.bf16.mxu0 0
  %1809 = vmatpush1.bf16.msra.mxu0 %v1397
  %1810 = vmatprep.subr.bf16.mxu0 0
  %1811 = vmatpush1.bf16.msra.mxu0 %v1398
  %1812 = vmatprep.subr.bf16.mxu0 0
  %1813 = vmatpush1.bf16.msra.mxu0 %v1399
  %1814 = vmatprep.subr.bf16.mxu0 0
  %1815 = vmatpush1.bf16.msra.mxu0 %v1400
  %1816 = vmatprep.subr.bf16.mxu0 0
  %1817 = vmatpush1.bf16.msra.mxu0 %v1401
  %1818 = vmatprep.mubr.bf16.mxu0 %v537
  %1819 = vmatmul.mubr.bf16.gmra.mrb[0].mxu0 %v536
  %v1820 = vpop.f32.mrb[0].mxu0
  %v1821 = vadd.f32 %v458, %v1820
  %v1822 = vpop.f32.mrb[0].mxu0
  %v1823 = vpop.f32.mrb[0].mxu0
  %v1824 = vadd.f32 %v458, %v1823
  %v1825 = vpop.f32.mrb[0].mxu0
  %1826 = vdwg.mxu0
  %1827 = vmatprep.subr.bf16.mxu0 0
  %1828 = vmatpush1.bf16.msra.mxu0 %v1402
  %1829 = vmatprep.subr.bf16.mxu0 0
  %1830 = vmatpush1.bf16.msra.mxu0 %v1403
  %1831 = vmatprep.subr.bf16.mxu0 0
  %1832 = vmatpush1.bf16.msra.mxu0 %v1404
  %1833 = vmatprep.subr.bf16.mxu0 0
  %1834 = vmatpush1.bf16.msra.mxu0 %v1405
  %1835 = vmatprep.subr.bf16.mxu0 0
  %1836 = vmatpush1.bf16.msra.mxu0 %v1406
  %1837 = vmatprep.subr.bf16.mxu0 0
  %1838 = vmatpush1.bf16.msra.mxu0 %v1407
  %1839 = vmatprep.subr.bf16.mxu0 0
  %1840 = vmatpush1.bf16.msra.mxu0 %v1408
  %1841 = vmatprep.subr.bf16.mxu0 0
  %1842 = vmatpush1.bf16.msra.mxu0 %v1409
  %1843 = vmatprep.subr.bf16.mxu0 0
  %1844 = vmatpush1.bf16.msra.mxu0 %v1410
  %1845 = vmatprep.subr.bf16.mxu0 0
  %1846 = vmatpush1.bf16.msra.mxu0 %v1411
  %1847 = vmatprep.subr.bf16.mxu0 0
  %1848 = vmatpush1.bf16.msra.mxu0 %v1412
  %1849 = vmatprep.subr.bf16.mxu0 0
  %1850 = vmatpush1.bf16.msra.mxu0 %v1413
  %1851 = vmatprep.subr.bf16.mxu0 0
  %1852 = vmatpush1.bf16.msra.mxu0 %v1414
  %1853 = vmatprep.subr.bf16.mxu0 0
  %1854 = vmatpush1.bf16.msra.mxu0 %v1415
  %1855 = vmatprep.subr.bf16.mxu0 0
  %1856 = vmatpush1.bf16.msra.mxu0 %v1416
  %1857 = vmatprep.subr.bf16.mxu0 0
  %1858 = vmatpush1.bf16.msra.mxu0 %v1417
  %1859 = vmatprep.mubr.bf16.mxu0 %v539
  %1860 = vmatmul.mubr.bf16.gmra.mrb[0].mxu0 %v538
  %v1861 = vpop.f32.mrb[0].mxu0
  %v1862 = vadd.f32 %v1821, %v1861
  %v1863 = vpop.f32.mrb[0].mxu0
  %v1864 = vpop.f32.mrb[0].mxu0
  %v1865 = vadd.f32 %v1824, %v1864
  %v1866 = vpop.f32.mrb[0].mxu0
  %1867 = vdwg.mxu0
  %1868 = vmatprep.subr.bf16.mxu0 0
  %1869 = vmatpush1.bf16.msra.mxu0 %v1418
  %1870 = vmatprep.subr.bf16.mxu0 0
  %1871 = vmatpush1.bf16.msra.mxu0 %v1419
  %1872 = vmatprep.subr.bf16.mxu0 0
  %1873 = vmatpush1.bf16.msra.mxu0 %v1420
  %1874 = vmatprep.subr.bf16.mxu0 0
  %1875 = vmatpush1.bf16.msra.mxu0 %v1421
  %1876 = vmatprep.subr.bf16.mxu0 0
  %1877 = vmatpush1.bf16.msra.mxu0 %v1422
  %1878 = vmatprep.subr.bf16.mxu0 0
  %1879 = vmatpush1.bf16.msra.mxu0 %v1423
  %1880 = vmatprep.subr.bf16.mxu0 0
  %1881 = vmatpush1.bf16.msra.mxu0 %v1424
  %1882 = vmatprep.subr.bf16.mxu0 0
  %1883 = vmatpush1.bf16.msra.mxu0 %v1425
  %1884 = vmatprep.subr.bf16.mxu0 0
  %1885 = vmatpush1.bf16.msra.mxu0 %v1426
  %1886 = vmatprep.subr.bf16.mxu0 0
  %1887 = vmatpush1.bf16.msra.mxu0 %v1427
  %1888 = vmatprep.subr.bf16.mxu0 0
  %1889 = vmatpush1.bf16.msra.mxu0 %v1428
  %1890 = vmatprep.subr.bf16.mxu0 0
  %1891 = vmatpush1.bf16.msra.mxu0 %v1429
  %1892 = vmatprep.subr.bf16.mxu0 0
  %1893 = vmatpush1.bf16.msra.mxu0 %v1430
  %1894 = vmatprep.subr.bf16.mxu0 0
  %1895 = vmatpush1.bf16.msra.mxu0 %v1431
  %1896 = vmatprep.subr.bf16.mxu0 0
  %1897 = vmatpush1.bf16.msra.mxu0 %v1432
  %1898 = vmatprep.subr.bf16.mxu0 0
  %1899 = vmatpush1.bf16.msra.mxu0 %v1433
  %1900 = vmatprep.mubr.bf16.mxu0 %v541
  %1901 = vmatmul.mubr.bf16.gmra.mrb[0].mxu0 %v540
  %v1902 = vpop.f32.mrb[0].mxu0
  %v1903 = vadd.f32 %v1862, %v1902
  %v1904 = vpop.f32.mrb[0].mxu0
  %v1905 = vpop.f32.mrb[0].mxu0
  %v1906 = vadd.f32 %v1865, %v1905
  %v1907 = vpop.f32.mrb[0].mxu0
  %1908 = vdwg.mxu0
  %1909 = vmatprep.subr.bf16.mxu0 0
  %1910 = vmatpush1.bf16.msra.mxu0 %v1434
  %1911 = vmatprep.subr.bf16.mxu0 0
  %1912 = vmatpush1.bf16.msra.mxu0 %v1435
  %1913 = vmatprep.subr.bf16.mxu0 0
  %1914 = vmatpush1.bf16.msra.mxu0 %v1436
  %1915 = vmatprep.subr.bf16.mxu0 0
  %1916 = vmatpush1.bf16.msra.mxu0 %v1437
  %1917 = vmatprep.subr.bf16.mxu0 0
  %1918 = vmatpush1.bf16.msra.mxu0 %v1438
  %1919 = vmatprep.subr.bf16.mxu0 0
  %1920 = vmatpush1.bf16.msra.mxu0 %v1439
  %1921 = vmatprep.subr.bf16.mxu0 0
  %1922 = vmatpush1.bf16.msra.mxu0 %v1440
  %1923 = vmatprep.subr.bf16.mxu0 0
  %1924 = vmatpush1.bf16.msra.mxu0 %v1441
  %1925 = vmatprep.subr.bf16.mxu0 0
  %1926 = vmatpush1.bf16.msra.mxu0 %v1442
  %1927 = vmatprep.subr.bf16.mxu0 0
  %1928 = vmatpush1.bf16.msra.mxu0 %v1443
  %1929 = vmatprep.subr.bf16.mxu0 0
  %1930 = vmatpush1.bf16.msra.mxu0 %v1444
  %1931 = vmatprep.subr.bf16.mxu0 0
  %1932 = vmatpush1.bf16.msra.mxu0 %v1445
  %1933 = vmatprep.subr.bf16.mxu0 0
  %1934 = vmatpush1.bf16.msra.mxu0 %v1446
  %1935 = vmatprep.subr.bf16.mxu0 0
  %1936 = vmatpush1.bf16.msra.mxu0 %v1447
  %1937 = vmatprep.subr.bf16.mxu0 0
  %1938 = vmatpush1.bf16.msra.mxu0 %v1448
  %1939 = vmatprep.subr.bf16.mxu0 0
  %1940 = vmatpush1.bf16.msra.mxu0 %v1449
  %1941 = vmatprep.mubr.bf16.mxu0 %v543
  %1942 = vmatmul.mubr.bf16.gmra.mrb[0].mxu0 %v542
  %v1943 = vpop.f32.mrb[0].mxu0
  %v1944 = vadd.f32 %v1903, %v1943
  %v1945 = vpop.f32.mrb[0].mxu0
  %v1946 = vpop.f32.mrb[0].mxu0
  %v1947 = vadd.f32 %v1906, %v1946
  %v1948 = vpop.f32.mrb[0].mxu0
  %1949 = vdwg.mxu0
  %1950 = vmatprep.subr.bf16.mxu0 0
  %1951 = vmatpush1.bf16.msra.mxu0 %v1450
  %1952 = vmatprep.subr.bf16.mxu0 0
  %1953 = vmatpush1.bf16.msra.mxu0 %v1451
  %1954 = vmatprep.subr.bf16.mxu0 0
  %1955 = vmatpush1.bf16.msra.mxu0 %v1452
  %1956 = vmatprep.subr.bf16.mxu0 0
  %1957 = vmatpush1.bf16.msra.mxu0 %v1453
  %1958 = vmatprep.subr.bf16.mxu0 0
  %1959 = vmatpush1.bf16.msra.mxu0 %v1454
  %1960 = vmatprep.subr.bf16.mxu0 0
  %1961 = vmatpush1.bf16.msra.mxu0 %v1455
  %1962 = vmatprep.subr.bf16.mxu0 0
  %1963 = vmatpush1.bf16.msra.mxu0 %v1456
  %1964 = vmatprep.subr.bf16.mxu0 0
  %1965 = vmatpush1.bf16.msra.mxu0 %v1457
  %1966 = vmatprep.subr.bf16.mxu0 0
  %1967 = vmatpush1.bf16.msra.mxu0 %v1458
  %1968 = vmatprep.subr.bf16.mxu0 0
  %1969 = vmatpush1.bf16.msra.mxu0 %v1459
  %1970 = vmatprep.subr.bf16.mxu0 0
  %1971 = vmatpush1.bf16.msra.mxu0 %v1460
  %1972 = vmatprep.subr.bf16.mxu0 0
  %1973 = vmatpush1.bf16.msra.mxu0 %v1461
  %1974 = vmatprep.subr.bf16.mxu0 0
  %1975 = vmatpush1.bf16.msra.mxu0 %v1462
  %1976 = vmatprep.subr.bf16.mxu0 0
  %1977 = vmatpush1.bf16.msra.mxu0 %v1463
  %1978 = vmatprep.subr.bf16.mxu0 0
  %1979 = vmatpush1.bf16.msra.mxu0 %v1464
  %1980 = vmatprep.subr.bf16.mxu0 0
  %1981 = vmatpush1.bf16.msra.mxu0 %v1465
  %1982 = vmatprep.mubr.bf16.mxu0 %v545
  %1983 = vmatmul.mubr.bf16.gmra.mrb[0].mxu0 %v544
  %v1984 = vpop.f32.mrb[0].mxu0
  %v1985 = vadd.f32 %v1944, %v1984
  %v1986 = vpop.f32.mrb[0].mxu0
  %v1987 = vpop.f32.mrb[0].mxu0
  %v1988 = vadd.f32 %v1947, %v1987
  %v1989 = vpop.f32.mrb[0].mxu0
  %1990 = vdwg.mxu0
  %1991 = vmatprep.subr.bf16.mxu0 0
  %1992 = vmatpush1.bf16.msra.mxu0 %v1466
  %1993 = vmatprep.subr.bf16.mxu0 0
  %1994 = vmatpush1.bf16.msra.mxu0 %v1467
  %1995 = vmatprep.subr.bf16.mxu0 0
  %1996 = vmatpush1.bf16.msra.mxu0 %v1468
  %1997 = vmatprep.subr.bf16.mxu0 0
  %1998 = vmatpush1.bf16.msra.mxu0 %v1469
  %1999 = vmatprep.subr.bf16.mxu0 0
  %2000 = vmatpush1.bf16.msra.mxu0 %v1470
  %2001 = vmatprep.subr.bf16.mxu0 0
  %2002 = vmatpush1.bf16.msra.mxu0 %v1471
  %2003 = vmatprep.subr.bf16.mxu0 0
  %2004 = vmatpush1.bf16.msra.mxu0 %v1472
  %2005 = vmatprep.subr.bf16.mxu0 0
  %2006 = vmatpush1.bf16.msra.mxu0 %v1473
  %2007 = vmatprep.subr.bf16.mxu0 0
  %2008 = vmatpush1.bf16.msra.mxu0 %v1474
  %2009 = vmatprep.subr.bf16.mxu0 0
  %2010 = vmatpush1.bf16.msra.mxu0 %v1475
  %2011 = vmatprep.subr.bf16.mxu0 0
  %2012 = vmatpush1.bf16.msra.mxu0 %v1476
  %2013 = vmatprep.subr.bf16.mxu0 0
  %2014 = vmatpush1.bf16.msra.mxu0 %v1477
  %2015 = vmatprep.subr.bf16.mxu0 0
  %2016 = vmatpush1.bf16.msra.mxu0 %v1478
  %2017 = vmatprep.subr.bf16.mxu0 0
  %2018 = vmatpush1.bf16.msra.mxu0 %v1479
  %2019 = vmatprep.subr.bf16.mxu0 0
  %2020 = vmatpush1.bf16.msra.mxu0 %v1480
  %2021 = vmatprep.subr.bf16.mxu0 0
  %2022 = vmatpush1.bf16.msra.mxu0 %v1481
  %2023 = vmatprep.mubr.bf16.mxu0 %v547
  %2024 = vmatmul.mubr.bf16.gmra.mrb[0].mxu0 %v546
  %v2025 = vpop.f32.mrb[0].mxu0
  %v2026 = vadd.f32 %v1985, %v2025
  %v2027 = vpop.f32.mrb[0].mxu0
  %v2028 = vpop.f32.mrb[0].mxu0
  %v2029 = vadd.f32 %v1988, %v2028
  %v2030 = vpop.f32.mrb[0].mxu0
  %2031 = vdwg.mxu0
  %2032 = vmatprep.subr.bf16.mxu0 0
  %2033 = vmatpush1.bf16.msra.mxu0 %v1482
  %2034 = vmatprep.subr.bf16.mxu0 0
  %2035 = vmatpush1.bf16.msra.mxu0 %v1483
  %2036 = vmatprep.subr.bf16.mxu0 0
  %2037 = vmatpush1.bf16.msra.mxu0 %v1484
  %2038 = vmatprep.subr.bf16.mxu0 0
  %2039 = vmatpush1.bf16.msra.mxu0 %v1485
  %2040 = vmatprep.subr.bf16.mxu0 0
  %2041 = vmatpush1.bf16.msra.mxu0 %v1486
  %2042 = vmatprep.subr.bf16.mxu0 0
  %2043 = vmatpush1.bf16.msra.mxu0 %v1487
  %2044 = vmatprep.subr.bf16.mxu0 0
  %2045 = vmatpush1.bf16.msra.mxu0 %v1488
  %2046 = vmatprep.subr.bf16.mxu0 0
  %2047 = vmatpush1.bf16.msra.mxu0 %v1489
  %2048 = vmatprep.subr.bf16.mxu0 0
  %2049 = vmatpush1.bf16.msra.mxu0 %v1490
  %2050 = vmatprep.subr.bf16.mxu0 0
  %2051 = vmatpush1.bf16.msra.mxu0 %v1491
  %2052 = vmatprep.subr.bf16.mxu0 0
  %2053 = vmatpush1.bf16.msra.mxu0 %v1492
  %2054 = vmatprep.subr.bf16.mxu0 0
  %2055 = vmatpush1.bf16.msra.mxu0 %v1493
  %2056 = vmatprep.subr.bf16.mxu0 0
  %2057 = vmatpush1.bf16.msra.mxu0 %v1494
  %2058 = vmatprep.subr.bf16.mxu0 0
  %2059 = vmatpush1.bf16.msra.mxu0 %v1495
  %2060 = vmatprep.subr.bf16.mxu0 0
  %2061 = vmatpush1.bf16.msra.mxu0 %v1496
  %2062 = vmatprep.subr.bf16.mxu0 0
  %2063 = vmatpush1.bf16.msra.mxu0 %v1497
  %2064 = vmatprep.mubr.bf16.mxu0 %v549
  %2065 = vmatmul.mubr.bf16.gmra.mrb[0].mxu0 %v548
  %v2066 = vpop.f32.mrb[0].mxu0
  %v2067 = vadd.f32 %v2026, %v2066
  %v2068 = vpop.f32.mrb[0].mxu0
  %v2069 = vpop.f32.mrb[0].mxu0
  %v2070 = vadd.f32 %v2029, %v2069
  %v2071 = vpop.f32.mrb[0].mxu0
  %2072 = vdwg.mxu0
  %2073 = vmatprep.subr.bf16.mxu0 0
  %2074 = vmatpush1.bf16.msra.mxu0 %v1498
  %2075 = vmatprep.subr.bf16.mxu0 0
  %2076 = vmatpush1.bf16.msra.mxu0 %v1499
  %2077 = vmatprep.subr.bf16.mxu0 0
  %2078 = vmatpush1.bf16.msra.mxu0 %v1500
  %2079 = vmatprep.subr.bf16.mxu0 0
  %2080 = vmatpush1.bf16.msra.mxu0 %v1501
  %2081 = vmatprep.subr.bf16.mxu0 0
  %2082 = vmatpush1.bf16.msra.mxu0 %v1502
  %2083 = vmatprep.subr.bf16.mxu0 0
  %2084 = vmatpush1.bf16.msra.mxu0 %v1503
  %2085 = vmatprep.subr.bf16.mxu0 0
  %2086 = vmatpush1.bf16.msra.mxu0 %v1504
  %2087 = vmatprep.subr.bf16.mxu0 0
  %2088 = vmatpush1.bf16.msra.mxu0 %v1505
  %2089 = vmatprep.subr.bf16.mxu0 0
  %2090 = vmatpush1.bf16.msra.mxu0 %v1506
  %2091 = vmatprep.subr.bf16.mxu0 0
  %2092 = vmatpush1.bf16.msra.mxu0 %v1507
  %2093 = vmatprep.subr.bf16.mxu0 0
  %2094 = vmatpush1.bf16.msra.mxu0 %v1508
  %2095 = vmatprep.subr.bf16.mxu0 0
  %2096 = vmatpush1.bf16.msra.mxu0 %v1509
  %2097 = vmatprep.subr.bf16.mxu0 0
  %2098 = vmatpush1.bf16.msra.mxu0 %v1510
  %2099 = vmatprep.subr.bf16.mxu0 0
  %2100 = vmatpush1.bf16.msra.mxu0 %v1511
  %2101 = vmatprep.subr.bf16.mxu0 0
  %2102 = vmatpush1.bf16.msra.mxu0 %v1512
  %2103 = vmatprep.subr.bf16.mxu0 0
  %2104 = vmatpush1.bf16.msra.mxu0 %v1513
  %2105 = vmatprep.mubr.bf16.mxu0 %v551
  %2106 = vmatmul.mubr.bf16.gmra.mrb[0].mxu0 %v550
  %v2107 = vpop.f32.mrb[0].mxu0
  %v2108 = vadd.f32 %v2067, %v2107
  %v2109 = vpop.f32.mrb[0].mxu0
  %v2110 = vpop.f32.mrb[0].mxu0
  %v2111 = vadd.f32 %v2070, %v2110
  %v2112 = vpop.f32.mrb[0].mxu0
  %2113 = vdwg.mxu0
  %2114 = vmatprep.subr.bf16.mxu0 0
  %2115 = vmatpush1.bf16.msra.mxu0 %v1514
  %2116 = vmatprep.subr.bf16.mxu0 0
  %2117 = vmatpush1.bf16.msra.mxu0 %v1515
  %2118 = vmatprep.subr.bf16.mxu0 0
  %2119 = vmatpush1.bf16.msra.mxu0 %v1516
  %2120 = vmatprep.subr.bf16.mxu0 0
  %2121 = vmatpush1.bf16.msra.mxu0 %v1517
  %2122 = vmatprep.subr.bf16.mxu0 0
  %2123 = vmatpush1.bf16.msra.mxu0 %v1518
  %2124 = vmatprep.subr.bf16.mxu0 0
  %2125 = vmatpush1.bf16.msra.mxu0 %v1519
  %2126 = vmatprep.subr.bf16.mxu0 0
  %2127 = vmatpush1.bf16.msra.mxu0 %v1520
  %2128 = vmatprep.subr.bf16.mxu0 0
  %2129 = vmatpush1.bf16.msra.mxu0 %v1521
  %2130 = vmatprep.subr.bf16.mxu0 0
  %2131 = vmatpush1.bf16.msra.mxu0 %v1522
  %2132 = vmatprep.subr.bf16.mxu0 0
  %2133 = vmatpush1.bf16.msra.mxu0 %v1523
  %2134 = vmatprep.subr.bf16.mxu0 0
  %2135 = vmatpush1.bf16.msra.mxu0 %v1524
  %2136 = vmatprep.subr.bf16.mxu0 0
  %2137 = vmatpush1.bf16.msra.mxu0 %v1525
  %2138 = vmatprep.subr.bf16.mxu0 0
  %2139 = vmatpush1.bf16.msra.mxu0 %v1526
  %2140 = vmatprep.subr.bf16.mxu0 0
  %2141 = vmatpush1.bf16.msra.mxu0 %v1527
  %2142 = vmatprep.subr.bf16.mxu0 0
  %2143 = vmatpush1.bf16.msra.mxu0 %v1528
  %2144 = vmatprep.subr.bf16.mxu0 0
  %2145 = vmatpush1.bf16.msra.mxu0 %v1529
  %2146 = vmatprep.mubr.bf16.mxu0 %v553
  %2147 = vmatmul.mubr.bf16.gmra.mrb[0].mxu0 %v552
  %v2148 = vpop.f32.mrb[0].mxu0
  %v2149 = vadd.f32 %v2108, %v2148
  %v2150 = vpop.f32.mrb[0].mxu0
  %v2151 = vpop.f32.mrb[0].mxu0
  %v2152 = vadd.f32 %v2111, %v2151
  %v2153 = vpop.f32.mrb[0].mxu0
  %2154 = vdwg.mxu0
  %2155 = vmatprep.subr.bf16.mxu0 0
  %2156 = vmatpush1.bf16.msra.mxu0 %v1530
  %2157 = vmatprep.subr.bf16.mxu0 0
  %2158 = vmatpush1.bf16.msra.mxu0 %v1531
  %2159 = vmatprep.subr.bf16.mxu0 0
  %2160 = vmatpush1.bf16.msra.mxu0 %v1532
  %2161 = vmatprep.subr.bf16.mxu0 0
  %2162 = vmatpush1.bf16.msra.mxu0 %v1533
  %2163 = vmatprep.subr.bf16.mxu0 0
  %2164 = vmatpush1.bf16.msra.mxu0 %v1534
  %2165 = vmatprep.subr.bf16.mxu0 0
  %2166 = vmatpush1.bf16.msra.mxu0 %v1535
  %2167 = vmatprep.subr.bf16.mxu0 0
  %2168 = vmatpush1.bf16.msra.mxu0 %v1536
  %2169 = vmatprep.subr.bf16.mxu0 0
  %2170 = vmatpush1.bf16.msra.mxu0 %v1537
  %2171 = vmatprep.subr.bf16.mxu0 0
  %2172 = vmatpush1.bf16.msra.mxu0 %v1538
  %2173 = vmatprep.subr.bf16.mxu0 0
  %2174 = vmatpush1.bf16.msra.mxu0 %v1539
  %2175 = vmatprep.subr.bf16.mxu0 0
  %2176 = vmatpush1.bf16.msra.mxu0 %v1540
  %2177 = vmatprep.subr.bf16.mxu0 0
  %2178 = vmatpush1.bf16.msra.mxu0 %v1541
  %2179 = vmatprep.subr.bf16.mxu0 0
  %2180 = vmatpush1.bf16.msra.mxu0 %v1542
  %2181 = vmatprep.subr.bf16.mxu0 0
  %2182 = vmatpush1.bf16.msra.mxu0 %v1543
  %2183 = vmatprep.subr.bf16.mxu0 0
  %2184 = vmatpush1.bf16.msra.mxu0 %v1544
  %2185 = vmatprep.subr.bf16.mxu0 0
  %2186 = vmatpush1.bf16.msra.mxu0 %v1545
  %2187 = vmatprep.mubr.bf16.mxu0 %v555
  %2188 = vmatmul.mubr.bf16.gmra.mrb[0].mxu0 %v554
  %v2189 = vpop.f32.mrb[0].mxu0
  %v2190 = vadd.f32 %v2149, %v2189
  %v2191 = vpop.f32.mrb[0].mxu0
  %v2192 = vpop.f32.mrb[0].mxu0
  %v2193 = vadd.f32 %v2152, %v2192
  %v2194 = vpop.f32.mrb[0].mxu0
  %2195 = vdwg.mxu0
  %2196 = vmatprep.subr.bf16.mxu0 0
  %2197 = vmatpush1.bf16.msra.mxu0 %v1546
  %2198 = vmatprep.subr.bf16.mxu0 0
  %2199 = vmatpush1.bf16.msra.mxu0 %v1547
  %2200 = vmatprep.subr.bf16.mxu0 0
  %2201 = vmatpush1.bf16.msra.mxu0 %v1548
  %2202 = vmatprep.subr.bf16.mxu0 0
  %2203 = vmatpush1.bf16.msra.mxu0 %v1549
  %2204 = vmatprep.subr.bf16.mxu0 0
  %2205 = vmatpush1.bf16.msra.mxu0 %v1550
  %2206 = vmatprep.subr.bf16.mxu0 0
  %2207 = vmatpush1.bf16.msra.mxu0 %v1551
  %2208 = vmatprep.subr.bf16.mxu0 0
  %2209 = vmatpush1.bf16.msra.mxu0 %v1552
  %2210 = vmatprep.subr.bf16.mxu0 0
  %2211 = vmatpush1.bf16.msra.mxu0 %v1553
  %2212 = vmatprep.subr.bf16.mxu0 0
  %2213 = vmatpush1.bf16.msra.mxu0 %v1554
  %2214 = vmatprep.subr.bf16.mxu0 0
  %2215 = vmatpush1.bf16.msra.mxu0 %v1555
  %2216 = vmatprep.subr.bf16.mxu0 0
  %2217 = vmatpush1.bf16.msra.mxu0 %v1556
  %2218 = vmatprep.subr.bf16.mxu0 0
  %2219 = vmatpush1.bf16.msra.mxu0 %v1557
  %2220 = vmatprep.subr.bf16.mxu0 0
  %2221 = vmatpush1.bf16.msra.mxu0 %v1558
  %2222 = vmatprep.subr.bf16.mxu0 0
  %2223 = vmatpush1.bf16.msra.mxu0 %v1559
  %2224 = vmatprep.subr.bf16.mxu0 0
  %2225 = vmatpush1.bf16.msra.mxu0 %v1560
  %2226 = vmatprep.subr.bf16.mxu0 0
  %2227 = vmatpush1.bf16.msra.mxu0 %v1561
  %2228 = vmatprep.mubr.bf16.mxu0 %v557
  %2229 = vmatmul.mubr.bf16.gmra.mrb[0].mxu0 %v556
  %v2230 = vpop.f32.mrb[0].mxu0
  %v2231 = vadd.f32 %v2190, %v2230
  %v2232 = vpop.f32.mrb[0].mxu0
  %v2233 = vpop.f32.mrb[0].mxu0
  %v2234 = vadd.f32 %v2193, %v2233
  %v2235 = vpop.f32.mrb[0].mxu0
  %2236 = vdwg.mxu0
  %2237 = vmatprep.subr.bf16.mxu0 0
  %2238 = vmatpush1.bf16.msra.mxu0 %v1562
  %2239 = vmatprep.subr.bf16.mxu0 0
  %2240 = vmatpush1.bf16.msra.mxu0 %v1563
  %2241 = vmatprep.subr.bf16.mxu0 0
  %2242 = vmatpush1.bf16.msra.mxu0 %v1564
  %2243 = vmatprep.subr.bf16.mxu0 0
  %2244 = vmatpush1.bf16.msra.mxu0 %v1565
  %2245 = vmatprep.subr.bf16.mxu0 0
  %2246 = vmatpush1.bf16.msra.mxu0 %v1566
  %2247 = vmatprep.subr.bf16.mxu0 0
  %2248 = vmatpush1.bf16.msra.mxu0 %v1567
  %2249 = vmatprep.subr.bf16.mxu0 0
  %2250 = vmatpush1.bf16.msra.mxu0 %v1568
  %2251 = vmatprep.subr.bf16.mxu0 0
  %2252 = vmatpush1.bf16.msra.mxu0 %v1569
  %2253 = vmatprep.subr.bf16.mxu0 0
  %2254 = vmatpush1.bf16.msra.mxu0 %v1570
  %2255 = vmatprep.subr.bf16.mxu0 0
  %2256 = vmatpush1.bf16.msra.mxu0 %v1571
  %2257 = vmatprep.subr.bf16.mxu0 0
  %2258 = vmatpush1.bf16.msra.mxu0 %v1572
  %2259 = vmatprep.subr.bf16.mxu0 0
  %2260 = vmatpush1.bf16.msra.mxu0 %v1573
  %2261 = vmatprep.subr.bf16.mxu0 0
  %2262 = vmatpush1.bf16.msra.mxu0 %v1574
  %2263 = vmatprep.subr.bf16.mxu0 0
  %2264 = vmatpush1.bf16.msra.mxu0 %v1575
  %2265 = vmatprep.subr.bf16.mxu0 0
  %2266 = vmatpush1.bf16.msra.mxu0 %v1576
  %2267 = vmatprep.subr.bf16.mxu0 0
  %2268 = vmatpush1.bf16.msra.mxu0 %v1577
  %2269 = vmatprep.mubr.bf16.mxu0 %v559
  %2270 = vmatmul.mubr.bf16.gmra.mrb[0].mxu0 %v558
  %v2271 = vpop.f32.mrb[0].mxu0
  %v2272 = vadd.f32 %v2231, %v2271
  %v2273 = vpop.f32.mrb[0].mxu0
  %v2274 = vpop.f32.mrb[0].mxu0
  %v2275 = vadd.f32 %v2234, %v2274
  %v2276 = vpop.f32.mrb[0].mxu0
  %2277 = vdwg.mxu0
  %2278 = vmatprep.subr.bf16.mxu0 0
  %2279 = vmatpush1.bf16.msra.mxu0 %v1578
  %2280 = vmatprep.subr.bf16.mxu0 0
  %2281 = vmatpush1.bf16.msra.mxu0 %v1579
  %2282 = vmatprep.subr.bf16.mxu0 0
  %2283 = vmatpush1.bf16.msra.mxu0 %v1580
  %2284 = vmatprep.subr.bf16.mxu0 0
  %2285 = vmatpush1.bf16.msra.mxu0 %v1581
  %2286 = vmatprep.subr.bf16.mxu0 0
  %2287 = vmatpush1.bf16.msra.mxu0 %v1582
  %2288 = vmatprep.subr.bf16.mxu0 0
  %2289 = vmatpush1.bf16.msra.mxu0 %v1583
  %2290 = vmatprep.subr.bf16.mxu0 0
  %2291 = vmatpush1.bf16.msra.mxu0 %v1584
  %2292 = vmatprep.subr.bf16.mxu0 0
  %2293 = vmatpush1.bf16.msra.mxu0 %v1585
  %2294 = vmatprep.subr.bf16.mxu0 0
  %2295 = vmatpush1.bf16.msra.mxu0 0
  %2296 = vmatprep.subr.bf16.mxu0 0
  %2297 = vmatpush1.bf16.msra.mxu0 0
  %2298 = vmatprep.subr.bf16.mxu0 0
  %2299 = vmatpush1.bf16.msra.mxu0 0
  %2300 = vmatprep.subr.bf16.mxu0 0
  %2301 = vmatpush1.bf16.msra.mxu0 0
  %2302 = vmatprep.subr.bf16.mxu0 0
  %2303 = vmatpush1.bf16.msra.mxu0 0
  %2304 = vmatprep.subr.bf16.mxu0 0
  %2305 = vmatpush1.bf16.msra.mxu0 0
  %2306 = vmatprep.subr.bf16.mxu0 0
  %2307 = vmatpush1.bf16.msra.mxu0 0
  %2308 = vmatprep.subr.bf16.mxu0 0
  %2309 = vmatpush1.bf16.msra.mxu0 0
  %2310 = vmatprep.mubr.bf16.mxu0 0
  %2311 = vmatmul.mubr.bf16.gmra.mrb[0].mxu0 %v560
  %v2312 = vpop.f32.mrb[0].mxu0
  %v2313 = vadd.f32 %v2272, %v2312
  %v2314 = vpop.f32.mrb[0].mxu0
  %v2315 = vpop.f32.mrb[0].mxu0
  %v2316 = vadd.f32 %v2275, %v2315
  %v2317 = vpop.f32.mrb[0].mxu0
  %2318 = vdwg.mxu0
  %v2319 = vmax.f32 %v2313, 0.0
  %v2320 = vmax.f32 %v2316, 0.0
  %v2321 = vpack.c.bf16 %v2320, %v2319
  %v2322 = vld [vmem:[%s3] sm:$0xf]
  %v2323 = vld [vmem:[%s3 + $0x4] sm:$0xf]
  %v2324 = vld [vmem:[%s3 + $0x8] sm:$0xf]
  %v2325 = vld [vmem:[%s3 + $0xc] sm:$0xf]
  %v2326 = vld [vmem:[%s3 + $0x10] sm:$0xf]
  %v2327 = vld [vmem:[%s3 + $0x14] sm:$0xf]
  %v2328 = vld [vmem:[%s3 + $0x18] sm:$0xf]
  %v2329 = vld [vmem:[%s3 + $0x1c] sm:$0xf]
  %v2330 = vld [vmem:[%s3 + $0x20] sm:$0xf]
  %v2331 = vld [vmem:[%s3 + $0x24] sm:$0xf]
  %v2332 = vld [vmem:[%s3 + $0x28] sm:$0xf]
  %v2333 = vld [vmem:[%s3 + $0x2c] sm:$0xf]
  %v2334 = vld [vmem:[%s3 + $0x30] sm:$0xf]
  %v2335 = vld [vmem:[%s3 + $0x34] sm:$0xf]
  %v2336 = vld [vmem:[%s3 + $0x38] sm:$0xf]
  %v2337 = vld [vmem:[%s3 + $0x3c] sm:$0xf]
  %v2338 = vld [vmem:[%s4] sm:$0x1]
  %v2340 = vlaneseq
  %v2341 = vshrl.u32 %v2340, 7
  %v2342 = vsub.s32 0, %v2341
  %v2343 = vrot.slane %v2338, %v2342
  %v2361 = vunpack.c.l.b16 %v2322
  %v2362 = vunpack.c.l.b16 %v2323
  %v2363 = vunpack.c.l.b16 %v2324
  %v2364 = vunpack.c.l.b16 %v2325
  %v2365 = vunpack.c.l.b16 %v2326
  %v2366 = vunpack.c.l.b16 %v2327
  %v2367 = vunpack.c.l.b16 %v2328
  %v2368 = vunpack.c.l.b16 %v2329
  %v2369 = vunpack.c.l.b16 %v2330
  %v2370 = vunpack.c.l.b16 %v2331
  %v2371 = vunpack.c.l.b16 %v2332
  %v2372 = vunpack.c.l.b16 %v2333
  %v2373 = vunpack.c.l.b16 %v2334
  %v2374 = vunpack.c.l.b16 %v2335
  %v2375 = vunpack.c.l.b16 %v2336
  %v2376 = vunpack.c.l.b16 %v2337
  %v2377 = vpack.c.b16 %v2362, %v2361
  %v2378 = vpack.c.b16 %v2364, %v2363
  %v2379 = vpack.c.b16 %v2366, %v2365
  %v2380 = vpack.c.b16 %v2368, %v2367
  %v2381 = vpack.c.b16 %v2370, %v2369
  %v2382 = vpack.c.b16 %v2372, %v2371
  %v2383 = vpack.c.b16 %v2374, %v2373
  %v2384 = vpack.c.b16 %v2376, %v2375
  %2393 = vmatprep.subr.bf16.mxu0 0
  %2394 = vmatpush1.bf16.msra.mxu0 %v2377
  %2395 = vmatprep.subr.bf16.mxu0 0
  %2396 = vmatpush1.bf16.msra.mxu0 %v2378
  %2397 = vmatprep.subr.bf16.mxu0 0
  %2398 = vmatpush1.bf16.msra.mxu0 %v2379
  %2399 = vmatprep.subr.bf16.mxu0 0
  %2400 = vmatpush1.bf16.msra.mxu0 %v2380
  %2401 = vmatprep.subr.bf16.mxu0 0
  %2402 = vmatpush1.bf16.msra.mxu0 %v2381
  %2403 = vmatprep.subr.bf16.mxu0 0
  %2404 = vmatpush1.bf16.msra.mxu0 %v2382
  %2405 = vmatprep.subr.bf16.mxu0 0
  %2406 = vmatpush1.bf16.msra.mxu0 %v2383
  %2407 = vmatprep.subr.bf16.mxu0 0
  %2408 = vmatpush1.bf16.msra.mxu0 %v2384
  %2409 = vmatprep.subr.bf16.mxu0 0
  %2410 = vmatpush1.bf16.msra.mxu0 0
  %2411 = vmatprep.subr.bf16.mxu0 0
  %2412 = vmatpush1.bf16.msra.mxu0 0
  %2413 = vmatprep.subr.bf16.mxu0 0
  %2414 = vmatpush1.bf16.msra.mxu0 0
  %2415 = vmatprep.subr.bf16.mxu0 0
  %2416 = vmatpush1.bf16.msra.mxu0 0
  %2417 = vmatprep.subr.bf16.mxu0 0
  %2418 = vmatpush1.bf16.msra.mxu0 0
  %2419 = vmatprep.subr.bf16.mxu0 0
  %2420 = vmatpush1.bf16.msra.mxu0 0
  %2421 = vmatprep.subr.bf16.mxu0 0
  %2422 = vmatpush1.bf16.msra.mxu0 0
  %2423 = vmatprep.subr.bf16.mxu0 0
  %2424 = vmatpush1.bf16.msra.mxu0 0
  %2425 = vmatprep.mubr.bf16.mxu0 0
  %2426 = vmatmul.mubr.bf16.gmra.mrb[0].mxu0 %v2321
  %v2427 = vpop.f32.mrb[0].mxu0
  %v2428 = vadd.f32 %v2343, %v2427
  %v2429 = vpop.f32.mrb[0].mxu0
  %v2430 = vpop.f32.mrb[0].mxu0
  %v2431 = vadd.f32 %v2343, %v2430
  %v2432 = vpop.f32.mrb[0].mxu0
  %2433 = vdwg.mxu0
  %v2434 = vmax.f32 %v2428, 0.0
  %v2435 = vmax.f32 %v2431, 0.0
  %v2436 = vpack.c.bf16 %v2435, %v2434
  %v2437 = vld [vmem:[%s5] sm:$0xf]
  %v2438 = vld [vmem:[%s5 + $0x4] sm:$0xf]
  %v2439 = vld [vmem:[%s5 + $0x8] sm:$0xf]
  %v2440 = vld [vmem:[%s5 + $0xc] sm:$0xf]
  %v2441 = vld [vmem:[%s5 + $0x10] sm:$0xf]
  %v2442 = vld [vmem:[%s5 + $0x14] sm:$0xf]
  %v2443 = vld [vmem:[%s5 + $0x18] sm:$0xf]
  %v2444 = vld [vmem:[%s5 + $0x1c] sm:$0xf]
  %v2445 = vld [vmem:[%s5 + $0x20] sm:$0xf]
  %v2446 = vld [vmem:[%s5 + $0x24] sm:$0xf]
  %v2447 = vld [vmem:[%s5 + $0x28] sm:$0xf]
  %v2448 = vld [vmem:[%s5 + $0x2c] sm:$0xf]
  %v2449 = vld [vmem:[%s5 + $0x30] sm:$0xf]
  %v2450 = vld [vmem:[%s5 + $0x34] sm:$0xf]
  %v2451 = vld [vmem:[%s5 + $0x38] sm:$0xf]
  %v2452 = vld [vmem:[%s5 + $0x3c] sm:$0xf]
  %v2453 = vld [vmem:[%s6] sm:$0x1]
  %v2455 = vlaneseq
  %v2456 = vshrl.u32 %v2455, 7
  %v2457 = vsub.s32 0, %v2456
  %v2458 = vrot.slane %v2453, %v2457
  %v2476 = vunpack.c.l.b16 %v2437
  %v2477 = vunpack.c.l.b16 %v2438
  %v2478 = vunpack.c.l.b16 %v2439
  %v2479 = vunpack.c.l.b16 %v2440
  %v2480 = vunpack.c.l.b16 %v2441
  %v2481 = vunpack.c.l.b16 %v2442
  %v2482 = vunpack.c.l.b16 %v2443
  %v2483 = vunpack.c.l.b16 %v2444
  %v2484 = vunpack.c.l.b16 %v2445
  %v2485 = vunpack.c.l.b16 %v2446
  %v2486 = vunpack.c.l.b16 %v2447
  %v2487 = vunpack.c.l.b16 %v2448
  %v2488 = vunpack.c.l.b16 %v2449
  %v2489 = vunpack.c.l.b16 %v2450
  %v2490 = vunpack.c.l.b16 %v2451
  %v2491 = vunpack.c.l.b16 %v2452
  %v2492 = vpack.c.b16 %v2477, %v2476
  %v2493 = vpack.c.b16 %v2479, %v2478
  %v2494 = vpack.c.b16 %v2481, %v2480
  %v2495 = vpack.c.b16 %v2483, %v2482
  %v2496 = vpack.c.b16 %v2485, %v2484
  %v2497 = vpack.c.b16 %v2487, %v2486
  %v2498 = vpack.c.b16 %v2489, %v2488
  %v2499 = vpack.c.b16 %v2491, %v2490
  %2508 = vmatprep.subr.bf16.mxu0 0
  %2509 = vmatpush1.bf16.msra.mxu0 %v2492
  %2510 = vmatprep.subr.bf16.mxu0 0
  %2511 = vmatpush1.bf16.msra.mxu0 %v2493
  %2512 = vmatprep.subr.bf16.mxu0 0
  %2513 = vmatpush1.bf16.msra.mxu0 %v2494
  %2514 = vmatprep.subr.bf16.mxu0 0
  %2515 = vmatpush1.bf16.msra.mxu0 %v2495
  %2516 = vmatprep.subr.bf16.mxu0 0
  %2517 = vmatpush1.bf16.msra.mxu0 %v2496
  %2518 = vmatprep.subr.bf16.mxu0 0
  %2519 = vmatpush1.bf16.msra.mxu0 %v2497
  %2520 = vmatprep.subr.bf16.mxu0 0
  %2521 = vmatpush1.bf16.msra.mxu0 %v2498
  %2522 = vmatprep.subr.bf16.mxu0 0
  %2523 = vmatpush1.bf16.msra.mxu0 %v2499
  %2524 = vmatprep.subr.bf16.mxu0 0
  %2525 = vmatpush1.bf16.msra.mxu0 0
  %2526 = vmatprep.subr.bf16.mxu0 0
  %2527 = vmatpush1.bf16.msra.mxu0 0
  %2528 = vmatprep.subr.bf16.mxu0 0
  %2529 = vmatpush1.bf16.msra.mxu0 0
  %2530 = vmatprep.subr.bf16.mxu0 0
  %2531 = vmatpush1.bf16.msra.mxu0 0
  %2532 = vmatprep.subr.bf16.mxu0 0
  %2533 = vmatpush1.bf16.msra.mxu0 0
  %2534 = vmatprep.subr.bf16.mxu0 0
  %2535 = vmatpush1.bf16.msra.mxu0 0
  %2536 = vmatprep.subr.bf16.mxu0 0
  %2537 = vmatpush1.bf16.msra.mxu0 0
  %2538 = vmatprep.subr.bf16.mxu0 0
  %2539 = vmatpush1.bf16.msra.mxu0 0
  %2540 = vmatprep.mubr.bf16.mxu0 0
  %2541 = vmatmul.mubr.bf16.gmra.mrb[0].mxu0 %v2436
  %v2542 = vpop.f32.mrb[0].mxu0
  %v2543 = vadd.f32 %v2458, %v2542
  %v2544 = vpop.f32.mrb[0].mxu0
  %v2545 = vpop.f32.mrb[0].mxu0
  %v2546 = vadd.f32 %v2458, %v2545
  %v2547 = vpop.f32.mrb[0].mxu0
  %2548 = vdwg.mxu0
  %2549 = vmax.xlane.f32.xlu0 %v2543
  %v2550 = vpop.xlane.xlu0 %2549
  %2551 = vmax.xlane.f32.xlu0 %v2546
  %v2552 = vpop.xlane.xlu0 %2551
  %v2553 = vsub.f32 %v2543, %v2550
  %v2554 = vsub.f32 %v2546, %v2552
  %v2555 = vmul.f32 %v2553, 1.442695
  %v2556 = vpow.pop %v2555
  %v2557 = vmul.f32 %v2554, 1.442695
  %v2558 = vpow.pop %v2557
  %2559 = vadd.xlane.f32.xlu0 %v2556
  %v2560 = vpop.xlane.xlu0 %2559
  %2561 = vadd.xlane.f32.xlu0 %v2558
  %v2562 = vpop.xlane.xlu0 %2561
  %v2563 = vlog2.pop %v2560
  %v2564 = vmul.f32 %v2563, 0.6931472
  %v2565 = vlog2.pop %v2562
  %v2566 = vmul.f32 %v2565, 0.6931472
  %v2567 = vadd.f32 %v2550, %v2564
  %v2568 = vadd.f32 %v2552, %v2566
  %v2569 = vsub.f32 %v2543, %v2567
  %v2570 = vsub.f32 %v2546, %v2568
  %2571 = vst [vmem:[%s7] sm:$0xff] %v2569
  %2572 = vst [vmem:[%s7 + $0x8] sm:$0xff] %v2570
  // Predicated region
  $region30: #{lenet_forward.5} parent=0 // pred_check
    _
  $region31: #{lenet_forward.5} parent=0 // pred_check_branch
    %2574 = sbr.rel (0) target = $region33
  $region32: #{lenet_forward.5} parent=0 // pred_region
    _
  $region33: #{lenet_forward.5} parent=0 // pred_fallthru
    _
  // Predicated region
  $region34: #{lenet_forward.5} parent=0 // pred_check
    _
  $region35: #{lenet_forward.5} parent=0 // pred_check_branch
    %2576 = sbr.rel (0) target = $region37
  $region36: #{lenet_forward.5} parent=0 // pred_region
    _
  $region37: #{lenet_forward.5} parent=0 // pred_fallthru
    _

</llo_original>
